<compile_context>
chip_gen: v7x
topology: tpu7x:2x2x1
jax: 0.10.0
libtpu: 0.0.40
codegen_flags: <defaults>
</compile_context>

<pallas_src>
import jax
import jax.numpy as jnp
from jax.experimental import pallas as pl
from jax.experimental.pallas import tpu as pltpu


def _elu(x):
    return jnp.where(x > 0, x, jnp.exp(jnp.minimum(x, 0.0)) - 1.0)


def _im2col_dot(x, w_ref, th, w_out):
    """x: (TH+2, W+2, C) f32 -> one (TH*W, 9*C) @ (9*C, Cout) MXU matmul."""
    c = x.shape[-1]
    x = x.astype(w_ref.dtype)                         # cast once, before im2col
    cols = []
    for ky in range(3):
        for kx in range(3):
            cols.append(x[ky:ky + th, kx:kx + w_out, :].reshape(th * w_out, c))
    patch = jnp.concatenate(cols, axis=1)             # (TH*W, 9*C)
    return jnp.dot(patch, w_ref[...], preferred_element_type=jnp.float32)


def _store_stats(acc, s_ref):
    # Per-tile partial sums for the one-pass BN reduction (f32 accumulators).
    s_ref[...] = jnp.concatenate(
        [jnp.sum(acc, axis=0, keepdims=True),
         jnp.sum(acc * acc, axis=0, keepdims=True)], axis=0)


def _conv1_kernel(top_ref, cur_ref, bot_ref, w_ref, y_ref, s_ref):
    # top/bot: 1-row halo blocks of the W-padded input; cur: TH rows.
    th, wp, _ = cur_ref.shape
    w_out = wp - 2
    t = pl.program_id(1)
    nt = pl.num_programs(1)
    top = top_ref[...]
    bot = bot_ref[...]
    top = jnp.where(t > 0, top, jnp.zeros_like(top))        # zero-pad at top edge
    bot = jnp.where(t < nt - 1, bot, jnp.zeros_like(bot))   # zero-pad at bottom edge
    x = jnp.concatenate([top, cur_ref[...], bot], axis=0)   # (TH+2, W+2, Cin)
    acc = _im2col_dot(x, w_ref, th, w_out)                  # (TH*W, Cmid) f32
    # conv bias omitted: exactly cancelled by the following train-mode BN.
    y_ref[...] = acc
    _store_stats(acc, s_ref)


def _bn_elu_conv2_kernel(top_ref, cur_ref, bot_ref, w_ref, sc_ref, sh_ref,
                         y_ref, s_ref):
    # Fused: BN1 (precomputed scale/shift) + ELU on the haloed tile, then conv2.
    th, wp, _ = cur_ref.shape
    w_out = wp - 2
    t = pl.program_id(1)
    nt = pl.num_programs(1)
    y = jnp.concatenate([top_ref[...], cur_ref[...], bot_ref[...]], axis=0)
    a = _elu(y * sc_ref[...][None] + sh_ref[...][None])     # f32 BN+ELU
    # The activation's 1-pixel zero-padding ring must be exactly 0 (padding is
    # applied *after* BN+ELU), so mask the image border in-kernel.
    row = jax.lax.broadcasted_iota(jnp.int32, (th + 2, 1, 1), 0)
    col = jax.lax.broadcasted_iota(jnp.int32, (1, wp, 1), 1)
    valid = (((row > 0) | (t > 0)) & ((row <= th) | (t < nt - 1))
             & (col > 0) & (col < wp - 1))
    a = jnp.where(valid, a, 0.0)
    acc = _im2col_dot(a, w_ref, th, w_out)                  # (TH*W, Cout) f32
    y_ref[...] = acc
    _store_stats(acc, s_ref)


def _bn_elu_kernel(y_ref, sc_ref, sh_ref, o_ref):
    # Lane-dense (TH, W*Cout) elementwise BN2 + ELU.
    o_ref[...] = _elu(y_ref[...] * sc_ref[...] + sh_ref[...])


def _pick_row_tile(h, w, cin, cmid, cout, mm_bytes, budget=20 * 1024 * 1024):
    """Largest H-row tile that divides H and keeps the per-step VMEM modest
    (double-buffered blocks + im2col patch + cast copy + f32 accumulator),
    re-derived for v7x's smaller VMEM; pairs with vmem_limit_bytes below."""
    def est(th):
        worst = 0
        for cs_in, cs_out in ((cin, cmid), (cmid, cout)):
            worst = max(
                worst,
                th * w * (9 * cs_in * (4 + mm_bytes) + 12 * cs_out)
                + (th + 2) * (w + 2) * cs_in * (8 + mm_bytes)
                + 2 * 9 * cs_in * cs_out * mm_bytes)
        return worst
    for th in (128, 64, 32, 16, 8):
        if h % th == 0 and est(th) <= budget:
            return th
    return 8 if h % 8 == 0 else h


def in_conv_forward(x_nchw, params, *, matmul_dtype=jnp.bfloat16):
    """InConv.forward: (N, Cin, H, W) -> (N, Cout, H, W)."""
    eps = 1e-5
    x = jnp.transpose(x_nchw, (0, 2, 3, 1)).astype(jnp.float32)   # NCHW -> NHWC
    n, h, w, cin = x.shape
    cmid = params["w1"].shape[0]
    cout = params["w2"].shape[0]
    mm = jnp.dtype(matmul_dtype)
    th = _pick_row_tile(h, w, cin, cmid, cout, mm.itemsize)
    nt = h // th
    wp = w + 2
    cnt = float(n * h * w)

    def wmat(wt):  # torch (Cout, Cin, 3, 3) -> (9*Cin, Cout), taps ordered (ky, kx, cin)
        co, ci = wt.shape[0], wt.shape[1]
        return jnp.transpose(wt, (2, 3, 1, 0)).reshape(9 * ci, co).astype(mm)

    def row_specs(c):
        # current TH-row block plus two 1-row halo blocks of the same array
        # (clamped at the image edges; invalid halo rows are masked in-kernel).
        return [
            pl.BlockSpec((None, 1, wp, c),
                         lambda i, j: (i, jnp.maximum(j * th - 1, 0), 0, 0)),
            pl.BlockSpec((None, th, wp, c), lambda i, j: (i, j, 0, 0)),
            pl.BlockSpec((None, 1, wp, c),
                         lambda i, j: (i, jnp.minimum((j + 1) * th, h - 1), 0, 0)),
        ]

    def conv_out_specs(c):
        return [pl.BlockSpec((None, None, th * w, c), lambda i, j: (i, j, 0, 0)),
                pl.BlockSpec((None, None, 2, c), lambda i, j: (i, j, 0, 0))]

    def conv_out_shape(c):
        return [jax.ShapeDtypeStruct((n, nt, th * w, c), jnp.float32),
                jax.ShapeDtypeStruct((n, nt, 2, c), jnp.float32)]

    cp = pltpu.CompilerParams(
        dimension_semantics=("parallel", "parallel"),
        vmem_limit_bytes=32 * 1024 * 1024)

    def finalize_bn(stats, gamma, beta):
        s = jnp.sum(stats, axis=(0, 1))                     # (2, C) f32
        mean = s[0] / cnt
        var = jnp.maximum(s[1] / cnt - mean * mean, 0.0)    # one-pass moments (f32)
        scale = gamma.astype(jnp.float32) * jax.lax.rsqrt(var + eps)
        shift = beta.astype(jnp.float32) - mean * scale
        return scale, shift

    # ---- stage 1: conv1 + BN1 partial statistics ---------------------------
    xw = jnp.pad(x, ((0, 0), (0, 0), (1, 1), (0, 0)))       # zero-pad W only
    y1r, st1 = pl.pallas_call(
        _conv1_kernel,
        grid=(n, nt),
        in_specs=row_specs(cin) + [pl.BlockSpec((9 * cin, cmid), lambda i, j: (0, 0))],
        out_specs=conv_out_specs(cmid),
        out_shape=conv_out_shape(cmid),
        compiler_params=cp,
    )(xw, xw, xw, wmat(params["w1"]))
    scale1, shift1 = finalize_bn(st1, params["g1"], params["be1"])

    # ---- stage 2: BN1 + ELU + conv2 + BN2 partial statistics ---------------
    y1w = jnp.pad(y1r.reshape(n, h, w, cmid), ((0, 0), (0, 0), (1, 1), (0, 0)))
    y2r, st2 = pl.pallas_call(
        _bn_elu_conv2_kernel,
        grid=(n, nt),
        in_specs=row_specs(cmid) + [
            pl.BlockSpec((9 * cmid, cout), lambda i, j: (0, 0)),
            pl.BlockSpec((1, cmid), lambda i, j: (0, 0)),
            pl.BlockSpec((1, cmid), lambda i, j: (0, 0))],
        out_specs=conv_out_specs(cout),
        out_shape=conv_out_shape(cout),
        compiler_params=cp,
    )(y1w, y1w, y1w, wmat(params["w2"]),
      scale1.reshape(1, cmid), shift1.reshape(1, cmid))
    scale2, shift2 = finalize_bn(st2, params["g2"], params["be2"])

    # ---- stage 3: BN2 + ELU on lane-dense (TH, W*Cout) slabs ---------------
    y2d = y2r.reshape(n, nt, th, w * cout)                  # free HBM view
    out = pl.pallas_call(
        _bn_elu_kernel,
        grid=(n, nt),
        in_specs=[pl.BlockSpec((None, None, th, w * cout), lambda i, j: (i, j, 0, 0)),
                  pl.BlockSpec((1, w * cout), lambda i, j: (0, 0)),
                  pl.BlockSpec((1, w * cout), lambda i, j: (0, 0))],
        out_specs=pl.BlockSpec((None, None, th, w * cout), lambda i, j: (i, j, 0, 0)),
        out_shape=jax.ShapeDtypeStruct((n, nt, th, w * cout), jnp.float32),
        compiler_params=cp,
    )(y2d, jnp.tile(scale2, w).reshape(1, w * cout),
      jnp.tile(shift2, w).reshape(1, w * cout))

    out = out.reshape(n, h, w, cout)
    return jnp.transpose(out, (0, 3, 1, 2))                 # NHWC -> NCHW


def _ref_forward(x, p, conv_dtype=jnp.float32):
    """Pure-JAX reference matching the PyTorch forward (train-mode BN).
    conv_dtype controls the conv operand precision (accumulation is f32),
    mirroring the kernel's matmul_dtype."""
    def conv(y, wt, b):
        out = jax.lax.conv_general_dilated(
            y.astype(conv_dtype), wt.astype(conv_dtype),
            window_strides=(1, 1), padding=((1, 1), (1, 1)),
            dimension_numbers=("NCHW", "OIHW", "NCHW"),
            preferred_element_type=jnp.float32)
        return out + b.reshape(1, -1, 1, 1)

    def bn(y, g, b):
        mean = jnp.mean(y, axis=(0, 2, 3), keepdims=True)
        var = jnp.mean((y - mean) ** 2, axis=(0, 2, 3), keepdims=True)
        return ((y - mean) * jax.lax.rsqrt(var + 1e-5) * g.reshape(1, -1, 1, 1)
                + b.reshape(1, -1, 1, 1))

    y = jax.nn.elu(bn(conv(x, p["w1"], p["b1"]), p["g1"], p["be1"]))
    y = jax.nn.elu(bn(conv(y, p["w2"], p["b2"]), p["g2"], p["be2"]))
    return y


if __name__ == "__main__":
    in_ch, out_ch = 4, 8
    n, h, w = 2, 24, 24          # H=W=24 -> TH=8, 3 row-tiles (exercises halos)

    key = jax.random.PRNGKey(0)
    ks = jax.random.split(key, 9)
    params = {
        "w1": 0.2 * jax.random.normal(ks[0], (out_ch, in_ch, 3, 3), jnp.float32),
        "b1": 0.1 * jax.random.normal(ks[1], (out_ch,), jnp.float32),
        "g1": 1.0 + 0.1 * jax.random.normal(ks[2], (out_ch,), jnp.float32),
        "be1": 0.1 * jax.random.normal(ks[3], (out_ch,), jnp.float32),
        "w2": 0.2 * jax.random.normal(ks[4], (out_ch, out_ch, 3, 3), jnp.float32),
        "b2": 0.1 * jax.random.normal(ks[5], (out_ch,), jnp.float32),
        "g2": 1.0 + 0.1 * jax.random.normal(ks[6], (out_ch,), jnp.float32),
        "be2": 0.1 * jax.random.normal(ks[7], (out_ch,), jnp.float32),
    }
    x = jax.random.normal(ks[8], (n, in_ch, h, w), jnp.float32)

    # Exact f32 matmul path vs f32 reference (tight tolerance).
    f32_fwd = jax.jit(lambda a, p: in_conv_forward(a, p, matmul_dtype=jnp.float32))
    out32 = jax.block_until_ready(f32_fwd(x, params))
    assert out32.shape == (n, out_ch, h, w), out32.shape
    ref32 = _ref_forward(x, params, conv_dtype=jnp.float32)
    err32 = float(jnp.max(jnp.abs(out32 - ref32)))
    assert jnp.allclose(out32, ref32, atol=2e-4, rtol=2e-4), err32

    # Default bf16-MXU path vs a reference that also feeds the convs bf16.
    out_bf = jax.block_until_ready(jax.jit(in_conv_forward)(x, params))
    ref_bf = _ref_forward(x, params, conv_dtype=jnp.bfloat16)
    err_bf = float(jnp.max(jnp.abs(out_bf - ref_bf)))
    assert jnp.allclose(out_bf, ref_bf, atol=5e-3, rtol=5e-3), err_bf

    print("KERNEL_OK")
</pallas_src>

<mosaic_0001>
module attributes {stable_mosaic.version = 11 : i64} {
  func.func @_conv1_kernel(%arg0: i32, %arg1: i32, %arg2: memref<1x1x26x4xf32, #tpu.memory_space<vmem>>, %arg3: memref<1x8x26x4xf32, #tpu.memory_space<vmem>>, %arg4: memref<1x1x26x4xf32, #tpu.memory_space<vmem>>, %arg5: memref<36x8xf32, #tpu.memory_space<vmem>>, %arg6: memref<1x1x192x8xf32, #tpu.memory_space<vmem>>, %arg7: memref<1x1x2x8xf32, #tpu.memory_space<vmem>>) attributes {dimension_semantics = [#tpu.dimension_semantics<parallel>, #tpu.dimension_semantics<parallel>], iteration_bounds = array<i64: 2, 3>, scalar_prefetch = 0 : i64, scratch_operands = 0 : i64, tpu.core_type = #tpu.core_type<tc>, window_params = [{transform_indices = @transform_0, window_bounds = array<i64: 1, 1, 26, 4>}, {transform_indices = @transform_1, window_bounds = array<i64: 1, 8, 26, 4>}, {transform_indices = @transform_2, window_bounds = array<i64: 1, 1, 26, 4>}, {pipeline_mode = #tpu.pipeline_mode<synchronous>, transform_indices = @transform_3, window_bounds = array<i64: 36, 8>}, {transform_indices = @transform_4, window_bounds = array<i64: 1, 1, 192, 8>}, {transform_indices = @transform_5, window_bounds = array<i64: 1, 1, 2, 8>}]} {
    %c0 = arith.constant 0 : index
    %c0_0 = arith.constant 0 : index
    %c0_1 = arith.constant 0 : index
    %c0_2 = arith.constant 0 : index
    %0 = vector.load %arg2[%c0, %c0_0, %c0_1, %c0_2] : memref<1x1x26x4xf32, #tpu.memory_space<vmem>>, vector<1x1x26x4xf32>
    %1 = vector.shape_cast %0 : vector<1x1x26x4xf32> to vector<1x26x4xf32>
    %c0_3 = arith.constant 0 : index
    %c0_4 = arith.constant 0 : index
    %c0_5 = arith.constant 0 : index
    %c0_6 = arith.constant 0 : index
    %2 = vector.load %arg4[%c0_3, %c0_4, %c0_5, %c0_6] : memref<1x1x26x4xf32, #tpu.memory_space<vmem>>, vector<1x1x26x4xf32>
    %3 = vector.shape_cast %2 : vector<1x1x26x4xf32> to vector<1x26x4xf32>
    %c0_i32 = arith.constant 0 : i32
    %4 = arith.cmpi sgt, %arg1, %c0_i32 : i32
    %cst = arith.constant 0.000000e+00 : f32
    %5 = vector.broadcast %cst : f32 to vector<1x26x4xf32>
    %6 = arith.select %4, %1, %5 : vector<1x26x4xf32>
    %c2_i32 = arith.constant 2 : i32
    %7 = arith.cmpi slt, %arg1, %c2_i32 : i32
    %cst_7 = arith.constant 0.000000e+00 : f32
    %8 = vector.broadcast %cst_7 : f32 to vector<1x26x4xf32>
    %9 = arith.select %7, %3, %8 : vector<1x26x4xf32>
    %c0_8 = arith.constant 0 : index
    %c0_9 = arith.constant 0 : index
    %c0_10 = arith.constant 0 : index
    %c0_11 = arith.constant 0 : index
    %10 = vector.load %arg3[%c0_8, %c0_9, %c0_10, %c0_11] : memref<1x8x26x4xf32, #tpu.memory_space<vmem>>, vector<1x8x26x4xf32>
    %11 = vector.shape_cast %10 : vector<1x8x26x4xf32> to vector<8x26x4xf32>
    %12 = tpu.concatenate %6, %11, %9 in 0 : vector<1x26x4xf32>, vector<8x26x4xf32>, vector<1x26x4xf32> -> vector<10x26x4xf32>
    %13 = vector.extract_strided_slice %12 {offsets = [0, 0, 0], sizes = [8, 24, 4], strides = [1, 1, 1]} : vector<10x26x4xf32> to vector<8x24x4xf32>
    %14 = vector.shape_cast %13 : vector<8x24x4xf32> to vector<192x4xf32>
    %15 = vector.extract_strided_slice %12 {offsets = [0, 1, 0], sizes = [8, 24, 4], strides = [1, 1, 1]} : vector<10x26x4xf32> to vector<8x24x4xf32>
    %16 = vector.shape_cast %15 : vector<8x24x4xf32> to vector<192x4xf32>
    %17 = vector.extract_strided_slice %12 {offsets = [0, 2, 0], sizes = [8, 24, 4], strides = [1, 1, 1]} : vector<10x26x4xf32> to vector<8x24x4xf32>
    %18 = vector.shape_cast %17 : vector<8x24x4xf32> to vector<192x4xf32>
    %19 = vector.extract_strided_slice %12 {offsets = [1, 0, 0], sizes = [8, 24, 4], strides = [1, 1, 1]} : vector<10x26x4xf32> to vector<8x24x4xf32>
    %20 = vector.shape_cast %19 : vector<8x24x4xf32> to vector<192x4xf32>
    %21 = vector.extract_strided_slice %12 {offsets = [1, 1, 0], sizes = [8, 24, 4], strides = [1, 1, 1]} : vector<10x26x4xf32> to vector<8x24x4xf32>
    %22 = vector.shape_cast %21 : vector<8x24x4xf32> to vector<192x4xf32>
    %23 = vector.extract_strided_slice %12 {offsets = [1, 2, 0], sizes = [8, 24, 4], strides = [1, 1, 1]} : vector<10x26x4xf32> to vector<8x24x4xf32>
    %24 = vector.shape_cast %23 : vector<8x24x4xf32> to vector<192x4xf32>
    %25 = vector.extract_strided_slice %12 {offsets = [2, 0, 0], sizes = [8, 24, 4], strides = [1, 1, 1]} : vector<10x26x4xf32> to vector<8x24x4xf32>
    %26 = vector.shape_cast %25 : vector<8x24x4xf32> to vector<192x4xf32>
    %27 = vector.extract_strided_slice %12 {offsets = [2, 1, 0], sizes = [8, 24, 4], strides = [1, 1, 1]} : vector<10x26x4xf32> to vector<8x24x4xf32>
    %28 = vector.shape_cast %27 : vector<8x24x4xf32> to vector<192x4xf32>
    %29 = vector.extract_strided_slice %12 {offsets = [2, 2, 0], sizes = [8, 24, 4], strides = [1, 1, 1]} : vector<10x26x4xf32> to vector<8x24x4xf32>
    %30 = vector.shape_cast %29 : vector<8x24x4xf32> to vector<192x4xf32>
    %31 = tpu.concatenate %14, %16, %18, %20, %22, %24, %26, %28, %30 in 1 : vector<192x4xf32>, vector<192x4xf32>, vector<192x4xf32>, vector<192x4xf32>, vector<192x4xf32>, vector<192x4xf32>, vector<192x4xf32>, vector<192x4xf32>, vector<192x4xf32> -> vector<192x36xf32>
    %c0_12 = arith.constant 0 : index
    %c0_13 = arith.constant 0 : index
    %32 = vector.load %arg5[%c0_12, %c0_13] : memref<36x8xf32, #tpu.memory_space<vmem>>, vector<36x8xf32>
    %cst_14 = arith.constant dense<0.000000e+00> : vector<192x8xf32>
    %33 = tpu.matmul %31, %32, %cst_14 {dimension_numbers = #tpu.dot_dimension_numbers<[1], [0], [0], [1], [0, 0, 1, 1], [], []>} : vector<192x36xf32>, vector<36x8xf32>, vector<192x8xf32> -> vector<192x8xf32>
    %c0_15 = arith.constant 0 : index
    %c0_16 = arith.constant 0 : index
    %c0_17 = arith.constant 0 : index
    %c0_18 = arith.constant 0 : index
    %34 = vector.load %arg6[%c0_15, %c0_16, %c0_17, %c0_18] : memref<1x1x192x8xf32, #tpu.memory_space<vmem>>, vector<1x1x192x8xf32>
    %35 = vector.shape_cast %34 : vector<1x1x192x8xf32> to vector<192x8xf32>
    %36 = vector.shape_cast %33 : vector<192x8xf32> to vector<1x1x192x8xf32>
    tpu.vector_store %arg6[%c0_15, %c0_16, %c0_17, %c0_18], %36 {strides = array<i32>} : memref<1x1x192x8xf32, #tpu.memory_space<vmem>>, vector<1x1x192x8xf32>,
    %cst_19 = arith.constant dense<0.000000e+00> : vector<8xf32>
    %37 = vector.multi_reduction <add>, %33, %cst_19 [0] : vector<192x8xf32> to vector<8xf32>
    %38 = vector.shape_cast %37 : vector<8xf32> to vector<1x8xf32>
    %39 = arith.mulf %33, %33 : vector<192x8xf32>
    %cst_20 = arith.constant dense<0.000000e+00> : vector<8xf32>
    %40 = vector.multi_reduction <add>, %39, %cst_20 [0] : vector<192x8xf32> to vector<8xf32>
    %41 = vector.shape_cast %40 : vector<8xf32> to vector<1x8xf32>
    %42 = tpu.concatenate %38, %41 in 0 : vector<1x8xf32>, vector<1x8xf32> -> vector<2x8xf32>
    %c0_21 = arith.constant 0 : index
    %c0_22 = arith.constant 0 : index
    %c0_23 = arith.constant 0 : index
    %c0_24 = arith.constant 0 : index
    %43 = vector.load %arg7[%c0_21, %c0_22, %c0_23, %c0_24] : memref<1x1x2x8xf32, #tpu.memory_space<vmem>>, vector<1x1x2x8xf32>
    %44 = vector.shape_cast %43 : vector<1x1x2x8xf32> to vector<2x8xf32>
    %45 = vector.shape_cast %42 : vector<2x8xf32> to vector<1x1x2x8xf32>
    tpu.vector_store %arg7[%c0_21, %c0_22, %c0_23, %c0_24], %45 {strides = array<i32>} : memref<1x1x2x8xf32, #tpu.memory_space<vmem>>, vector<1x1x2x8xf32>,
    return
  }
  func.func @transform_0(%arg0: i32, %arg1: i32) -> (i32, i32, i32, i32) {
    %c8_i32 = arith.constant 8 : i32
    %0 = arith.muli %arg1, %c8_i32 : i32
    %c1_i32 = arith.constant 1 : i32
    %1 = arith.subi %0, %c1_i32 : i32
    %c0_i32 = arith.constant 0 : i32
    %2 = arith.maxsi %1, %c0_i32 : i32
    %c0_i32_0 = arith.constant 0 : i32
    %c0_i32_1 = arith.constant 0 : i32
    %c0_i32_2 = arith.constant 0 : i32
    return %arg0, %2, %c0_i32_0, %c0_i32_1 : i32, i32, i32, i32
  }
  func.func @transform_1(%arg0: i32, %arg1: i32) -> (i32, i32, i32, i32) {
    %c0_i32 = arith.constant 0 : i32
    %c0_i32_0 = arith.constant 0 : i32
    %c0_i32_1 = arith.constant 0 : i32
    return %arg0, %arg1, %c0_i32, %c0_i32_0 : i32, i32, i32, i32
  }
  func.func @transform_2(%arg0: i32, %arg1: i32) -> (i32, i32, i32, i32) {
    %c1_i32 = arith.constant 1 : i32
    %0 = arith.addi %arg1, %c1_i32 : i32
    %c8_i32 = arith.constant 8 : i32
    %1 = arith.muli %0, %c8_i32 : i32
    %c23_i32 = arith.constant 23 : i32
    %2 = arith.minsi %1, %c23_i32 : i32
    %c0_i32 = arith.constant 0 : i32
    %c0_i32_0 = arith.constant 0 : i32
    %c0_i32_1 = arith.constant 0 : i32
    return %arg0, %2, %c0_i32, %c0_i32_0 : i32, i32, i32, i32
  }
  func.func @transform_3(%arg0: i32, %arg1: i32) -> (i32, i32) {
    %c0_i32 = arith.constant 0 : i32
    %c0_i32_0 = arith.constant 0 : i32
    %c0_i32_1 = arith.constant 0 : i32
    return %c0_i32, %c0_i32_0 : i32, i32
  }
  func.func @transform_4(%arg0: i32, %arg1: i32) -> (i32, i32, i32, i32) {
    %c0_i32 = arith.constant 0 : i32
    %c0_i32_0 = arith.constant 0 : i32
    %c0_i32_1 = arith.constant 0 : i32
    return %arg0, %arg1, %c0_i32, %c0_i32_0 : i32, i32, i32, i32
  }
  func.func @transform_5(%arg0: i32, %arg1: i32) -> (i32, i32, i32, i32) {
    %c0_i32 = arith.constant 0 : i32
    %c0_i32_0 = arith.constant 0 : i32
    %c0_i32_1 = arith.constant 0 : i32
    return %arg0, %arg1, %c0_i32, %c0_i32_0 : i32, i32, i32, i32
  }
}

module attributes {stable_mosaic.version = 11 : i64} {
  func.func @_bn_elu_conv2_kernel(%arg0: i32, %arg1: i32, %arg2: memref<1x1x26x8xf32, #tpu.memory_space<vmem>>, %arg3: memref<1x8x26x8xf32, #tpu.memory_space<vmem>>, %arg4: memref<1x1x26x8xf32, #tpu.memory_space<vmem>>, %arg5: memref<72x8xf32, #tpu.memory_space<vmem>>, %arg6: memref<1x8xf32, #tpu.memory_space<vmem>>, %arg7: memref<1x8xf32, #tpu.memory_space<vmem>>, %arg8: memref<1x1x192x8xf32, #tpu.memory_space<vmem>>, %arg9: memref<1x1x2x8xf32, #tpu.memory_space<vmem>>) attributes {dimension_semantics = [#tpu.dimension_semantics<parallel>, #tpu.dimension_semantics<parallel>], iteration_bounds = array<i64: 2, 3>, scalar_prefetch = 0 : i64, scratch_operands = 0 : i64, tpu.core_type = #tpu.core_type<tc>, window_params = [{transform_indices = @transform_0, window_bounds = array<i64: 1, 1, 26, 8>}, {transform_indices = @transform_1, window_bounds = array<i64: 1, 8, 26, 8>}, {transform_indices = @transform_2, window_bounds = array<i64: 1, 1, 26, 8>}, {pipeline_mode = #tpu.pipeline_mode<synchronous>, transform_indices = @transform_3, window_bounds = array<i64: 72, 8>}, {pipeline_mode = #tpu.pipeline_mode<synchronous>, transform_indices = @transform_4, window_bounds = array<i64: 1, 8>}, {pipeline_mode = #tpu.pipeline_mode<synchronous>, transform_indices = @transform_5, window_bounds = array<i64: 1, 8>}, {transform_indices = @transform_6, window_bounds = array<i64: 1, 1, 192, 8>}, {transform_indices = @transform_7, window_bounds = array<i64: 1, 1, 2, 8>}]} {
    %c0 = arith.constant 0 : index
    %c0_0 = arith.constant 0 : index
    %c0_1 = arith.constant 0 : index
    %c0_2 = arith.constant 0 : index
    %0 = vector.load %arg2[%c0, %c0_0, %c0_1, %c0_2] : memref<1x1x26x8xf32, #tpu.memory_space<vmem>>, vector<1x1x26x8xf32>
    %1 = vector.shape_cast %0 : vector<1x1x26x8xf32> to vector<1x26x8xf32>
    %c0_3 = arith.constant 0 : index
    %c0_4 = arith.constant 0 : index
    %c0_5 = arith.constant 0 : index
    %c0_6 = arith.constant 0 : index
    %2 = vector.load %arg3[%c0_3, %c0_4, %c0_5, %c0_6] : memref<1x8x26x8xf32, #tpu.memory_space<vmem>>, vector<1x8x26x8xf32>
    %3 = vector.shape_cast %2 : vector<1x8x26x8xf32> to vector<8x26x8xf32>
    %c0_7 = arith.constant 0 : index
    %c0_8 = arith.constant 0 : index
    %c0_9 = arith.constant 0 : index
    %c0_10 = arith.constant 0 : index
    %4 = vector.load %arg4[%c0_7, %c0_8, %c0_9, %c0_10] : memref<1x1x26x8xf32, #tpu.memory_space<vmem>>, vector<1x1x26x8xf32>
    %5 = vector.shape_cast %4 : vector<1x1x26x8xf32> to vector<1x26x8xf32>
    %6 = tpu.concatenate %1, %3, %5 in 0 : vector<1x26x8xf32>, vector<8x26x8xf32>, vector<1x26x8xf32> -> vector<10x26x8xf32>
    %c0_11 = arith.constant 0 : index
    %c0_12 = arith.constant 0 : index
    %7 = vector.load %arg6[%c0_11, %c0_12] : memref<1x8xf32, #tpu.memory_space<vmem>>, vector<1x8xf32>
    %8 = vector.shape_cast %7 : vector<1x8xf32> to vector<1x1x8xf32>
    %9 = vector.broadcast %8 : vector<1x1x8xf32> to vector<10x26x8xf32>
    %10 = arith.mulf %6, %9 : vector<10x26x8xf32>
    %c0_13 = arith.constant 0 : index
    %c0_14 = arith.constant 0 : index
    %11 = vector.load %arg7[%c0_13, %c0_14] : memref<1x8xf32, #tpu.memory_space<vmem>>, vector<1x8xf32>
    %12 = vector.shape_cast %11 : vector<1x8xf32> to vector<1x1x8xf32>
    %13 = vector.broadcast %12 : vector<1x1x8xf32> to vector<10x26x8xf32>
    %14 = arith.addf %10, %13 : vector<10x26x8xf32>
    %cst = arith.constant 0.000000e+00 : f32
    %15 = vector.broadcast %cst : f32 to vector<10x26x8xf32>
    %16 = arith.cmpf ogt, %14, %15 : vector<10x26x8xf32>
    %cst_15 = arith.constant 0.000000e+00 : f32
    %17 = vector.broadcast %cst_15 : f32 to vector<10x26x8xf32>
    %18 = arith.minimumf %14, %17 : vector<10x26x8xf32>
    %19 = math.exp %18 : vector<10x26x8xf32>
    %cst_16 = arith.constant 1.000000e+00 : f32
    %20 = vector.broadcast %cst_16 : f32 to vector<10x26x8xf32>
    %21 = arith.subf %19, %20 : vector<10x26x8xf32>
    %22 = arith.select %16, %14, %21 : vector<10x26x8xi1>, vector<10x26x8xf32>
    %23 = tpu.iota {dimensions = array<i32: 0>} : vector<10x1x1xi32>
    %24 = tpu.iota {dimensions = array<i32: 1>} : vector<1x26x1xi32>
    %c0_i32 = arith.constant 0 : i32
    %25 = vector.broadcast %c0_i32 : i32 to vector<10x1x1xi32>
    %26 = arith.cmpi sgt, %23, %25 : vector<10x1x1xi32>
    %c0_i32_17 = arith.constant 0 : i32
    %27 = arith.cmpi sgt, %arg1, %c0_i32_17 : i32
    %28 = vector.broadcast %27 : i1 to vector<10x1x1xi1>
    %29 = arith.ori %26, %28 : vector<10x1x1xi1>
    %c8_i32 = arith.constant 8 : i32
    %30 = vector.broadcast %c8_i32 : i32 to vector<10x1x1xi32>
    %31 = arith.cmpi sle, %23, %30 : vector<10x1x1xi32>
    %c2_i32 = arith.constant 2 : i32
    %32 = arith.cmpi slt, %arg1, %c2_i32 : i32
    %33 = vector.broadcast %32 : i1 to vector<10x1x1xi1>
    %34 = arith.ori %31, %33 : vector<10x1x1xi1>
    %35 = arith.andi %29, %34 : vector<10x1x1xi1>
    %c0_i32_18 = arith.constant 0 : i32
    %36 = vector.broadcast %c0_i32_18 : i32 to vector<1x26x1xi32>
    %37 = arith.cmpi sgt, %24, %36 : vector<1x26x1xi32>
    %38 = vector.broadcast %35 : vector<10x1x1xi1> to vector<10x26x1xi1>
    %39 = vector.broadcast %37 : vector<1x26x1xi1> to vector<10x26x1xi1>
    %40 = arith.andi %38, %39 : vector<10x26x1xi1>
    %c25_i32 = arith.constant 25 : i32
    %41 = vector.broadcast %c25_i32 : i32 to vector<1x26x1xi32>
    %42 = arith.cmpi slt, %24, %41 : vector<1x26x1xi32>
    %43 = vector.broadcast %42 : vector<1x26x1xi1> to vector<10x26x1xi1>
    %44 = arith.andi %40, %43 : vector<10x26x1xi1>
    %cst_19 = arith.constant 0.000000e+00 : f32
    %45 = vector.shape_cast %44 : vector<10x26x1xi1> to vector<10x26x1xi1>
    %46 = vector.broadcast %45 : vector<10x26x1xi1> to vector<10x26x8xi1>
    %47 = vector.broadcast %cst_19 : f32 to vector<10x26x8xf32>
    %48 = arith.select %46, %22, %47 : vector<10x26x8xi1>, vector<10x26x8xf32>
    %49 = vector.extract_strided_slice %48 {offsets = [0, 0, 0], sizes = [8, 24, 8], strides = [1, 1, 1]} : vector<10x26x8xf32> to vector<8x24x8xf32>
    %50 = vector.shape_cast %49 : vector<8x24x8xf32> to vector<192x8xf32>
    %51 = vector.extract_strided_slice %48 {offsets = [0, 1, 0], sizes = [8, 24, 8], strides = [1, 1, 1]} : vector<10x26x8xf32> to vector<8x24x8xf32>
    %52 = vector.shape_cast %51 : vector<8x24x8xf32> to vector<192x8xf32>
    %53 = vector.extract_strided_slice %48 {offsets = [0, 2, 0], sizes = [8, 24, 8], strides = [1, 1, 1]} : vector<10x26x8xf32> to vector<8x24x8xf32>
    %54 = vector.shape_cast %53 : vector<8x24x8xf32> to vector<192x8xf32>
    %55 = vector.extract_strided_slice %48 {offsets = [1, 0, 0], sizes = [8, 24, 8], strides = [1, 1, 1]} : vector<10x26x8xf32> to vector<8x24x8xf32>
    %56 = vector.shape_cast %55 : vector<8x24x8xf32> to vector<192x8xf32>
    %57 = vector.extract_strided_slice %48 {offsets = [1, 1, 0], sizes = [8, 24, 8], strides = [1, 1, 1]} : vector<10x26x8xf32> to vector<8x24x8xf32>
    %58 = vector.shape_cast %57 : vector<8x24x8xf32> to vector<192x8xf32>
    %59 = vector.extract_strided_slice %48 {offsets = [1, 2, 0], sizes = [8, 24, 8], strides = [1, 1, 1]} : vector<10x26x8xf32> to vector<8x24x8xf32>
    %60 = vector.shape_cast %59 : vector<8x24x8xf32> to vector<192x8xf32>
    %61 = vector.extract_strided_slice %48 {offsets = [2, 0, 0], sizes = [8, 24, 8], strides = [1, 1, 1]} : vector<10x26x8xf32> to vector<8x24x8xf32>
    %62 = vector.shape_cast %61 : vector<8x24x8xf32> to vector<192x8xf32>
    %63 = vector.extract_strided_slice %48 {offsets = [2, 1, 0], sizes = [8, 24, 8], strides = [1, 1, 1]} : vector<10x26x8xf32> to vector<8x24x8xf32>
    %64 = vector.shape_cast %63 : vector<8x24x8xf32> to vector<192x8xf32>
    %65 = vector.extract_strided_slice %48 {offsets = [2, 2, 0], sizes = [8, 24, 8], strides = [1, 1, 1]} : vector<10x26x8xf32> to vector<8x24x8xf32>
    %66 = vector.shape_cast %65 : vector<8x24x8xf32> to vector<192x8xf32>
    %67 = tpu.concatenate %50, %52, %54, %56, %58, %60, %62, %64, %66 in 1 : vector<192x8xf32>, vector<192x8xf32>, vector<192x8xf32>, vector<192x8xf32>, vector<192x8xf32>, vector<192x8xf32>, vector<192x8xf32>, vector<192x8xf32>, vector<192x8xf32> -> vector<192x72xf32>
    %c0_20 = arith.constant 0 : index
    %c0_21 = arith.constant 0 : index
    %68 = vector.load %arg5[%c0_20, %c0_21] : memref<72x8xf32, #tpu.memory_space<vmem>>, vector<72x8xf32>
    %cst_22 = arith.constant dense<0.000000e+00> : vector<192x8xf32>
    %69 = tpu.matmul %67, %68, %cst_22 {dimension_numbers = #tpu.dot_dimension_numbers<[1], [0], [0], [1], [0, 0, 1, 1], [], []>} : vector<192x72xf32>, vector<72x8xf32>, vector<192x8xf32> -> vector<192x8xf32>
    %c0_23 = arith.constant 0 : index
    %c0_24 = arith.constant 0 : index
    %c0_25 = arith.constant 0 : index
    %c0_26 = arith.constant 0 : index
    %70 = vector.load %arg8[%c0_23, %c0_24, %c0_25, %c0_26] : memref<1x1x192x8xf32, #tpu.memory_space<vmem>>, vector<1x1x192x8xf32>
    %71 = vector.shape_cast %70 : vector<1x1x192x8xf32> to vector<192x8xf32>
    %72 = vector.shape_cast %69 : vector<192x8xf32> to vector<1x1x192x8xf32>
    tpu.vector_store %arg8[%c0_23, %c0_24, %c0_25, %c0_26], %72 {strides = array<i32>} : memref<1x1x192x8xf32, #tpu.memory_space<vmem>>, vector<1x1x192x8xf32>,
    %cst_27 = arith.constant dense<0.000000e+00> : vector<8xf32>
    %73 = vector.multi_reduction <add>, %69, %cst_27 [0] : vector<192x8xf32> to vector<8xf32>
    %74 = vector.shape_cast %73 : vector<8xf32> to vector<1x8xf32>
    %75 = arith.mulf %69, %69 : vector<192x8xf32>
    %cst_28 = arith.constant dense<0.000000e+00> : vector<8xf32>
    %76 = vector.multi_reduction <add>, %75, %cst_28 [0] : vector<192x8xf32> to vector<8xf32>
    %77 = vector.shape_cast %76 : vector<8xf32> to vector<1x8xf32>
    %78 = tpu.concatenate %74, %77 in 0 : vector<1x8xf32>, vector<1x8xf32> -> vector<2x8xf32>
    %c0_29 = arith.constant 0 : index
    %c0_30 = arith.constant 0 : index
    %c0_31 = arith.constant 0 : index
    %c0_32 = arith.constant 0 : index
    %79 = vector.load %arg9[%c0_29, %c0_30, %c0_31, %c0_32] : memref<1x1x2x8xf32, #tpu.memory_space<vmem>>, vector<1x1x2x8xf32>
    %80 = vector.shape_cast %79 : vector<1x1x2x8xf32> to vector<2x8xf32>
    %81 = vector.shape_cast %78 : vector<2x8xf32> to vector<1x1x2x8xf32>
    tpu.vector_store %arg9[%c0_29, %c0_30, %c0_31, %c0_32], %81 {strides = array<i32>} : memref<1x1x2x8xf32, #tpu.memory_space<vmem>>, vector<1x1x2x8xf32>,
    return
  }
  func.func @transform_0(%arg0: i32, %arg1: i32) -> (i32, i32, i32, i32) {
    %c8_i32 = arith.constant 8 : i32
    %0 = arith.muli %arg1, %c8_i32 : i32
    %c1_i32 = arith.constant 1 : i32
    %1 = arith.subi %0, %c1_i32 : i32
    %c0_i32 = arith.constant 0 : i32
    %2 = arith.maxsi %1, %c0_i32 : i32
    %c0_i32_0 = arith.constant 0 : i32
    %c0_i32_1 = arith.constant 0 : i32
    %c0_i32_2 = arith.constant 0 : i32
    return %arg0, %2, %c0_i32_0, %c0_i32_1 : i32, i32, i32, i32
  }
  func.func @transform_1(%arg0: i32, %arg1: i32) -> (i32, i32, i32, i32) {
    %c0_i32 = arith.constant 0 : i32
    %c0_i32_0 = arith.constant 0 : i32
    %c0_i32_1 = arith.constant 0 : i32
    return %arg0, %arg1, %c0_i32, %c0_i32_0 : i32, i32, i32, i32
  }
  func.func @transform_2(%arg0: i32, %arg1: i32) -> (i32, i32, i32, i32) {
    %c1_i32 = arith.constant 1 : i32
    %0 = arith.addi %arg1, %c1_i32 : i32
    %c8_i32 = arith.constant 8 : i32
    %1 = arith.muli %0, %c8_i32 : i32
    %c23_i32 = arith.constant 23 : i32
    %2 = arith.minsi %1, %c23_i32 : i32
    %c0_i32 = arith.constant 0 : i32
    %c0_i32_0 = arith.constant 0 : i32
    %c0_i32_1 = arith.constant 0 : i32
    return %arg0, %2, %c0_i32, %c0_i32_0 : i32, i32, i32, i32
  }
  func.func @transform_3(%arg0: i32, %arg1: i32) -> (i32, i32) {
    %c0_i32 = arith.constant 0 : i32
    %c0_i32_0 = arith.constant 0 : i32
    %c0_i32_1 = arith.constant 0 : i32
    return %c0_i32, %c0_i32_0 : i32, i32
  }
  func.func @transform_4(%arg0: i32, %arg1: i32) -> (i32, i32) {
    %c0_i32 = arith.constant 0 : i32
    %c0_i32_0 = arith.constant 0 : i32
    %c0_i32_1 = arith.constant 0 : i32
    return %c0_i32, %c0_i32_0 : i32, i32
  }
  func.func @transform_5(%arg0: i32, %arg1: i32) -> (i32, i32) {
    %c0_i32 = arith.constant 0 : i32
    %c0_i32_0 = arith.constant 0 : i32
    %c0_i32_1 = arith.constant 0 : i32
    return %c0_i32, %c0_i32_0 : i32, i32
  }
  func.func @transform_6(%arg0: i32, %arg1: i32) -> (i32, i32, i32, i32) {
    %c0_i32 = arith.constant 0 : i32
    %c0_i32_0 = arith.constant 0 : i32
    %c0_i32_1 = arith.constant 0 : i32
    return %arg0, %arg1, %c0_i32, %c0_i32_0 : i32, i32, i32, i32
  }
  func.func @transform_7(%arg0: i32, %arg1: i32) -> (i32, i32, i32, i32) {
    %c0_i32 = arith.constant 0 : i32
    %c0_i32_0 = arith.constant 0 : i32
    %c0_i32_1 = arith.constant 0 : i32
    return %arg0, %arg1, %c0_i32, %c0_i32_0 : i32, i32, i32, i32
  }
}

module attributes {stable_mosaic.version = 11 : i64} {
  func.func @_bn_elu_kernel(%arg0: i32, %arg1: i32, %arg2: memref<1x1x8x192xf32, #tpu.memory_space<vmem>>, %arg3: memref<1x192xf32, #tpu.memory_space<vmem>>, %arg4: memref<1x192xf32, #tpu.memory_space<vmem>>, %arg5: memref<1x1x8x192xf32, #tpu.memory_space<vmem>>) attributes {dimension_semantics = [#tpu.dimension_semantics<parallel>, #tpu.dimension_semantics<parallel>], iteration_bounds = array<i64: 2, 3>, scalar_prefetch = 0 : i64, scratch_operands = 0 : i64, tpu.core_type = #tpu.core_type<tc>, window_params = [{transform_indices = @transform_0, window_bounds = array<i64: 1, 1, 8, 192>}, {pipeline_mode = #tpu.pipeline_mode<synchronous>, transform_indices = @transform_1, window_bounds = array<i64: 1, 192>}, {pipeline_mode = #tpu.pipeline_mode<synchronous>, transform_indices = @transform_2, window_bounds = array<i64: 1, 192>}, {transform_indices = @transform_3, window_bounds = array<i64: 1, 1, 8, 192>}]} {
    %c0 = arith.constant 0 : index
    %c0_0 = arith.constant 0 : index
    %c0_1 = arith.constant 0 : index
    %c0_2 = arith.constant 0 : index
    %0 = vector.load %arg2[%c0, %c0_0, %c0_1, %c0_2] : memref<1x1x8x192xf32, #tpu.memory_space<vmem>>, vector<1x1x8x192xf32>
    %1 = vector.shape_cast %0 : vector<1x1x8x192xf32> to vector<8x192xf32>
    %c0_3 = arith.constant 0 : index
    %c0_4 = arith.constant 0 : index
    %2 = vector.load %arg3[%c0_3, %c0_4] : memref<1x192xf32, #tpu.memory_space<vmem>>, vector<1x192xf32>
    %3 = vector.broadcast %2 : vector<1x192xf32> to vector<8x192xf32>
    %4 = arith.mulf %1, %3 : vector<8x192xf32>
    %c0_5 = arith.constant 0 : index
    %c0_6 = arith.constant 0 : index
    %5 = vector.load %arg4[%c0_5, %c0_6] : memref<1x192xf32, #tpu.memory_space<vmem>>, vector<1x192xf32>
    %6 = vector.broadcast %5 : vector<1x192xf32> to vector<8x192xf32>
    %7 = arith.addf %4, %6 : vector<8x192xf32>
    %cst = arith.constant 0.000000e+00 : f32
    %8 = vector.broadcast %cst : f32 to vector<8x192xf32>
    %9 = arith.cmpf ogt, %7, %8 : vector<8x192xf32>
    %cst_7 = arith.constant 0.000000e+00 : f32
    %10 = vector.broadcast %cst_7 : f32 to vector<8x192xf32>
    %11 = arith.minimumf %7, %10 : vector<8x192xf32>
    %12 = math.exp %11 : vector<8x192xf32>
    %cst_8 = arith.constant 1.000000e+00 : f32
    %13 = vector.broadcast %cst_8 : f32 to vector<8x192xf32>
    %14 = arith.subf %12, %13 : vector<8x192xf32>
    %15 = arith.select %9, %7, %14 : vector<8x192xi1>, vector<8x192xf32>
    %c0_9 = arith.constant 0 : index
    %c0_10 = arith.constant 0 : index
    %c0_11 = arith.constant 0 : index
    %c0_12 = arith.constant 0 : index
    %16 = vector.load %arg5[%c0_9, %c0_10, %c0_11, %c0_12] : memref<1x1x8x192xf32, #tpu.memory_space<vmem>>, vector<1x1x8x192xf32>
    %17 = vector.shape_cast %16 : vector<1x1x8x192xf32> to vector<8x192xf32>
    %18 = vector.shape_cast %15 : vector<8x192xf32> to vector<1x1x8x192xf32>
    tpu.vector_store %arg5[%c0_9, %c0_10, %c0_11, %c0_12], %18 {strides = array<i32>} : memref<1x1x8x192xf32, #tpu.memory_space<vmem>>, vector<1x1x8x192xf32>,
    return
  }
  func.func @transform_0(%arg0: i32, %arg1: i32) -> (i32, i32, i32, i32) {
    %c0_i32 = arith.constant 0 : i32
    %c0_i32_0 = arith.constant 0 : i32
    %c0_i32_1 = arith.constant 0 : i32
    return %arg0, %arg1, %c0_i32, %c0_i32_0 : i32, i32, i32, i32
  }
  func.func @transform_1(%arg0: i32, %arg1: i32) -> (i32, i32) {
    %c0_i32 = arith.constant 0 : i32
    %c0_i32_0 = arith.constant 0 : i32
    %c0_i32_1 = arith.constant 0 : i32
    return %c0_i32, %c0_i32_0 : i32, i32
  }
  func.func @transform_2(%arg0: i32, %arg1: i32) -> (i32, i32) {
    %c0_i32 = arith.constant 0 : i32
    %c0_i32_0 = arith.constant 0 : i32
    %c0_i32_1 = arith.constant 0 : i32
    return %c0_i32, %c0_i32_0 : i32, i32
  }
  func.func @transform_3(%arg0: i32, %arg1: i32) -> (i32, i32, i32, i32) {
    %c0_i32 = arith.constant 0 : i32
    %c0_i32_0 = arith.constant 0 : i32
    %c0_i32_1 = arith.constant 0 : i32
    return %arg0, %arg1, %c0_i32, %c0_i32_0 : i32, i32, i32, i32
  }
}

</mosaic_0001>

<llo_original>
// kernel: tile.13
$region0: #{tile.13}
  #allocation0 [shape = 's32[1]{0}', space=sflag, size = 0x4, scoped, tag = 'scoped memory for tile.13']
  %s0 = inlined_call_operand.vmem [shape: f32[8], index: 0, kind: input, shape index: {}]
  %s1 = inlined_call_operand.vmem [shape: f32[24,8], index: 1, kind: output, shape index: {}]
  // Predicated region
  $region2: #{tile.13} parent=0 // pred_check
    _
  $region3: #{tile.13} parent=0 // pred_check_branch
    %3 = sbr.rel (0) target = $region5
  $region4: #{tile.13} parent=0 // pred_region
    _
  $region5: #{tile.13} parent=0 // pred_fallthru
    _
  %v4 = vld [vmem:[%s0] ss:$0 sm:$0xff]
  %5 = vst [vmem:[%s1] sm:$0xff] %v4
  %s6 = scalar_lea.vmem %s1, 8
  %7 = vst [vmem:[%s6] sm:$0xff] %v4
  %s8 = scalar_lea.vmem %s1, 16
  %9 = vst [vmem:[%s8] sm:$0xff] %v4

// kernel: tile.14
$region0: #{tile.14}
  %s0 = inlined_call_operand.vmem [shape: f32[24,8], index: 0, kind: input, shape index: {}]
  %s1 = inlined_call_operand.vmem [shape: f32[1,192], index: 1, kind: output, shape index: {}]
  $region1: #{tile.14} parent=0
    #allocation0 [shape = 'u8[8192]{0}', space=vmem, size = 0x2000, scoped, tag = 'scoped mem for output reshape']
    %s2 = smov 3
    %v3 = vld [vmem:[%s0] ss:$16 sm:%s2]
    %vm4 = vcmask 64512
    %5 = vst.msk [vmem:[#allocation0] ss:$8 sm:$0x3] %vm4, %v3
    %s6 = scalar_lea.vmem %s0, 15
    %v7 = vld [vmem:[%s6] sm:$0x1]
    %8 = vrot.lane.b32.xlu0 %v7, 120
    %v9 = vpop.permute.xlu0 %8
    %vm10 = vcmask 1048512
    %11 = vst.msk [vmem:[#allocation0] sm:$0x1] %vm10, %v9
    %s12 = scalar_lea.vmem %s0, 14
    %v13 = vld [vmem:[%s12] sm:$0x1]
    %14 = vrot.lane.b32.xlu0 %v13, 112
    %v15 = vpop.permute.xlu0 %14
    %vm16 = vcmask 982912
    %17 = vst.msk [vmem:[#allocation0] sm:$0x1] %vm16, %v15
    %s18 = scalar_lea.vmem %s0, 13
    %v19 = vld [vmem:[%s18] sm:$0x1]
    %20 = vrot.lane.b32.xlu0 %v19, 104
    %v21 = vpop.permute.xlu0 %20
    %vm22 = vcmask 917312
    %23 = vst.msk [vmem:[#allocation0] sm:$0x1] %vm22, %v21
    %s24 = scalar_lea.vmem %s0, 12
    %v25 = vld [vmem:[%s24] sm:$0x1]
    %26 = vrot.lane.b32.xlu0 %v25, 96
    %v27 = vpop.permute.xlu0 %26
    %vm28 = vcmask 851712
    %29 = vst.msk [vmem:[#allocation0] sm:$0x1] %vm28, %v27
    %s30 = scalar_lea.vmem %s0, 11
    %v31 = vld [vmem:[%s30] sm:$0x1]
    %32 = vrot.lane.b32.xlu0 %v31, 88
    %v33 = vpop.permute.xlu0 %32
    %vm34 = vcmask 786112
    %35 = vst.msk [vmem:[#allocation0] sm:$0x1] %vm34, %v33
    %s36 = scalar_lea.vmem %s0, 10
    %v37 = vld [vmem:[%s36] sm:$0x1]
    %38 = vrot.lane.b32.xlu0 %v37, 80
    %v39 = vpop.permute.xlu0 %38
    %vm40 = vcmask 720512
    %41 = vst.msk [vmem:[#allocation0] sm:$0x1] %vm40, %v39
    %s42 = scalar_lea.vmem %s0, 9
    %v43 = vld [vmem:[%s42] sm:$0x1]
    %44 = vrot.lane.b32.xlu0 %v43, 72
    %v45 = vpop.permute.xlu0 %44
    %vm46 = vcmask 654912
    %47 = vst.msk [vmem:[#allocation0] sm:$0x1] %vm46, %v45
    %s48 = scalar_lea.vmem %s0, 8
    %v49 = vld [vmem:[%s48] sm:$0x1]
    %50 = vrot.lane.b32.xlu0 %v49, 64
    %v51 = vpop.permute.xlu0 %50
    %vm52 = vcmask 589312
    %53 = vst.msk [vmem:[#allocation0] sm:$0x1] %vm52, %v51
    %s54 = scalar_lea.vmem %s0, 7
    %s55 = smov 3
    %v56 = vld [vmem:[%s54] ss:$16 sm:%s55]
    %57 = vrot.lane.b32.xlu0 %v56, 56
    %v58 = vpop.permute.xlu0 %57
    %vm59 = vcmask 523712
    %60 = vst.msk [vmem:[#allocation0] ss:$8 sm:$0x3] %vm59, %v58
    %s61 = scalar_lea.vmem %s0, 6
    %s62 = smov 3
    %v63 = vld [vmem:[%s61] ss:$16 sm:%s62]
    %64 = vrot.lane.b32.xlu0 %v63, 48
    %v65 = vpop.permute.xlu0 %64
    %vm66 = vcmask 458112
    %67 = vst.msk [vmem:[#allocation0] ss:$8 sm:$0x3] %vm66, %v65
    %s68 = scalar_lea.vmem %s0, 5
    %s69 = smov 3
    %v70 = vld [vmem:[%s68] ss:$16 sm:%s69]
    %71 = vrot.lane.b32.xlu0 %v70, 40
    %v72 = vpop.permute.xlu0 %71
    %vm73 = vcmask 392512
    %74 = vst.msk [vmem:[#allocation0] ss:$8 sm:$0x3] %vm73, %v72
    %s75 = scalar_lea.vmem %s0, 4
    %s76 = smov 3
    %v77 = vld [vmem:[%s75] ss:$16 sm:%s76]
    %78 = vrot.lane.b32.xlu0 %v77, 32
    %v79 = vpop.permute.xlu0 %78
    %vm80 = vcmask 326912
    %81 = vst.msk [vmem:[#allocation0] ss:$8 sm:$0x3] %vm80, %v79
    %s82 = scalar_lea.vmem %s0, 3
    %s83 = smov 3
    %v84 = vld [vmem:[%s82] ss:$16 sm:%s83]
    %85 = vrot.lane.b32.xlu0 %v84, 24
    %v86 = vpop.permute.xlu0 %85
    %vm87 = vcmask 261312
    %88 = vst.msk [vmem:[#allocation0] ss:$8 sm:$0x3] %vm87, %v86
    %s89 = scalar_lea.vmem %s0, 2
    %s90 = smov 3
    %v91 = vld [vmem:[%s89] ss:$16 sm:%s90]
    %92 = vrot.lane.b32.xlu0 %v91, 16
    %v93 = vpop.permute.xlu0 %92
    %vm94 = vcmask 195712
    %95 = vst.msk [vmem:[#allocation0] ss:$8 sm:$0x3] %vm94, %v93
    %s96 = scalar_lea.vmem %s0, 1
    %s97 = smov 3
    %v98 = vld [vmem:[%s96] ss:$16 sm:%s97]
    %99 = vrot.lane.b32.xlu0 %v98, 8
    %v100 = vpop.permute.xlu0 %99
    %vm101 = vcmask 130112
    %102 = vst.msk [vmem:[#allocation0] ss:$8 sm:$0x3] %vm101, %v100
    %s104 = sshllo.u32 0, 1
    %v106 = vld [vmem:[#allocation0] sm:%s104]
    %s107 = sshllo.u32 0, 1
    %108 = vst [vmem:[%s1] sm:%s107] %v106
    %s109 = scalar_lea.vmem [#allocation0], 8
    %v110 = vld [vmem:[%s109] sm:%s104]
    %s111 = sshllo.u32 0, 1
    %s112 = scalar_lea.vmem %s1, 1
    %113 = vst [vmem:[%s112] sm:%s111] %v110

// kernel: _lambda_.3
$region0: #{_lambda_.3}
  #allocation0 [shape = 'u32[]', space=smem, size = 0x4, offset = 0x4, fixed_abs, tag = 'smem constant byte address 0x4 - core index']
  #allocation1 [shape = 'u32[144,128]{1,0:T(1,128)}', space=vmem, size = 0x12000, scoped, tag = 'internal scratch']
  %s0 = inlined_call_operand.vmem [shape: f32[2,24,26,4], index: 0, kind: input, shape index: {}, may-alias: {0,1,2}]
  %s1 = inlined_call_operand.vmem [shape: f32[2,24,26,4], index: 1, kind: input, shape index: {}, may-alias: {0,1,2}]
  %s2 = inlined_call_operand.vmem [shape: f32[2,24,26,4], index: 2, kind: input, shape index: {}, may-alias: {0,1,2}]
  %s3 = inlined_call_operand.vmem [shape: f32[36,8], index: 3, kind: input, shape index: {}]
  %s4 = inlined_call_operand.vmem [shape: f32[2,3,192,8], index: 4, kind: output, shape index: {0}]
  %s5 = inlined_call_operand.vmem [shape: f32[2,3,2,8], index: 5, kind: output, shape index: {1}]
  %6 = xla_tuple %s4, %s5
  %s7 = sld [smem:[#allocation0]]
  $region57: #{_lambda_.3} parent=0
    _
  %s9 = ssub.s32 1, %s7
  %s10 = scalar_select 0, %s9, %s7
  loop: start=0, step=1, limit=8
  $region2: #{_lambda_.3} parent=0 // loop_pre_header
    _
  $region3: #{_lambda_.3} parent=0 // loop_header
    %s12 = sphi 0, %s16
    %p13 = scmp.ge.s32.totalorder %s12, 8
    %s19 = sphi 0, %s31
    %s20 = sphi 0, %s27
    %s21 = sphi 0, %s19
    %s22 = sphi 0, %s20
    %s23 = sphi 0, %s21
    %s24 = sphi 0, %s22
    %s44 = sphi 0, %s46
    %s47 = sphi 0, %s44
    %s48 = sphi 0, %s47
    %s64 = sphi 0, %s48
    %s72 = sphi 0, %s74
    %s75 = sphi 0, %s72
    %s76 = sphi 0, %s75
    %s92 = sphi 0, %s76
    %s108 = sphi 0, %s110
    %s111 = sphi 0, %s108
    %s112 = sphi 0, %s111
    %s128 = sphi 0, %s112
    %s132 = sphi 0, %s132
    %s134 = sphi 0, %s132
    %s135 = sphi 0, %s134
    %s149 = sphi 0, %s135
    %s157 = sphi 0, %s159
    %s160 = sphi 0, %s157
    %s161 = sphi 0, %s160
    %s177 = sphi 0, %s161
    %s185 = sphi 0, %s187
    %s188 = sphi 0, %s185
    %s189 = sphi 0, %s188
    %s205 = sphi 0, %s189
  $region4: #{_lambda_.3} parent=0 // loop_header_branch
    %15 = sbr.rel (%p13) target = $region8
  $region5: #{_lambda_.3} parent=0 // loop_body
    %s17 = ssub.s32 %s12, 1
    %s18 = ssub.s32 %s12, 2
    %s25 = sadd.s32 1, %s20
    %p26 = scmp.ge.s32.totalorder %s25, 3
    %s27 = scalar_select %p26, 0, %s25
    %s28 = sadd.s32 1, %s19
    %s29 = scalar_select %p26, %s28, %s19
    %p30 = scmp.ge.s32.totalorder %s29, 2
    %s31 = scalar_select %p30, 0, %s29
    %s32 = smul.u32 %s20, 8
    %s33 = ssub.s32 %s32, 1
    %p34 = scmp.gt.s32.totalorder %s33, 0
    %s35 = scalar_select %p34, %s33, 0
    %s36 = smul.u32 %s27, 8
    %s37 = ssub.s32 %s36, 1
    %p38 = scmp.gt.s32.totalorder %s37, 0
    %s39 = scalar_select %p38, %s37, 0
    %s40 = ssub.s32 %s19, %s31
    %s41 = ssub.s32 %s35, %s39
    %s42 = sor.u32 %s40, %s41
    %p43 = scmp.eq.s32.totalorder %s42, 0
    %s45 = sadd.s32 %s44, 1
    %s46 = scalar_select %p43, %s44, %s45
    %p49 = pneg %p43
    %p50 = scmp.eq.s32.totalorder %s12, 5
    %p51 = por %p49, %p50
    %p52 = scmp.ne.s32.totalorder %s44, %s47
    %p53 = scmp.eq.s32.totalorder %s12, 0
    %p54 = por %p52, %p53
    %p55 = scmp.ne.s32.totalorder %s44, %s47
    %p56 = scmp.eq.s32.totalorder %s17, 5
    %p57 = por %p55, %p56
    %p58 = scmp.ne.s32.totalorder %s47, %s48
    %p59 = scmp.eq.s32.totalorder %s17, 0
    %p60 = por %p58, %p59
    %p61 = scmp.ne.s32.totalorder %s47, %s48
    %p62 = scmp.eq.s32.totalorder %s18, 5
    %p63 = por %p61, %p62
    %p65 = scmp.ne.s32.totalorder %s48, %s64
    %p66 = scmp.eq.s32.totalorder %s18, 0
    %p67 = por %p65, %p66
    %s68 = ssub.s32 %s19, %s31
    %s69 = ssub.s32 %s20, %s27
    %s70 = sor.u32 %s68, %s69
    %p71 = scmp.eq.s32.totalorder %s70, 0
    %s73 = sadd.s32 %s72, 1
    %s74 = scalar_select %p71, %s72, %s73
    %p77 = pneg %p71
    %p78 = scmp.eq.s32.totalorder %s12, 5
    %p79 = por %p77, %p78
    %p80 = scmp.ne.s32.totalorder %s72, %s75
    %p81 = scmp.eq.s32.totalorder %s12, 0
    %p82 = por %p80, %p81
    %p83 = scmp.ne.s32.totalorder %s72, %s75
    %p84 = scmp.eq.s32.totalorder %s17, 5
    %p85 = por %p83, %p84
    %p86 = scmp.ne.s32.totalorder %s75, %s76
    %p87 = scmp.eq.s32.totalorder %s17, 0
    %p88 = por %p86, %p87
    %p89 = scmp.ne.s32.totalorder %s75, %s76
    %p90 = scmp.eq.s32.totalorder %s18, 5
    %p91 = por %p89, %p90
    %p93 = scmp.ne.s32.totalorder %s76, %s92
    %p94 = scmp.eq.s32.totalorder %s18, 0
    %p95 = por %p93, %p94
    %s96 = sadd.s32 %s20, 1
    %s97 = smul.u32 %s96, 8
    %p98 = scmp.lt.s32.totalorder %s97, 23
    %s99 = scalar_select %p98, %s97, 23
    %s100 = sadd.s32 %s27, 1
    %s101 = smul.u32 %s100, 8
    %p102 = scmp.lt.s32.totalorder %s101, 23
    %s103 = scalar_select %p102, %s101, 23
    %s104 = ssub.s32 %s19, %s31
    %s105 = ssub.s32 %s99, %s103
    %s106 = sor.u32 %s104, %s105
    %p107 = scmp.eq.s32.totalorder %s106, 0
    %s109 = sadd.s32 %s108, 1
    %s110 = scalar_select %p107, %s108, %s109
    %p113 = pneg %p107
    %p114 = scmp.eq.s32.totalorder %s12, 5
    %p115 = por %p113, %p114
    %p116 = scmp.ne.s32.totalorder %s108, %s111
    %p117 = scmp.eq.s32.totalorder %s12, 0
    %p118 = por %p116, %p117
    %p119 = scmp.ne.s32.totalorder %s108, %s111
    %p120 = scmp.eq.s32.totalorder %s17, 5
    %p121 = por %p119, %p120
    %p122 = scmp.ne.s32.totalorder %s111, %s112
    %p123 = scmp.eq.s32.totalorder %s17, 0
    %p124 = por %p122, %p123
    %p125 = scmp.ne.s32.totalorder %s111, %s112
    %p126 = scmp.eq.s32.totalorder %s18, 5
    %p127 = por %p125, %p126
    %p129 = scmp.ne.s32.totalorder %s112, %s128
    %p130 = scmp.eq.s32.totalorder %s18, 0
    %p131 = por %p129, %p130
    %s133 = sadd.s32 %s132, 1
    %p136 = scmp.eq.s32.totalorder %s12, 5
    %p137 = scmp.ne.s32.totalorder %s132, %s134
    %p138 = scmp.eq.s32.totalorder %s12, 0
    %p139 = por %p137, %p138
    %p140 = scmp.ne.s32.totalorder %s132, %s134
    %p141 = scmp.eq.s32.totalorder %s17, 5
    %p142 = por %p140, %p141
    %p143 = scmp.ne.s32.totalorder %s134, %s135
    %p144 = scmp.eq.s32.totalorder %s17, 0
    %p145 = por %p143, %p144
    %p146 = scmp.ne.s32.totalorder %s134, %s135
    %p147 = scmp.eq.s32.totalorder %s18, 5
    %p148 = por %p146, %p147
    %p150 = scmp.ne.s32.totalorder %s135, %s149
    %p151 = scmp.eq.s32.totalorder %s18, 0
    %p152 = por %p150, %p151
    %s153 = ssub.s32 %s19, %s31
    %s154 = ssub.s32 %s20, %s27
    %s155 = sor.u32 %s153, %s154
    %p156 = scmp.eq.s32.totalorder %s155, 0
    %s158 = sadd.s32 %s157, 1
    %s159 = scalar_select %p156, %s157, %s158
    %p162 = pneg %p156
    %p163 = scmp.eq.s32.totalorder %s12, 5
    %p164 = por %p162, %p163
    %p165 = scmp.ne.s32.totalorder %s157, %s160
    %p166 = scmp.eq.s32.totalorder %s12, 0
    %p167 = por %p165, %p166
    %p168 = scmp.ne.s32.totalorder %s157, %s160
    %p169 = scmp.eq.s32.totalorder %s17, 5
    %p170 = por %p168, %p169
    %p171 = scmp.ne.s32.totalorder %s160, %s161
    %p172 = scmp.eq.s32.totalorder %s17, 0
    %p173 = por %p171, %p172
    %p174 = scmp.ne.s32.totalorder %s160, %s161
    %p175 = scmp.eq.s32.totalorder %s18, 5
    %p176 = por %p174, %p175
    %p178 = scmp.ne.s32.totalorder %s161, %s177
    %p179 = scmp.eq.s32.totalorder %s18, 0
    %p180 = por %p178, %p179
    %s181 = ssub.s32 %s19, %s31
    %s182 = ssub.s32 %s20, %s27
    %s183 = sor.u32 %s181, %s182
    %p184 = scmp.eq.s32.totalorder %s183, 0
    %s186 = sadd.s32 %s185, 1
    %s187 = scalar_select %p184, %s185, %s186
    %p190 = pneg %p184
    %p191 = scmp.eq.s32.totalorder %s12, 5
    %p192 = por %p190, %p191
    %p193 = scmp.ne.s32.totalorder %s185, %s188
    %p194 = scmp.eq.s32.totalorder %s12, 0
    %p195 = por %p193, %p194
    %p196 = scmp.ne.s32.totalorder %s185, %s188
    %p197 = scmp.eq.s32.totalorder %s17, 5
    %p198 = por %p196, %p197
    %p199 = scmp.ne.s32.totalorder %s188, %s189
    %p200 = scmp.eq.s32.totalorder %s17, 0
    %p201 = por %p199, %p200
    %p202 = scmp.ne.s32.totalorder %s188, %s189
    %p203 = scmp.eq.s32.totalorder %s18, 5
    %p204 = por %p202, %p203
    %p206 = scmp.ne.s32.totalorder %s189, %s205
    %p207 = scmp.eq.s32.totalorder %s18, 0
    %p208 = por %p206, %p207
    %p209 = scmp.le.s32.totalorder 1, %s12
    %p210 = scmp.lt.s32.totalorder %s12, 7
    %p211 = pnand %p209, %p210
    %p212 = pneg %p211
    // Predicated region
    $region9: #{_lambda_.3} parent=5 // pred_check
      _
    $region10: #{_lambda_.3} parent=5 // pred_check_branch
      %214 = sbr.rel (%p211) target = $region12
    $region11: #{_lambda_.3} parent=5 // pred_region
      %s215 = ssub.s32 %s12, 1
      // Predicated region
      $region13: #{_lambda_.3} parent=11 // pred_check
        %p216 = pneg %p145
      $region14: #{_lambda_.3} parent=11 // pred_check_branch
        %218 = sbr.rel (%p216) target = $region16
      $region15: #{_lambda_.3} parent=11 // pred_region
        _
      $region16: #{_lambda_.3} parent=11 // pred_fallthru
        _
    $region12: #{_lambda_.3} parent=5 // pred_fallthru
      _
    %p219 = scmp.lt.s32.totalorder %s12, 6
    // Predicated region
    $region17: #{_lambda_.3} parent=5 // pred_check
      %p220 = pneg %p219
    $region18: #{_lambda_.3} parent=5 // pred_check_branch
      %222 = sbr.rel (%p220) target = $region20
    $region19: #{_lambda_.3} parent=5 // pred_region
      // Predicated region
      $region21: #{_lambda_.3} parent=19 // pred_check
        %p223 = pneg %p54
      $region22: #{_lambda_.3} parent=19 // pred_check_branch
        %225 = sbr.rel (%p223) target = $region24
      $region23: #{_lambda_.3} parent=19 // pred_region
        %s226 = smul.u32 %s20, 8
        %s227 = ssub.s32 %s226, 1
        %p228 = scmp.gt.s32.totalorder %s227, 0
        %s229 = scalar_select %p228, %s227, 0
        %p230 = scmp.lt.s32.totalorder %s19, 1
        %s231 = scalar_select %p230, %s19, 1
        %p232 = scmp.lt.s32.totalorder %s229, 23
        %s233 = scalar_select %p232, %s229, 23
        %s234 = smul.addr %s233, 4
        %s235 = smul.addr %s231, 96
        %s236 = sadd.s32 %s234, %s235
        %s237 = smul.addr %s236, 8
        %s238 = scalar_lea.vmem %s0, %s237
        %s239 = smul.u32 %s20, 8
        %s240 = ssub.s32 %s239, 1
        %p241 = scmp.gt.s32.totalorder %s240, 0
        %s242 = scalar_select %p241, %s240, 0
      $region24: #{_lambda_.3} parent=19 // pred_fallthru
        _
      // Predicated region
      $region25: #{_lambda_.3} parent=19 // pred_check
        %p243 = pneg %p82
      $region26: #{_lambda_.3} parent=19 // pred_check_branch
        %245 = sbr.rel (%p243) target = $region28
      $region27: #{_lambda_.3} parent=19 // pred_region
        %s246 = smul.u32 8, %s20
        %p247 = scmp.lt.s32.totalorder %s19, 1
        %s248 = scalar_select %p247, %s19, 1
        %p249 = scmp.lt.s32.totalorder %s246, 23
        %s250 = scalar_select %p249, %s246, 23
        %s251 = smul.addr %s250, 4
        %s252 = smul.addr %s248, 96
        %s253 = sadd.s32 %s251, %s252
        %s254 = smul.addr %s253, 8
        %s255 = scalar_lea.vmem %s1, %s254
        %s256 = smul.u32 8, %s20
      $region28: #{_lambda_.3} parent=19 // pred_fallthru
        _
      // Predicated region
      $region29: #{_lambda_.3} parent=19 // pred_check
        %p257 = pneg %p118
      $region30: #{_lambda_.3} parent=19 // pred_check_branch
        %259 = sbr.rel (%p257) target = $region32
      $region31: #{_lambda_.3} parent=19 // pred_region
        %s260 = sadd.s32 %s20, 1
        %s261 = smul.u32 %s260, 8
        %p262 = scmp.lt.s32.totalorder %s261, 23
        %s263 = scalar_select %p262, %s261, 23
        %p264 = scmp.lt.s32.totalorder %s19, 1
        %s265 = scalar_select %p264, %s19, 1
        %p266 = scmp.lt.s32.totalorder %s263, 23
        %s267 = scalar_select %p266, %s263, 23
        %s268 = smul.addr %s267, 4
        %s269 = smul.addr %s265, 96
        %s270 = sadd.s32 %s268, %s269
        %s271 = smul.addr %s270, 8
        %s272 = scalar_lea.vmem %s2, %s271
        %s273 = sadd.s32 %s20, 1
        %s274 = smul.u32 %s273, 8
        %p275 = scmp.lt.s32.totalorder %s274, 23
        %s276 = scalar_select %p275, %s274, 23
      $region32: #{_lambda_.3} parent=19 // pred_fallthru
        _
    $region20: #{_lambda_.3} parent=5 // pred_fallthru
      _
    %p277 = scmp.le.s32.totalorder 1, %s12
    %p278 = scmp.lt.s32.totalorder %s12, 7
    %p279 = pnand %p277, %p278
    %p280 = pneg %p279
    // Predicated region
    $region33: #{_lambda_.3} parent=5 // pred_check
      _
    $region34: #{_lambda_.3} parent=5 // pred_check_branch
      %282 = sbr.rel (%p279) target = $region36
    $region35: #{_lambda_.3} parent=5 // pred_region
      %s283 = ssub.s32 %s12, 1
      %s284 = smul.u32 %s22, 8
      %s285 = ssub.s32 %s284, 1
      %p286 = scmp.gt.s32.totalorder %s285, 0
      %s287 = scalar_select %p286, %s285, 0
      %p288 = scmp.lt.s32.totalorder %s21, 1
      %s289 = scalar_select %p288, %s21, 1
      %p290 = scmp.lt.s32.totalorder %s287, 23
      %s291 = scalar_select %p290, %s287, 23
      %s292 = smul.addr %s291, 4
      %s293 = smul.addr %s289, 96
      %s294 = sadd.s32 %s292, %s293
      %s295 = smul.addr %s294, 8
      %s296 = scalar_lea.vmem %s0, %s295
      %p297 = pneg %p60
      %p298 = pneg %p57
      %s299 = smul.u32 8, %s22
      %p300 = scmp.lt.s32.totalorder %s21, 1
      %s301 = scalar_select %p300, %s21, 1
      %p302 = scmp.lt.s32.totalorder %s299, 23
      %s303 = scalar_select %p302, %s299, 23
      %s304 = smul.addr %s303, 4
      %s305 = smul.addr %s301, 96
      %s306 = sadd.s32 %s304, %s305
      %s307 = smul.addr %s306, 8
      %s308 = scalar_lea.vmem %s1, %s307
      %p309 = pneg %p88
      %p310 = pneg %p85
      %s311 = sadd.s32 %s22, 1
      %s312 = smul.u32 %s311, 8
      %p313 = scmp.lt.s32.totalorder %s312, 23
      %s314 = scalar_select %p313, %s312, 23
      %p315 = scmp.lt.s32.totalorder %s21, 1
      %s316 = scalar_select %p315, %s21, 1
      %p317 = scmp.lt.s32.totalorder %s314, 23
      %s318 = scalar_select %p317, %s314, 23
      %s319 = smul.addr %s318, 4
      %s320 = smul.addr %s316, 96
      %s321 = sadd.s32 %s319, %s320
      %s322 = smul.addr %s321, 8
      %s323 = scalar_lea.vmem %s2, %s322
      %p324 = pneg %p124
      %p325 = pneg %p121
      %p326 = pneg %p145
      %p327 = pneg %p142
      %p328 = pneg %p173
      %p329 = pneg %p170
      %p330 = scmp.lt.s32.totalorder %s21, 1
      %s331 = scalar_select %p330, %s21, 1
      %p332 = scmp.lt.s32.totalorder %s22, 2
      %s333 = scalar_select %p332, %s22, 2
      %s334 = smul.addr %s333, 24
      %s335 = smul.addr %s331, 72
      %s336 = sadd.s32 %s334, %s335
      %s337 = smul.addr %s336, 8
      %s338 = scalar_lea.vmem %s4, %s337
      %p339 = pneg %p201
      %p340 = pneg %p198
      %p341 = scmp.lt.s32.totalorder %s21, 1
      %s342 = scalar_select %p341, %s21, 1
      %p343 = scmp.lt.s32.totalorder %s22, 2
      %s344 = scalar_select %p343, %s22, 2
      %s345 = smul.addr %s342, 3
      %s346 = sadd.s32 %s344, %s345
      %s347 = smul.addr %s346, 2
      %s348 = scalar_lea.vmem %s5, %s347
      %s349 = smul.u32 %s22, 8
      %s350 = ssub.s32 %s349, 1
      %p351 = scmp.gt.s32.totalorder %s350, 0
      %s352 = scalar_select %p351, %s350, 0
      %p353 = scmp.lt.s32.totalorder %s21, 1
      %s354 = scalar_select %p353, %s21, 1
      %p355 = scmp.lt.s32.totalorder %s352, 23
      %s356 = scalar_select %p355, %s352, 23
      %s357 = smul.addr %s356, 4
      %s358 = smul.addr %s354, 96
      %s359 = sadd.s32 %s357, %s358
      %s360 = smul.addr %s359, 8
      %s361 = scalar_lea.vmem %s0, %s360
      %s362 = smul.u32 %s22, 8
      %s363 = ssub.s32 %s362, 1
      %p364 = scmp.gt.s32.totalorder %s363, 0
      %s365 = scalar_select %p364, %s363, 0
      %s366 = smul.u32 8, %s22
      %p367 = scmp.lt.s32.totalorder %s21, 1
      %s368 = scalar_select %p367, %s21, 1
      %p369 = scmp.lt.s32.totalorder %s366, 23
      %s370 = scalar_select %p369, %s366, 23
      %s371 = smul.addr %s370, 4
      %s372 = smul.addr %s368, 96
      %s373 = sadd.s32 %s371, %s372
      %s374 = smul.addr %s373, 8
      %s375 = scalar_lea.vmem %s1, %s374
      %s376 = smul.u32 8, %s22
      %s377 = sadd.s32 %s22, 1
      %s378 = smul.u32 %s377, 8
      %p379 = scmp.lt.s32.totalorder %s378, 23
      %s380 = scalar_select %p379, %s378, 23
      %p381 = scmp.lt.s32.totalorder %s21, 1
      %s382 = scalar_select %p381, %s21, 1
      %p383 = scmp.lt.s32.totalorder %s380, 23
      %s384 = scalar_select %p383, %s380, 23
      %s385 = smul.addr %s384, 4
      %s386 = smul.addr %s382, 96
      %s387 = sadd.s32 %s385, %s386
      %s388 = smul.addr %s387, 8
      %s389 = scalar_lea.vmem %s2, %s388
      %s390 = sadd.s32 %s22, 1
      %s391 = smul.u32 %s390, 8
      %p392 = scmp.lt.s32.totalorder %s391, 23
      %s393 = scalar_select %p392, %s391, 23
      %p394 = scmp.lt.s32.totalorder %s21, 1
      %s395 = scalar_select %p394, %s21, 1
      %p396 = scmp.lt.s32.totalorder %s22, 2
      %s397 = scalar_select %p396, %s22, 2
      %s398 = smul.addr %s397, 24
      %s399 = smul.addr %s395, 72
      %s400 = sadd.s32 %s398, %s399
      %s401 = smul.addr %s400, 8
      %s402 = scalar_lea.vmem %s4, %s401
      %p403 = scmp.lt.s32.totalorder %s21, 1
      %s404 = scalar_select %p403, %s21, 1
      %p405 = scmp.lt.s32.totalorder %s22, 2
      %s406 = scalar_select %p405, %s22, 2
      %s407 = smul.addr %s404, 3
      %s408 = sadd.s32 %s406, %s407
      %s409 = smul.addr %s408, 2
      %s410 = scalar_lea.vmem %s5, %s409
      %v411 = vld [vmem:[%s361] sm:$0xff]
      %v412 = vld [vmem:[%s361 + $0x8] sm:$0xff]
      %v413 = vld [vmem:[%s361 + $0x10] sm:$0xff]
      %v414 = vld [vmem:[%s361 + $0x18] sm:$0x3]
      %v415 = vld [vmem:[%s389] sm:$0xff]
      %v416 = vld [vmem:[%s389 + $0x8] sm:$0xff]
      %v417 = vld [vmem:[%s389 + $0x10] sm:$0xff]
      %v418 = vld [vmem:[%s389 + $0x18] sm:$0x3]
      %p419 = scmp.gt.s32.totalorder %s22, 0
      %s420 = scalar_select %p419, 1, 0
      %v421 = vstv %s420
      %vm422 = vcmp.eq.s32.totalorder %v421, 1
      %v423 = vsel %vm422, %v411, 0.0
      %v424 = vsel %vm422, %v412, 0.0
      %v425 = vsel %vm422, %v413, 0.0
      %v426 = vsel %vm422, %v414, 0.0
      %p427 = scmp.lt.s32.totalorder %s22, 2
      %s428 = scalar_select %p427, 1, 0
      %v429 = vstv %s428
      %vm430 = vcmp.eq.s32.totalorder %v429, 1
      %v431 = vsel %vm430, %v415, 0.0
      %v432 = vsel %vm430, %v416, 0.0
      %v433 = vsel %vm430, %v417, 0.0
      %v434 = vsel %vm430, %v418, 0.0
      %v435 = vld [vmem:[%s375] sm:$0xff]
      %v436 = vld [vmem:[%s375 + $0x8] sm:$0xff]
      %v437 = vld [vmem:[%s375 + $0x10] sm:$0xff]
      %v438 = vld [vmem:[%s375 + $0x18] sm:$0x3]
      %v439 = vld [vmem:[%s375 + $0x20] sm:$0xff]
      %v440 = vld [vmem:[%s375 + $0x28] sm:$0xff]
      %v441 = vld [vmem:[%s375 + $0x30] sm:$0xff]
      %v442 = vld [vmem:[%s375 + $0x38] sm:$0x3]
      %v443 = vld [vmem:[%s375 + $0x40] sm:$0xff]
      %v444 = vld [vmem:[%s375 + $0x48] sm:$0xff]
      %v445 = vld [vmem:[%s375 + $0x50] sm:$0xff]
      %v446 = vld [vmem:[%s375 + $0x58] sm:$0x3]
      %v447 = vld [vmem:[%s375 + $0x60] sm:$0xff]
      %v448 = vld [vmem:[%s375 + $0x68] sm:$0xff]
      %v449 = vld [vmem:[%s375 + $0x70] sm:$0xff]
      %v450 = vld [vmem:[%s375 + $0x78] sm:$0x3]
      %v451 = vld [vmem:[%s375 + $0x80] sm:$0xff]
      %v452 = vld [vmem:[%s375 + $0x88] sm:$0xff]
      %v453 = vld [vmem:[%s375 + $0x90] sm:$0xff]
      %v454 = vld [vmem:[%s375 + $0x98] sm:$0x3]
      %v455 = vld [vmem:[%s375 + $0xa0] sm:$0xff]
      %v456 = vld [vmem:[%s375 + $0xa8] sm:$0xff]
      %v457 = vld [vmem:[%s375 + $0xb0] sm:$0xff]
      %v458 = vld [vmem:[%s375 + $0xb8] sm:$0x3]
      %v459 = vld [vmem:[%s375 + $0xc0] sm:$0xff]
      %v460 = vld [vmem:[%s375 + $0xc8] sm:$0xff]
      %v461 = vld [vmem:[%s375 + $0xd0] sm:$0xff]
      %v462 = vld [vmem:[%s375 + $0xd8] sm:$0x3]
      %v463 = vld [vmem:[%s375 + $0xe0] sm:$0xff]
      %v464 = vld [vmem:[%s375 + $0xe8] sm:$0xff]
      %v465 = vld [vmem:[%s375 + $0xf0] sm:$0xff]
      %v466 = vld [vmem:[%s375 + $0xf8] sm:$0x3]
      %vm499 = vcmask 1046528
      %v500 = vrot.slane %v423, 1
      %v501 = vrot.slane %v424, 1
      %v502 = vsel %vm499, %v500, %v501
      %v503 = vrot.slane %v425, 1
      %v504 = vsel %vm499, %v501, %v503
      %v505 = vrot.slane %v426, 1
      %v506 = vsel %vm499, %v503, %v505
      %v507 = vrot.slane %v435, 1
      %v508 = vrot.slane %v436, 1
      %v509 = vsel %vm499, %v507, %v508
      %v510 = vrot.slane %v437, 1
      %v511 = vsel %vm499, %v508, %v510
      %v512 = vrot.slane %v438, 1
      %v513 = vsel %vm499, %v510, %v512
      %v514 = vrot.slane %v439, 1
      %v515 = vrot.slane %v440, 1
      %v516 = vsel %vm499, %v514, %v515
      %v517 = vrot.slane %v441, 1
      %v518 = vsel %vm499, %v515, %v517
      %v519 = vrot.slane %v442, 1
      %v520 = vsel %vm499, %v517, %v519
      %v521 = vrot.slane %v443, 1
      %v522 = vrot.slane %v444, 1
      %v523 = vsel %vm499, %v521, %v522
      %v524 = vrot.slane %v445, 1
      %v525 = vsel %vm499, %v522, %v524
      %v526 = vrot.slane %v446, 1
      %v527 = vsel %vm499, %v524, %v526
      %v528 = vrot.slane %v447, 1
      %v529 = vrot.slane %v448, 1
      %v530 = vsel %vm499, %v528, %v529
      %v531 = vrot.slane %v449, 1
      %v532 = vsel %vm499, %v529, %v531
      %v533 = vrot.slane %v450, 1
      %v534 = vsel %vm499, %v531, %v533
      %v535 = vrot.slane %v451, 1
      %v536 = vrot.slane %v452, 1
      %v537 = vsel %vm499, %v535, %v536
      %v538 = vrot.slane %v453, 1
      %v539 = vsel %vm499, %v536, %v538
      %v540 = vrot.slane %v454, 1
      %v541 = vsel %vm499, %v538, %v540
      %v542 = vrot.slane %v455, 1
      %v543 = vrot.slane %v456, 1
      %v544 = vsel %vm499, %v542, %v543
      %v545 = vrot.slane %v457, 1
      %v546 = vsel %vm499, %v543, %v545
      %v547 = vrot.slane %v458, 1
      %v548 = vsel %vm499, %v545, %v547
      %v549 = vrot.slane %v459, 1
      %v550 = vrot.slane %v460, 1
      %v551 = vsel %vm499, %v549, %v550
      %v552 = vrot.slane %v461, 1
      %v553 = vsel %vm499, %v550, %v552
      %v554 = vrot.slane %v462, 1
      %v555 = vsel %vm499, %v552, %v554
      %vm556 = vcmask 1045504
      %v557 = vrot.slane %v423, 2
      %v558 = vrot.slane %v424, 2
      %v559 = vsel %vm556, %v557, %v558
      %v560 = vrot.slane %v425, 2
      %v561 = vsel %vm556, %v558, %v560
      %v562 = vrot.slane %v426, 2
      %v563 = vsel %vm556, %v560, %v562
      %v564 = vrot.slane %v435, 2
      %v565 = vrot.slane %v436, 2
      %v566 = vsel %vm556, %v564, %v565
      %v567 = vrot.slane %v437, 2
      %v568 = vsel %vm556, %v565, %v567
      %v569 = vrot.slane %v438, 2
      %v570 = vsel %vm556, %v567, %v569
      %v571 = vrot.slane %v439, 2
      %v572 = vrot.slane %v440, 2
      %v573 = vsel %vm556, %v571, %v572
      %v574 = vrot.slane %v441, 2
      %v575 = vsel %vm556, %v572, %v574
      %v576 = vrot.slane %v442, 2
      %v577 = vsel %vm556, %v574, %v576
      %v578 = vrot.slane %v443, 2
      %v579 = vrot.slane %v444, 2
      %v580 = vsel %vm556, %v578, %v579
      %v581 = vrot.slane %v445, 2
      %v582 = vsel %vm556, %v579, %v581
      %v583 = vrot.slane %v446, 2
      %v584 = vsel %vm556, %v581, %v583
      %v585 = vrot.slane %v447, 2
      %v586 = vrot.slane %v448, 2
      %v587 = vsel %vm556, %v585, %v586
      %v588 = vrot.slane %v449, 2
      %v589 = vsel %vm556, %v586, %v588
      %v590 = vrot.slane %v450, 2
      %v591 = vsel %vm556, %v588, %v590
      %v592 = vrot.slane %v451, 2
      %v593 = vrot.slane %v452, 2
      %v594 = vsel %vm556, %v592, %v593
      %v595 = vrot.slane %v453, 2
      %v596 = vsel %vm556, %v593, %v595
      %v597 = vrot.slane %v454, 2
      %v598 = vsel %vm556, %v595, %v597
      %v599 = vrot.slane %v455, 2
      %v600 = vrot.slane %v456, 2
      %v601 = vsel %vm556, %v599, %v600
      %v602 = vrot.slane %v457, 2
      %v603 = vsel %vm556, %v600, %v602
      %v604 = vrot.slane %v458, 2
      %v605 = vsel %vm556, %v602, %v604
      %v606 = vrot.slane %v459, 2
      %v607 = vrot.slane %v460, 2
      %v608 = vsel %vm556, %v606, %v607
      %v609 = vrot.slane %v461, 2
      %v610 = vsel %vm556, %v607, %v609
      %v611 = vrot.slane %v462, 2
      %v612 = vsel %vm556, %v609, %v611
      %v617 = vrot.slane %v463, 1
      %v618 = vrot.slane %v464, 1
      %v619 = vsel %vm499, %v617, %v618
      %v620 = vrot.slane %v465, 1
      %v621 = vsel %vm499, %v618, %v620
      %v622 = vrot.slane %v466, 1
      %v623 = vsel %vm499, %v620, %v622
      %v624 = vrot.slane %v463, 2
      %v625 = vrot.slane %v464, 2
      %v626 = vsel %vm556, %v624, %v625
      %v627 = vrot.slane %v465, 2
      %v628 = vsel %vm556, %v625, %v627
      %v629 = vrot.slane %v466, 2
      %v630 = vsel %vm556, %v627, %v629
      %v635 = vrot.slane %v431, 1
      %v636 = vrot.slane %v432, 1
      %v637 = vsel %vm499, %v635, %v636
      %v638 = vrot.slane %v433, 1
      %v639 = vsel %vm499, %v636, %v638
      %v640 = vrot.slane %v434, 1
      %v641 = vsel %vm499, %v638, %v640
      %v642 = vrot.slane %v431, 2
      %v643 = vrot.slane %v432, 2
      %v644 = vsel %vm556, %v642, %v643
      %v645 = vrot.slane %v433, 2
      %v646 = vsel %vm556, %v643, %v645
      %v647 = vrot.slane %v434, 2
      %v648 = vsel %vm556, %v645, %v647
      %649 = vrot.lane.b32.xlu0 %v502, 4
      %v650 = vpop.permute.xlu0 %649
      %651 = vrot.lane.b32.xlu0 %v504, 4
      %v652 = vpop.permute.xlu0 %651
      %653 = vrot.lane.b32.xlu0 %v506, 4
      %v654 = vpop.permute.xlu0 %653
      %655 = vrot.lane.b32.xlu0 %v509, 4
      %v656 = vpop.permute.xlu0 %655
      %657 = vrot.lane.b32.xlu0 %v511, 4
      %v658 = vpop.permute.xlu0 %657
      %659 = vrot.lane.b32.xlu0 %v513, 4
      %v660 = vpop.permute.xlu0 %659
      %661 = vrot.lane.b32.xlu0 %v516, 4
      %v662 = vpop.permute.xlu0 %661
      %663 = vrot.lane.b32.xlu0 %v518, 4
      %v664 = vpop.permute.xlu0 %663
      %665 = vrot.lane.b32.xlu0 %v520, 4
      %v666 = vpop.permute.xlu0 %665
      %667 = vrot.lane.b32.xlu0 %v523, 4
      %v668 = vpop.permute.xlu0 %667
      %669 = vrot.lane.b32.xlu0 %v525, 4
      %v670 = vpop.permute.xlu0 %669
      %671 = vrot.lane.b32.xlu0 %v527, 4
      %v672 = vpop.permute.xlu0 %671
      %673 = vrot.lane.b32.xlu0 %v530, 4
      %v674 = vpop.permute.xlu0 %673
      %675 = vrot.lane.b32.xlu0 %v532, 4
      %v676 = vpop.permute.xlu0 %675
      %677 = vrot.lane.b32.xlu0 %v534, 4
      %v678 = vpop.permute.xlu0 %677
      %679 = vrot.lane.b32.xlu0 %v537, 4
      %v680 = vpop.permute.xlu0 %679
      %681 = vrot.lane.b32.xlu0 %v539, 4
      %v682 = vpop.permute.xlu0 %681
      %683 = vrot.lane.b32.xlu0 %v541, 4
      %v684 = vpop.permute.xlu0 %683
      %685 = vrot.lane.b32.xlu0 %v544, 4
      %v686 = vpop.permute.xlu0 %685
      %687 = vrot.lane.b32.xlu0 %v546, 4
      %v688 = vpop.permute.xlu0 %687
      %689 = vrot.lane.b32.xlu0 %v548, 4
      %v690 = vpop.permute.xlu0 %689
      %691 = vrot.lane.b32.xlu0 %v551, 4
      %v692 = vpop.permute.xlu0 %691
      %693 = vrot.lane.b32.xlu0 %v553, 4
      %v694 = vpop.permute.xlu0 %693
      %695 = vrot.lane.b32.xlu0 %v555, 4
      %v696 = vpop.permute.xlu0 %695
      %721 = vrot.lane.b32.xlu0 %v559, 8
      %v722 = vpop.permute.xlu0 %721
      %723 = vrot.lane.b32.xlu0 %v561, 8
      %v724 = vpop.permute.xlu0 %723
      %725 = vrot.lane.b32.xlu0 %v563, 8
      %v726 = vpop.permute.xlu0 %725
      %727 = vrot.lane.b32.xlu0 %v566, 8
      %v728 = vpop.permute.xlu0 %727
      %729 = vrot.lane.b32.xlu0 %v568, 8
      %v730 = vpop.permute.xlu0 %729
      %731 = vrot.lane.b32.xlu0 %v570, 8
      %v732 = vpop.permute.xlu0 %731
      %733 = vrot.lane.b32.xlu0 %v573, 8
      %v734 = vpop.permute.xlu0 %733
      %735 = vrot.lane.b32.xlu0 %v575, 8
      %v736 = vpop.permute.xlu0 %735
      %737 = vrot.lane.b32.xlu0 %v577, 8
      %v738 = vpop.permute.xlu0 %737
      %739 = vrot.lane.b32.xlu0 %v580, 8
      %v740 = vpop.permute.xlu0 %739
      %741 = vrot.lane.b32.xlu0 %v582, 8
      %v742 = vpop.permute.xlu0 %741
      %743 = vrot.lane.b32.xlu0 %v584, 8
      %v744 = vpop.permute.xlu0 %743
      %745 = vrot.lane.b32.xlu0 %v587, 8
      %v746 = vpop.permute.xlu0 %745
      %747 = vrot.lane.b32.xlu0 %v589, 8
      %v748 = vpop.permute.xlu0 %747
      %749 = vrot.lane.b32.xlu0 %v591, 8
      %v750 = vpop.permute.xlu0 %749
      %751 = vrot.lane.b32.xlu0 %v594, 8
      %v752 = vpop.permute.xlu0 %751
      %753 = vrot.lane.b32.xlu0 %v596, 8
      %v754 = vpop.permute.xlu0 %753
      %755 = vrot.lane.b32.xlu0 %v598, 8
      %v756 = vpop.permute.xlu0 %755
      %757 = vrot.lane.b32.xlu0 %v601, 8
      %v758 = vpop.permute.xlu0 %757
      %759 = vrot.lane.b32.xlu0 %v603, 8
      %v760 = vpop.permute.xlu0 %759
      %761 = vrot.lane.b32.xlu0 %v605, 8
      %v762 = vpop.permute.xlu0 %761
      %763 = vrot.lane.b32.xlu0 %v608, 8
      %v764 = vpop.permute.xlu0 %763
      %765 = vrot.lane.b32.xlu0 %v610, 8
      %v766 = vpop.permute.xlu0 %765
      %767 = vrot.lane.b32.xlu0 %v612, 8
      %v768 = vpop.permute.xlu0 %767
      %793 = vrot.lane.b32.xlu0 %v435, 12
      %v794 = vpop.permute.xlu0 %793
      %795 = vrot.lane.b32.xlu0 %v436, 12
      %v796 = vpop.permute.xlu0 %795
      %797 = vrot.lane.b32.xlu0 %v437, 12
      %v798 = vpop.permute.xlu0 %797
      %799 = vrot.lane.b32.xlu0 %v439, 12
      %v800 = vpop.permute.xlu0 %799
      %801 = vrot.lane.b32.xlu0 %v440, 12
      %v802 = vpop.permute.xlu0 %801
      %803 = vrot.lane.b32.xlu0 %v441, 12
      %v804 = vpop.permute.xlu0 %803
      %805 = vrot.lane.b32.xlu0 %v443, 12
      %v806 = vpop.permute.xlu0 %805
      %807 = vrot.lane.b32.xlu0 %v444, 12
      %v808 = vpop.permute.xlu0 %807
      %809 = vrot.lane.b32.xlu0 %v445, 12
      %v810 = vpop.permute.xlu0 %809
      %811 = vrot.lane.b32.xlu0 %v447, 12
      %v812 = vpop.permute.xlu0 %811
      %813 = vrot.lane.b32.xlu0 %v448, 12
      %v814 = vpop.permute.xlu0 %813
      %815 = vrot.lane.b32.xlu0 %v449, 12
      %v816 = vpop.permute.xlu0 %815
      %817 = vrot.lane.b32.xlu0 %v451, 12
      %v818 = vpop.permute.xlu0 %817
      %819 = vrot.lane.b32.xlu0 %v452, 12
      %v820 = vpop.permute.xlu0 %819
      %821 = vrot.lane.b32.xlu0 %v453, 12
      %v822 = vpop.permute.xlu0 %821
      %823 = vrot.lane.b32.xlu0 %v455, 12
      %v824 = vpop.permute.xlu0 %823
      %825 = vrot.lane.b32.xlu0 %v456, 12
      %v826 = vpop.permute.xlu0 %825
      %827 = vrot.lane.b32.xlu0 %v457, 12
      %v828 = vpop.permute.xlu0 %827
      %829 = vrot.lane.b32.xlu0 %v459, 12
      %v830 = vpop.permute.xlu0 %829
      %831 = vrot.lane.b32.xlu0 %v460, 12
      %v832 = vpop.permute.xlu0 %831
      %833 = vrot.lane.b32.xlu0 %v461, 12
      %v834 = vpop.permute.xlu0 %833
      %835 = vrot.lane.b32.xlu0 %v463, 12
      %v836 = vpop.permute.xlu0 %835
      %837 = vrot.lane.b32.xlu0 %v464, 12
      %v838 = vpop.permute.xlu0 %837
      %839 = vrot.lane.b32.xlu0 %v465, 12
      %v840 = vpop.permute.xlu0 %839
      %865 = vrot.lane.b32.xlu0 %v509, 16
      %v866 = vpop.permute.xlu0 %865
      %867 = vrot.lane.b32.xlu0 %v511, 16
      %v868 = vpop.permute.xlu0 %867
      %869 = vrot.lane.b32.xlu0 %v513, 16
      %v870 = vpop.permute.xlu0 %869
      %871 = vrot.lane.b32.xlu0 %v516, 16
      %v872 = vpop.permute.xlu0 %871
      %873 = vrot.lane.b32.xlu0 %v518, 16
      %v874 = vpop.permute.xlu0 %873
      %875 = vrot.lane.b32.xlu0 %v520, 16
      %v876 = vpop.permute.xlu0 %875
      %877 = vrot.lane.b32.xlu0 %v523, 16
      %v878 = vpop.permute.xlu0 %877
      %879 = vrot.lane.b32.xlu0 %v525, 16
      %v880 = vpop.permute.xlu0 %879
      %881 = vrot.lane.b32.xlu0 %v527, 16
      %v882 = vpop.permute.xlu0 %881
      %883 = vrot.lane.b32.xlu0 %v530, 16
      %v884 = vpop.permute.xlu0 %883
      %885 = vrot.lane.b32.xlu0 %v532, 16
      %v886 = vpop.permute.xlu0 %885
      %887 = vrot.lane.b32.xlu0 %v534, 16
      %v888 = vpop.permute.xlu0 %887
      %889 = vrot.lane.b32.xlu0 %v537, 16
      %v890 = vpop.permute.xlu0 %889
      %891 = vrot.lane.b32.xlu0 %v539, 16
      %v892 = vpop.permute.xlu0 %891
      %893 = vrot.lane.b32.xlu0 %v541, 16
      %v894 = vpop.permute.xlu0 %893
      %895 = vrot.lane.b32.xlu0 %v544, 16
      %v896 = vpop.permute.xlu0 %895
      %897 = vrot.lane.b32.xlu0 %v546, 16
      %v898 = vpop.permute.xlu0 %897
      %899 = vrot.lane.b32.xlu0 %v548, 16
      %v900 = vpop.permute.xlu0 %899
      %901 = vrot.lane.b32.xlu0 %v551, 16
      %v902 = vpop.permute.xlu0 %901
      %903 = vrot.lane.b32.xlu0 %v553, 16
      %v904 = vpop.permute.xlu0 %903
      %905 = vrot.lane.b32.xlu0 %v555, 16
      %v906 = vpop.permute.xlu0 %905
      %907 = vrot.lane.b32.xlu0 %v619, 16
      %v908 = vpop.permute.xlu0 %907
      %909 = vrot.lane.b32.xlu0 %v621, 16
      %v910 = vpop.permute.xlu0 %909
      %911 = vrot.lane.b32.xlu0 %v623, 16
      %v912 = vpop.permute.xlu0 %911
      %937 = vrot.lane.b32.xlu0 %v566, 20
      %v938 = vpop.permute.xlu0 %937
      %939 = vrot.lane.b32.xlu0 %v568, 20
      %v940 = vpop.permute.xlu0 %939
      %941 = vrot.lane.b32.xlu0 %v570, 20
      %v942 = vpop.permute.xlu0 %941
      %943 = vrot.lane.b32.xlu0 %v573, 20
      %v944 = vpop.permute.xlu0 %943
      %945 = vrot.lane.b32.xlu0 %v575, 20
      %v946 = vpop.permute.xlu0 %945
      %947 = vrot.lane.b32.xlu0 %v577, 20
      %v948 = vpop.permute.xlu0 %947
      %949 = vrot.lane.b32.xlu0 %v580, 20
      %v950 = vpop.permute.xlu0 %949
      %951 = vrot.lane.b32.xlu0 %v582, 20
      %v952 = vpop.permute.xlu0 %951
      %953 = vrot.lane.b32.xlu0 %v584, 20
      %v954 = vpop.permute.xlu0 %953
      %955 = vrot.lane.b32.xlu0 %v587, 20
      %v956 = vpop.permute.xlu0 %955
      %957 = vrot.lane.b32.xlu0 %v589, 20
      %v958 = vpop.permute.xlu0 %957
      %959 = vrot.lane.b32.xlu0 %v591, 20
      %v960 = vpop.permute.xlu0 %959
      %961 = vrot.lane.b32.xlu0 %v594, 20
      %v962 = vpop.permute.xlu0 %961
      %963 = vrot.lane.b32.xlu0 %v596, 20
      %v964 = vpop.permute.xlu0 %963
      %965 = vrot.lane.b32.xlu0 %v598, 20
      %v966 = vpop.permute.xlu0 %965
      %967 = vrot.lane.b32.xlu0 %v601, 20
      %v968 = vpop.permute.xlu0 %967
      %969 = vrot.lane.b32.xlu0 %v603, 20
      %v970 = vpop.permute.xlu0 %969
      %971 = vrot.lane.b32.xlu0 %v605, 20
      %v972 = vpop.permute.xlu0 %971
      %973 = vrot.lane.b32.xlu0 %v608, 20
      %v974 = vpop.permute.xlu0 %973
      %975 = vrot.lane.b32.xlu0 %v610, 20
      %v976 = vpop.permute.xlu0 %975
      %977 = vrot.lane.b32.xlu0 %v612, 20
      %v978 = vpop.permute.xlu0 %977
      %979 = vrot.lane.b32.xlu0 %v626, 20
      %v980 = vpop.permute.xlu0 %979
      %981 = vrot.lane.b32.xlu0 %v628, 20
      %v982 = vpop.permute.xlu0 %981
      %983 = vrot.lane.b32.xlu0 %v630, 20
      %v984 = vpop.permute.xlu0 %983
      %1009 = vrot.lane.b32.xlu0 %v439, 24
      %v1010 = vpop.permute.xlu0 %1009
      %1011 = vrot.lane.b32.xlu0 %v440, 24
      %v1012 = vpop.permute.xlu0 %1011
      %1013 = vrot.lane.b32.xlu0 %v441, 24
      %v1014 = vpop.permute.xlu0 %1013
      %1015 = vrot.lane.b32.xlu0 %v443, 24
      %v1016 = vpop.permute.xlu0 %1015
      %1017 = vrot.lane.b32.xlu0 %v444, 24
      %v1018 = vpop.permute.xlu0 %1017
      %1019 = vrot.lane.b32.xlu0 %v445, 24
      %v1020 = vpop.permute.xlu0 %1019
      %1021 = vrot.lane.b32.xlu0 %v447, 24
      %v1022 = vpop.permute.xlu0 %1021
      %1023 = vrot.lane.b32.xlu0 %v448, 24
      %v1024 = vpop.permute.xlu0 %1023
      %1025 = vrot.lane.b32.xlu0 %v449, 24
      %v1026 = vpop.permute.xlu0 %1025
      %1027 = vrot.lane.b32.xlu0 %v451, 24
      %v1028 = vpop.permute.xlu0 %1027
      %1029 = vrot.lane.b32.xlu0 %v452, 24
      %v1030 = vpop.permute.xlu0 %1029
      %1031 = vrot.lane.b32.xlu0 %v453, 24
      %v1032 = vpop.permute.xlu0 %1031
      %1033 = vrot.lane.b32.xlu0 %v455, 24
      %v1034 = vpop.permute.xlu0 %1033
      %1035 = vrot.lane.b32.xlu0 %v456, 24
      %v1036 = vpop.permute.xlu0 %1035
      %1037 = vrot.lane.b32.xlu0 %v457, 24
      %v1038 = vpop.permute.xlu0 %1037
      %1039 = vrot.lane.b32.xlu0 %v459, 24
      %v1040 = vpop.permute.xlu0 %1039
      %1041 = vrot.lane.b32.xlu0 %v460, 24
      %v1042 = vpop.permute.xlu0 %1041
      %1043 = vrot.lane.b32.xlu0 %v461, 24
      %v1044 = vpop.permute.xlu0 %1043
      %1045 = vrot.lane.b32.xlu0 %v463, 24
      %v1046 = vpop.permute.xlu0 %1045
      %1047 = vrot.lane.b32.xlu0 %v464, 24
      %v1048 = vpop.permute.xlu0 %1047
      %1049 = vrot.lane.b32.xlu0 %v465, 24
      %v1050 = vpop.permute.xlu0 %1049
      %1051 = vrot.lane.b32.xlu0 %v431, 24
      %v1052 = vpop.permute.xlu0 %1051
      %1053 = vrot.lane.b32.xlu0 %v432, 24
      %v1054 = vpop.permute.xlu0 %1053
      %1055 = vrot.lane.b32.xlu0 %v433, 24
      %v1056 = vpop.permute.xlu0 %1055
      %1081 = vrot.lane.b32.xlu0 %v516, 28
      %v1082 = vpop.permute.xlu0 %1081
      %1083 = vrot.lane.b32.xlu0 %v518, 28
      %v1084 = vpop.permute.xlu0 %1083
      %1085 = vrot.lane.b32.xlu0 %v520, 28
      %v1086 = vpop.permute.xlu0 %1085
      %1087 = vrot.lane.b32.xlu0 %v523, 28
      %v1088 = vpop.permute.xlu0 %1087
      %1089 = vrot.lane.b32.xlu0 %v525, 28
      %v1090 = vpop.permute.xlu0 %1089
      %1091 = vrot.lane.b32.xlu0 %v527, 28
      %v1092 = vpop.permute.xlu0 %1091
      %1093 = vrot.lane.b32.xlu0 %v530, 28
      %v1094 = vpop.permute.xlu0 %1093
      %1095 = vrot.lane.b32.xlu0 %v532, 28
      %v1096 = vpop.permute.xlu0 %1095
      %1097 = vrot.lane.b32.xlu0 %v534, 28
      %v1098 = vpop.permute.xlu0 %1097
      %1099 = vrot.lane.b32.xlu0 %v537, 28
      %v1100 = vpop.permute.xlu0 %1099
      %1101 = vrot.lane.b32.xlu0 %v539, 28
      %v1102 = vpop.permute.xlu0 %1101
      %1103 = vrot.lane.b32.xlu0 %v541, 28
      %v1104 = vpop.permute.xlu0 %1103
      %1105 = vrot.lane.b32.xlu0 %v544, 28
      %v1106 = vpop.permute.xlu0 %1105
      %1107 = vrot.lane.b32.xlu0 %v546, 28
      %v1108 = vpop.permute.xlu0 %1107
      %1109 = vrot.lane.b32.xlu0 %v548, 28
      %v1110 = vpop.permute.xlu0 %1109
      %1111 = vrot.lane.b32.xlu0 %v551, 28
      %v1112 = vpop.permute.xlu0 %1111
      %1113 = vrot.lane.b32.xlu0 %v553, 28
      %v1114 = vpop.permute.xlu0 %1113
      %1115 = vrot.lane.b32.xlu0 %v555, 28
      %v1116 = vpop.permute.xlu0 %1115
      %1117 = vrot.lane.b32.xlu0 %v619, 28
      %v1118 = vpop.permute.xlu0 %1117
      %1119 = vrot.lane.b32.xlu0 %v621, 28
      %v1120 = vpop.permute.xlu0 %1119
      %1121 = vrot.lane.b32.xlu0 %v623, 28
      %v1122 = vpop.permute.xlu0 %1121
      %1123 = vrot.lane.b32.xlu0 %v637, 28
      %v1124 = vpop.permute.xlu0 %1123
      %1125 = vrot.lane.b32.xlu0 %v639, 28
      %v1126 = vpop.permute.xlu0 %1125
      %1127 = vrot.lane.b32.xlu0 %v641, 28
      %v1128 = vpop.permute.xlu0 %1127
      %1153 = vrot.lane.b32.xlu0 %v573, 32
      %v1154 = vpop.permute.xlu0 %1153
      %1155 = vrot.lane.b32.xlu0 %v575, 32
      %v1156 = vpop.permute.xlu0 %1155
      %1157 = vrot.lane.b32.xlu0 %v577, 32
      %v1158 = vpop.permute.xlu0 %1157
      %1159 = vrot.lane.b32.xlu0 %v580, 32
      %v1160 = vpop.permute.xlu0 %1159
      %1161 = vrot.lane.b32.xlu0 %v582, 32
      %v1162 = vpop.permute.xlu0 %1161
      %1163 = vrot.lane.b32.xlu0 %v584, 32
      %v1164 = vpop.permute.xlu0 %1163
      %1165 = vrot.lane.b32.xlu0 %v587, 32
      %v1166 = vpop.permute.xlu0 %1165
      %1167 = vrot.lane.b32.xlu0 %v589, 32
      %v1168 = vpop.permute.xlu0 %1167
      %1169 = vrot.lane.b32.xlu0 %v591, 32
      %v1170 = vpop.permute.xlu0 %1169
      %1171 = vrot.lane.b32.xlu0 %v594, 32
      %v1172 = vpop.permute.xlu0 %1171
      %1173 = vrot.lane.b32.xlu0 %v596, 32
      %v1174 = vpop.permute.xlu0 %1173
      %1175 = vrot.lane.b32.xlu0 %v598, 32
      %v1176 = vpop.permute.xlu0 %1175
      %1177 = vrot.lane.b32.xlu0 %v601, 32
      %v1178 = vpop.permute.xlu0 %1177
      %1179 = vrot.lane.b32.xlu0 %v603, 32
      %v1180 = vpop.permute.xlu0 %1179
      %1181 = vrot.lane.b32.xlu0 %v605, 32
      %v1182 = vpop.permute.xlu0 %1181
      %1183 = vrot.lane.b32.xlu0 %v608, 32
      %v1184 = vpop.permute.xlu0 %1183
      %1185 = vrot.lane.b32.xlu0 %v610, 32
      %v1186 = vpop.permute.xlu0 %1185
      %1187 = vrot.lane.b32.xlu0 %v612, 32
      %v1188 = vpop.permute.xlu0 %1187
      %1189 = vrot.lane.b32.xlu0 %v626, 32
      %v1190 = vpop.permute.xlu0 %1189
      %1191 = vrot.lane.b32.xlu0 %v628, 32
      %v1192 = vpop.permute.xlu0 %1191
      %1193 = vrot.lane.b32.xlu0 %v630, 32
      %v1194 = vpop.permute.xlu0 %1193
      %1195 = vrot.lane.b32.xlu0 %v644, 32
      %v1196 = vpop.permute.xlu0 %1195
      %1197 = vrot.lane.b32.xlu0 %v646, 32
      %v1198 = vpop.permute.xlu0 %1197
      %1199 = vrot.lane.b32.xlu0 %v648, 32
      %v1200 = vpop.permute.xlu0 %1199
      %vm1225 = vcmask 31744
      %v1226 = vsel %vm1225, %v423, %v650
      %v1227 = vsel %vm1225, %v424, %v652
      %v1228 = vsel %vm1225, %v425, %v654
      %v1229 = vsel %vm1225, %v435, %v656
      %v1230 = vsel %vm1225, %v436, %v658
      %v1231 = vsel %vm1225, %v437, %v660
      %v1232 = vsel %vm1225, %v439, %v662
      %v1233 = vsel %vm1225, %v440, %v664
      %v1234 = vsel %vm1225, %v441, %v666
      %v1235 = vsel %vm1225, %v443, %v668
      %v1236 = vsel %vm1225, %v444, %v670
      %v1237 = vsel %vm1225, %v445, %v672
      %v1238 = vsel %vm1225, %v447, %v674
      %v1239 = vsel %vm1225, %v448, %v676
      %v1240 = vsel %vm1225, %v449, %v678
      %v1241 = vsel %vm1225, %v451, %v680
      %v1242 = vsel %vm1225, %v452, %v682
      %v1243 = vsel %vm1225, %v453, %v684
      %v1244 = vsel %vm1225, %v455, %v686
      %v1245 = vsel %vm1225, %v456, %v688
      %v1246 = vsel %vm1225, %v457, %v690
      %v1247 = vsel %vm1225, %v459, %v692
      %v1248 = vsel %vm1225, %v460, %v694
      %v1249 = vsel %vm1225, %v461, %v696
      %vm1250 = vcmask 64512
      %v1251 = vsel %vm1250, %v1226, %v722
      %v1252 = vsel %vm1250, %v1227, %v724
      %v1253 = vsel %vm1250, %v1228, %v726
      %v1254 = vsel %vm1250, %v1229, %v728
      %v1255 = vsel %vm1250, %v1230, %v730
      %v1256 = vsel %vm1250, %v1231, %v732
      %v1257 = vsel %vm1250, %v1232, %v734
      %v1258 = vsel %vm1250, %v1233, %v736
      %v1259 = vsel %vm1250, %v1234, %v738
      %v1260 = vsel %vm1250, %v1235, %v740
      %v1261 = vsel %vm1250, %v1236, %v742
      %v1262 = vsel %vm1250, %v1237, %v744
      %v1263 = vsel %vm1250, %v1238, %v746
      %v1264 = vsel %vm1250, %v1239, %v748
      %v1265 = vsel %vm1250, %v1240, %v750
      %v1266 = vsel %vm1250, %v1241, %v752
      %v1267 = vsel %vm1250, %v1242, %v754
      %v1268 = vsel %vm1250, %v1243, %v756
      %v1269 = vsel %vm1250, %v1244, %v758
      %v1270 = vsel %vm1250, %v1245, %v760
      %v1271 = vsel %vm1250, %v1246, %v762
      %v1272 = vsel %vm1250, %v1247, %v764
      %v1273 = vsel %vm1250, %v1248, %v766
      %v1274 = vsel %vm1250, %v1249, %v768
      %vm1275 = vcmask 97280
      %v1276 = vsel %vm1275, %v1251, %v794
      %v1277 = vsel %vm1275, %v1252, %v796
      %v1278 = vsel %vm1275, %v1253, %v798
      %v1279 = vsel %vm1275, %v1254, %v800
      %v1280 = vsel %vm1275, %v1255, %v802
      %v1281 = vsel %vm1275, %v1256, %v804
      %v1282 = vsel %vm1275, %v1257, %v806
      %v1283 = vsel %vm1275, %v1258, %v808
      %v1284 = vsel %vm1275, %v1259, %v810
      %v1285 = vsel %vm1275, %v1260, %v812
      %v1286 = vsel %vm1275, %v1261, %v814
      %v1287 = vsel %vm1275, %v1262, %v816
      %v1288 = vsel %vm1275, %v1263, %v818
      %v1289 = vsel %vm1275, %v1264, %v820
      %v1290 = vsel %vm1275, %v1265, %v822
      %v1291 = vsel %vm1275, %v1266, %v824
      %v1292 = vsel %vm1275, %v1267, %v826
      %v1293 = vsel %vm1275, %v1268, %v828
      %v1294 = vsel %vm1275, %v1269, %v830
      %v1295 = vsel %vm1275, %v1270, %v832
      %v1296 = vsel %vm1275, %v1271, %v834
      %v1297 = vsel %vm1275, %v1272, %v836
      %v1298 = vsel %vm1275, %v1273, %v838
      %v1299 = vsel %vm1275, %v1274, %v840
      %vm1300 = vcmask 130048
      %v1301 = vsel %vm1300, %v1276, %v866
      %v1302 = vsel %vm1300, %v1277, %v868
      %v1303 = vsel %vm1300, %v1278, %v870
      %v1304 = vsel %vm1300, %v1279, %v872
      %v1305 = vsel %vm1300, %v1280, %v874
      %v1306 = vsel %vm1300, %v1281, %v876
      %v1307 = vsel %vm1300, %v1282, %v878
      %v1308 = vsel %vm1300, %v1283, %v880
      %v1309 = vsel %vm1300, %v1284, %v882
      %v1310 = vsel %vm1300, %v1285, %v884
      %v1311 = vsel %vm1300, %v1286, %v886
      %v1312 = vsel %vm1300, %v1287, %v888
      %v1313 = vsel %vm1300, %v1288, %v890
      %v1314 = vsel %vm1300, %v1289, %v892
      %v1315 = vsel %vm1300, %v1290, %v894
      %v1316 = vsel %vm1300, %v1291, %v896
      %v1317 = vsel %vm1300, %v1292, %v898
      %v1318 = vsel %vm1300, %v1293, %v900
      %v1319 = vsel %vm1300, %v1294, %v902
      %v1320 = vsel %vm1300, %v1295, %v904
      %v1321 = vsel %vm1300, %v1296, %v906
      %v1322 = vsel %vm1300, %v1297, %v908
      %v1323 = vsel %vm1300, %v1298, %v910
      %v1324 = vsel %vm1300, %v1299, %v912
      %vm1325 = vcmask 162816
      %v1326 = vsel %vm1325, %v1301, %v938
      %v1327 = vsel %vm1325, %v1302, %v940
      %v1328 = vsel %vm1325, %v1303, %v942
      %v1329 = vsel %vm1325, %v1304, %v944
      %v1330 = vsel %vm1325, %v1305, %v946
      %v1331 = vsel %vm1325, %v1306, %v948
      %v1332 = vsel %vm1325, %v1307, %v950
      %v1333 = vsel %vm1325, %v1308, %v952
      %v1334 = vsel %vm1325, %v1309, %v954
      %v1335 = vsel %vm1325, %v1310, %v956
      %v1336 = vsel %vm1325, %v1311, %v958
      %v1337 = vsel %vm1325, %v1312, %v960
      %v1338 = vsel %vm1325, %v1313, %v962
      %v1339 = vsel %vm1325, %v1314, %v964
      %v1340 = vsel %vm1325, %v1315, %v966
      %v1341 = vsel %vm1325, %v1316, %v968
      %v1342 = vsel %vm1325, %v1317, %v970
      %v1343 = vsel %vm1325, %v1318, %v972
      %v1344 = vsel %vm1325, %v1319, %v974
      %v1345 = vsel %vm1325, %v1320, %v976
      %v1346 = vsel %vm1325, %v1321, %v978
      %v1347 = vsel %vm1325, %v1322, %v980
      %v1348 = vsel %vm1325, %v1323, %v982
      %v1349 = vsel %vm1325, %v1324, %v984
      %vm1350 = vcmask 195584
      %v1351 = vsel %vm1350, %v1326, %v1010
      %v1352 = vsel %vm1350, %v1327, %v1012
      %v1353 = vsel %vm1350, %v1328, %v1014
      %v1354 = vsel %vm1350, %v1329, %v1016
      %v1355 = vsel %vm1350, %v1330, %v1018
      %v1356 = vsel %vm1350, %v1331, %v1020
      %v1357 = vsel %vm1350, %v1332, %v1022
      %v1358 = vsel %vm1350, %v1333, %v1024
      %v1359 = vsel %vm1350, %v1334, %v1026
      %v1360 = vsel %vm1350, %v1335, %v1028
      %v1361 = vsel %vm1350, %v1336, %v1030
      %v1362 = vsel %vm1350, %v1337, %v1032
      %v1363 = vsel %vm1350, %v1338, %v1034
      %v1364 = vsel %vm1350, %v1339, %v1036
      %v1365 = vsel %vm1350, %v1340, %v1038
      %v1366 = vsel %vm1350, %v1341, %v1040
      %v1367 = vsel %vm1350, %v1342, %v1042
      %v1368 = vsel %vm1350, %v1343, %v1044
      %v1369 = vsel %vm1350, %v1344, %v1046
      %v1370 = vsel %vm1350, %v1345, %v1048
      %v1371 = vsel %vm1350, %v1346, %v1050
      %v1372 = vsel %vm1350, %v1347, %v1052
      %v1373 = vsel %vm1350, %v1348, %v1054
      %v1374 = vsel %vm1350, %v1349, %v1056
      %vm1375 = vcmask 228352
      %v1376 = vsel %vm1375, %v1351, %v1082
      %v1377 = vsel %vm1375, %v1352, %v1084
      %v1378 = vsel %vm1375, %v1353, %v1086
      %v1379 = vsel %vm1375, %v1354, %v1088
      %v1380 = vsel %vm1375, %v1355, %v1090
      %v1381 = vsel %vm1375, %v1356, %v1092
      %v1382 = vsel %vm1375, %v1357, %v1094
      %v1383 = vsel %vm1375, %v1358, %v1096
      %v1384 = vsel %vm1375, %v1359, %v1098
      %v1385 = vsel %vm1375, %v1360, %v1100
      %v1386 = vsel %vm1375, %v1361, %v1102
      %v1387 = vsel %vm1375, %v1362, %v1104
      %v1388 = vsel %vm1375, %v1363, %v1106
      %v1389 = vsel %vm1375, %v1364, %v1108
      %v1390 = vsel %vm1375, %v1365, %v1110
      %v1391 = vsel %vm1375, %v1366, %v1112
      %v1392 = vsel %vm1375, %v1367, %v1114
      %v1393 = vsel %vm1375, %v1368, %v1116
      %v1394 = vsel %vm1375, %v1369, %v1118
      %v1395 = vsel %vm1375, %v1370, %v1120
      %v1396 = vsel %vm1375, %v1371, %v1122
      %v1397 = vsel %vm1375, %v1372, %v1124
      %v1398 = vsel %vm1375, %v1373, %v1126
      %v1399 = vsel %vm1375, %v1374, %v1128
      %vm1400 = vcmask 261120
      %v1401 = vsel %vm1400, %v1376, %v1154
      %v1402 = vsel %vm1400, %v1377, %v1156
      %v1403 = vsel %vm1400, %v1378, %v1158
      %v1404 = vsel %vm1400, %v1379, %v1160
      %v1405 = vsel %vm1400, %v1380, %v1162
      %v1406 = vsel %vm1400, %v1381, %v1164
      %v1407 = vsel %vm1400, %v1382, %v1166
      %v1408 = vsel %vm1400, %v1383, %v1168
      %v1409 = vsel %vm1400, %v1384, %v1170
      %v1410 = vsel %vm1400, %v1385, %v1172
      %v1411 = vsel %vm1400, %v1386, %v1174
      %v1412 = vsel %vm1400, %v1387, %v1176
      %v1413 = vsel %vm1400, %v1388, %v1178
      %v1414 = vsel %vm1400, %v1389, %v1180
      %v1415 = vsel %vm1400, %v1390, %v1182
      %v1416 = vsel %vm1400, %v1391, %v1184
      %v1417 = vsel %vm1400, %v1392, %v1186
      %v1418 = vsel %vm1400, %v1393, %v1188
      %v1419 = vsel %vm1400, %v1394, %v1190
      %v1420 = vsel %vm1400, %v1395, %v1192
      %v1421 = vsel %vm1400, %v1396, %v1194
      %v1422 = vsel %vm1400, %v1397, %v1196
      %v1423 = vsel %vm1400, %v1398, %v1198
      %v1424 = vsel %vm1400, %v1399, %v1200
      %v1425 = vld [vmem:[%s3] sm:$0xff]
      %v1426 = vld [vmem:[%s3 + $0x8] sm:$0xff]
      %v1427 = vld [vmem:[%s3 + $0x10] sm:$0xff]
      %v1428 = vld [vmem:[%s3 + $0x18] sm:$0xff]
      %v1429 = vld [vmem:[%s3 + $0x20] sm:$0xf]
      %vm1430 = vcmask 293888
      %v1432 = vsel %vm1430, %v1401, 0
      %v1435 = vsel %vm1430, %v1402, 0
      %v1438 = vsel %vm1430, %v1403, 0
      %v1441 = vsel %vm1430, %v1404, 0
      %v1444 = vsel %vm1430, %v1405, 0
      %v1447 = vsel %vm1430, %v1406, 0
      %v1450 = vsel %vm1430, %v1407, 0
      %v1453 = vsel %vm1430, %v1408, 0
      %v1456 = vsel %vm1430, %v1409, 0
      %v1459 = vsel %vm1430, %v1410, 0
      %v1462 = vsel %vm1430, %v1411, 0
      %v1465 = vsel %vm1430, %v1412, 0
      %v1468 = vsel %vm1430, %v1413, 0
      %v1471 = vsel %vm1430, %v1414, 0
      %v1474 = vsel %vm1430, %v1415, 0
      %v1477 = vsel %vm1430, %v1416, 0
      %v1480 = vsel %vm1430, %v1417, 0
      %v1483 = vsel %vm1430, %v1418, 0
      %v1486 = vsel %vm1430, %v1419, 0
      %v1489 = vsel %vm1430, %v1420, 0
      %v1492 = vsel %vm1430, %v1421, 0
      %v1495 = vsel %vm1430, %v1422, 0
      %v1498 = vsel %vm1430, %v1423, 0
      %v1501 = vsel %vm1430, %v1424, 0
      %vm1503 = vcmask 1043456
      %v1505 = vsel %vm1503, %v1429, 0
      %1507 = vmatprep.subr.mxu0 0.0
      %1508 = vmatpush1.msra.mxu0 %v1425
      %1509 = vmatprep.subr.mxu0 0.0
      %1510 = vmatpush1.msra.mxu0 %v1426
      %1511 = vmatprep.subr.mxu0 0.0
      %1512 = vmatpush1.msra.mxu0 %v1427
      %1513 = vmatprep.subr.mxu0 0.0
      %1514 = vmatpush1.msra.mxu0 %v1428
      %1515 = vmatprep.subr.mxu0 0.0
      %1516 = vmatpush1.msra.mxu0 %v1505
      %1517 = vmatprep.subr.mxu0 0.0
      %1518 = vmatpush1.msra.mxu0 0.0
      %1519 = vmatprep.subr.mxu0 0.0
      %1520 = vmatpush1.msra.mxu0 0.0
      %1521 = vmatprep.subr.mxu0 0.0
      %1522 = vmatpush1.msra.mxu0 0.0
      %1523 = vmatprep.subr.mxu0 0.0
      %1524 = vmatpush1.msra.mxu0 0.0
      %1525 = vmatprep.subr.mxu0 0.0
      %1526 = vmatpush1.msra.mxu0 0.0
      %1527 = vmatprep.subr.mxu0 0.0
      %1528 = vmatpush1.msra.mxu0 0.0
      %1529 = vmatprep.subr.mxu0 0.0
      %1530 = vmatpush1.msra.mxu0 0.0
      %1531 = vmatprep.subr.mxu0 0.0
      %1532 = vmatpush1.msra.mxu0 0.0
      %1533 = vmatprep.subr.mxu0 0.0
      %1534 = vmatpush1.msra.mxu0 0.0
      %1535 = vmatprep.subr.mxu0 0.0
      %1536 = vmatpush1.msra.mxu0 0.0
      %1537 = vmatprep.subr.mxu0 0.0
      %1538 = vmatpush1.msra.mxu0 0.0
      %1539 = vmatprep.subr.mxu0 0.0
      %1540 = vmatpush1.msra.mxu0 0.0
      %1541 = vmatprep.subr.mxu0 0.0
      %1542 = vmatpush1.msra.mxu0 0.0
      %1543 = vmatprep.subr.mxu0 0.0
      %1544 = vmatpush1.msra.mxu0 0.0
      %1545 = vmatprep.subr.mxu0 0.0
      %1546 = vmatpush1.msra.mxu0 0.0
      %1547 = vmatprep.subr.mxu0 0.0
      %1548 = vmatpush1.msra.mxu0 0.0
      %1549 = vmatprep.subr.mxu0 0.0
      %1550 = vmatpush1.msra.mxu0 0.0
      %1551 = vmatprep.subr.mxu0 0.0
      %1552 = vmatpush1.msra.mxu0 0.0
      %1553 = vmatprep.subr.mxu0 0.0
      %1554 = vmatpush1.msra.mxu0 0.0
      %1555 = vmatprep.subr.mxu0 0.0
      %1556 = vmatpush1.msra.mxu0 0.0
      %1557 = vmatprep.subr.mxu0 0.0
      %1558 = vmatpush1.msra.mxu0 0.0
      %1559 = vmatprep.subr.mxu0 0.0
      %1560 = vmatpush1.msra.mxu0 0.0
      %1561 = vmatprep.subr.mxu0 0.0
      %1562 = vmatpush1.msra.mxu0 0.0
      %1563 = vmatprep.subr.mxu0 0.0
      %1564 = vmatpush1.msra.mxu0 0.0
      %1565 = vmatprep.subr.mxu0 0.0
      %1566 = vmatpush1.msra.mxu0 0.0
      %1567 = vmatprep.subr.mxu0 0.0
      %1568 = vmatpush1.msra.mxu0 0.0
      %1569 = vmatprep.subr.mxu0 0.0
      %1570 = vmatpush1.msra.mxu0 0.0
      %1571 = vmatprep.mubr.f32.mxu0 0.0
      %1572 = vmatmul.mubr.f32.gmra.mrb[0].mxu0 %v1432
      %v1573 = vpop.f32.mrb[0].mxu0
      %v1574 = vadd.f32 0.0, %v1573
      %v1575 = vpop.f32.mrb[0].mxu0
      %1576 = vmatprep.mubr.f32.mxu0 0.0
      %1577 = vmatmul.mubr.f32.gmra.mrb[0].mxu0 %v1435
      %v1578 = vpop.f32.mrb[0].mxu0
      %v1579 = vadd.f32 0.0, %v1578
      %v1580 = vpop.f32.mrb[0].mxu0
      %1581 = vmatprep.mubr.f32.mxu0 0.0
      %1582 = vmatmul.mubr.f32.gmra.mrb[0].mxu0 %v1438
      %v1583 = vpop.f32.mrb[0].mxu0
      %v1584 = vadd.f32 0.0, %v1583
      %v1585 = vpop.f32.mrb[0].mxu0
      %1586 = vmatprep.mubr.f32.mxu0 0.0
      %1587 = vmatmul.mubr.f32.gmra.mrb[0].mxu0 %v1441
      %v1588 = vpop.f32.mrb[0].mxu0
      %v1589 = vadd.f32 0.0, %v1588
      %v1590 = vpop.f32.mrb[0].mxu0
      %1591 = vmatprep.mubr.f32.mxu0 0.0
      %1592 = vmatmul.mubr.f32.gmra.mrb[0].mxu0 %v1444
      %v1593 = vpop.f32.mrb[0].mxu0
      %v1594 = vadd.f32 0.0, %v1593
      %v1595 = vpop.f32.mrb[0].mxu0
      %1596 = vmatprep.mubr.f32.mxu0 0.0
      %1597 = vmatmul.mubr.f32.gmra.mrb[0].mxu0 %v1447
      %v1598 = vpop.f32.mrb[0].mxu0
      %v1599 = vadd.f32 0.0, %v1598
      %v1600 = vpop.f32.mrb[0].mxu0
      %1601 = vmatprep.mubr.f32.mxu0 0.0
      %1602 = vmatmul.mubr.f32.gmra.mrb[0].mxu0 %v1450
      %v1603 = vpop.f32.mrb[0].mxu0
      %v1604 = vadd.f32 0.0, %v1603
      %v1605 = vpop.f32.mrb[0].mxu0
      %1606 = vmatprep.mubr.f32.mxu0 0.0
      %1607 = vmatmul.mubr.f32.gmra.mrb[0].mxu0 %v1453
      %v1608 = vpop.f32.mrb[0].mxu0
      %v1609 = vadd.f32 0.0, %v1608
      %v1610 = vpop.f32.mrb[0].mxu0
      %1611 = vmatprep.mubr.f32.mxu0 0.0
      %1612 = vmatmul.mubr.f32.gmra.mrb[0].mxu0 %v1456
      %v1613 = vpop.f32.mrb[0].mxu0
      %v1614 = vadd.f32 0.0, %v1613
      %v1615 = vpop.f32.mrb[0].mxu0
      %1616 = vmatprep.mubr.f32.mxu0 0.0
      %1617 = vmatmul.mubr.f32.gmra.mrb[0].mxu0 %v1459
      %v1618 = vpop.f32.mrb[0].mxu0
      %v1619 = vadd.f32 0.0, %v1618
      %v1620 = vpop.f32.mrb[0].mxu0
      %1621 = vmatprep.mubr.f32.mxu0 0.0
      %1622 = vmatmul.mubr.f32.gmra.mrb[0].mxu0 %v1462
      %v1623 = vpop.f32.mrb[0].mxu0
      %v1624 = vadd.f32 0.0, %v1623
      %v1625 = vpop.f32.mrb[0].mxu0
      %1626 = vmatprep.mubr.f32.mxu0 0.0
      %1627 = vmatmul.mubr.f32.gmra.mrb[0].mxu0 %v1465
      %v1628 = vpop.f32.mrb[0].mxu0
      %v1629 = vadd.f32 0.0, %v1628
      %v1630 = vpop.f32.mrb[0].mxu0
      %1631 = vmatprep.mubr.f32.mxu0 0.0
      %1632 = vmatmul.mubr.f32.gmra.mrb[0].mxu0 %v1468
      %v1633 = vpop.f32.mrb[0].mxu0
      %v1634 = vadd.f32 0.0, %v1633
      %v1635 = vpop.f32.mrb[0].mxu0
      %1636 = vmatprep.mubr.f32.mxu0 0.0
      %1637 = vmatmul.mubr.f32.gmra.mrb[0].mxu0 %v1471
      %v1638 = vpop.f32.mrb[0].mxu0
      %v1639 = vadd.f32 0.0, %v1638
      %v1640 = vpop.f32.mrb[0].mxu0
      %1641 = vmatprep.mubr.f32.mxu0 0.0
      %1642 = vmatmul.mubr.f32.gmra.mrb[0].mxu0 %v1474
      %v1643 = vpop.f32.mrb[0].mxu0
      %v1644 = vadd.f32 0.0, %v1643
      %v1645 = vpop.f32.mrb[0].mxu0
      %1646 = vmatprep.mubr.f32.mxu0 0.0
      %1647 = vmatmul.mubr.f32.gmra.mrb[0].mxu0 %v1477
      %v1648 = vpop.f32.mrb[0].mxu0
      %v1649 = vadd.f32 0.0, %v1648
      %v1650 = vpop.f32.mrb[0].mxu0
      %1651 = vmatprep.mubr.f32.mxu0 0.0
      %1652 = vmatmul.mubr.f32.gmra.mrb[0].mxu0 %v1480
      %v1653 = vpop.f32.mrb[0].mxu0
      %v1654 = vadd.f32 0.0, %v1653
      %v1655 = vpop.f32.mrb[0].mxu0
      %1656 = vmatprep.mubr.f32.mxu0 0.0
      %1657 = vmatmul.mubr.f32.gmra.mrb[0].mxu0 %v1483
      %v1658 = vpop.f32.mrb[0].mxu0
      %v1659 = vadd.f32 0.0, %v1658
      %v1660 = vpop.f32.mrb[0].mxu0
      %1661 = vmatprep.mubr.f32.mxu0 0.0
      %1662 = vmatmul.mubr.f32.gmra.mrb[0].mxu0 %v1486
      %v1663 = vpop.f32.mrb[0].mxu0
      %v1664 = vadd.f32 0.0, %v1663
      %v1665 = vpop.f32.mrb[0].mxu0
      %1666 = vmatprep.mubr.f32.mxu0 0.0
      %1667 = vmatmul.mubr.f32.gmra.mrb[0].mxu0 %v1489
      %v1668 = vpop.f32.mrb[0].mxu0
      %v1669 = vadd.f32 0.0, %v1668
      %v1670 = vpop.f32.mrb[0].mxu0
      %1671 = vmatprep.mubr.f32.mxu0 0.0
      %1672 = vmatmul.mubr.f32.gmra.mrb[0].mxu0 %v1492
      %v1673 = vpop.f32.mrb[0].mxu0
      %v1674 = vadd.f32 0.0, %v1673
      %v1675 = vpop.f32.mrb[0].mxu0
      %1676 = vmatprep.mubr.f32.mxu0 0.0
      %1677 = vmatmul.mubr.f32.gmra.mrb[0].mxu0 %v1495
      %v1678 = vpop.f32.mrb[0].mxu0
      %v1679 = vadd.f32 0.0, %v1678
      %v1680 = vpop.f32.mrb[0].mxu0
      %1681 = vmatprep.mubr.f32.mxu0 0.0
      %1682 = vmatmul.mubr.f32.gmra.mrb[0].mxu0 %v1498
      %v1683 = vpop.f32.mrb[0].mxu0
      %v1684 = vadd.f32 0.0, %v1683
      %v1685 = vpop.f32.mrb[0].mxu0
      %1686 = vmatprep.mubr.f32.mxu0 0.0
      %1687 = vmatmul.mubr.f32.gmra.mrb[0].mxu0 %v1501
      %v1688 = vpop.f32.mrb[0].mxu0
      %v1689 = vadd.f32 0.0, %v1688
      %v1690 = vpop.f32.mrb[0].mxu0
      %1691 = vdwg.mxu0
      %1692 = vst.msk [vmem:[%s402] sm:$0xff] %vm1250, %v1574
      %1693 = vst.msk [vmem:[%s402 + $0x8] sm:$0xff] %vm1250, %v1579
      %1694 = vst.msk [vmem:[%s402 + $0x10] sm:$0xff] %vm1250, %v1584
      %1695 = vst.msk [vmem:[%s402 + $0x18] sm:$0xff] %vm1250, %v1589
      %1696 = vst.msk [vmem:[%s402 + $0x20] sm:$0xff] %vm1250, %v1594
      %1697 = vst.msk [vmem:[%s402 + $0x28] sm:$0xff] %vm1250, %v1599
      %1698 = vst.msk [vmem:[%s402 + $0x30] sm:$0xff] %vm1250, %v1604
      %1699 = vst.msk [vmem:[%s402 + $0x38] sm:$0xff] %vm1250, %v1609
      %1700 = vst.msk [vmem:[%s402 + $0x40] sm:$0xff] %vm1250, %v1614
      %1701 = vst.msk [vmem:[%s402 + $0x48] sm:$0xff] %vm1250, %v1619
      %1702 = vst.msk [vmem:[%s402 + $0x50] sm:$0xff] %vm1250, %v1624
      %1703 = vst.msk [vmem:[%s402 + $0x58] sm:$0xff] %vm1250, %v1629
      %1704 = vst.msk [vmem:[%s402 + $0x60] sm:$0xff] %vm1250, %v1634
      %1705 = vst.msk [vmem:[%s402 + $0x68] sm:$0xff] %vm1250, %v1639
      %1706 = vst.msk [vmem:[%s402 + $0x70] sm:$0xff] %vm1250, %v1644
      %1707 = vst.msk [vmem:[%s402 + $0x78] sm:$0xff] %vm1250, %v1649
      %1708 = vst.msk [vmem:[%s402 + $0x80] sm:$0xff] %vm1250, %v1654
      %1709 = vst.msk [vmem:[%s402 + $0x88] sm:$0xff] %vm1250, %v1659
      %1710 = vst.msk [vmem:[%s402 + $0x90] sm:$0xff] %vm1250, %v1664
      %1711 = vst.msk [vmem:[%s402 + $0x98] sm:$0xff] %vm1250, %v1669
      %1712 = vst.msk [vmem:[%s402 + $0xa0] sm:$0xff] %vm1250, %v1674
      %1713 = vst.msk [vmem:[%s402 + $0xa8] sm:$0xff] %vm1250, %v1679
      %1714 = vst.msk [vmem:[%s402 + $0xb0] sm:$0xff] %vm1250, %v1684
      %1715 = vst.msk [vmem:[%s402 + $0xb8] sm:$0xff] %vm1250, %v1689
      %v1716 = vsel %vm1250, %v1574, 0.0
      %v1717 = vsel %vm1250, %v1579, 0.0
      %v1718 = vadd.f32 %v1716, %v1717
      %v1719 = vsel %vm1250, %v1584, 0.0
      %v1720 = vadd.f32 %v1718, %v1719
      %v1721 = vsel %vm1250, %v1589, 0.0
      %v1722 = vadd.f32 %v1720, %v1721
      %v1723 = vsel %vm1250, %v1594, 0.0
      %v1724 = vadd.f32 %v1722, %v1723
      %v1725 = vsel %vm1250, %v1599, 0.0
      %v1726 = vadd.f32 %v1724, %v1725
      %v1727 = vsel %vm1250, %v1604, 0.0
      %v1728 = vadd.f32 %v1726, %v1727
      %v1729 = vsel %vm1250, %v1609, 0.0
      %v1730 = vadd.f32 %v1728, %v1729
      %v1731 = vsel %vm1250, %v1614, 0.0
      %v1732 = vadd.f32 %v1730, %v1731
      %v1733 = vsel %vm1250, %v1619, 0.0
      %v1734 = vadd.f32 %v1732, %v1733
      %v1735 = vsel %vm1250, %v1624, 0.0
      %v1736 = vadd.f32 %v1734, %v1735
      %v1737 = vsel %vm1250, %v1629, 0.0
      %v1738 = vadd.f32 %v1736, %v1737
      %v1739 = vsel %vm1250, %v1634, 0.0
      %v1740 = vadd.f32 %v1738, %v1739
      %v1741 = vsel %vm1250, %v1639, 0.0
      %v1742 = vadd.f32 %v1740, %v1741
      %v1743 = vsel %vm1250, %v1644, 0.0
      %v1744 = vadd.f32 %v1742, %v1743
      %v1745 = vsel %vm1250, %v1649, 0.0
      %v1746 = vadd.f32 %v1744, %v1745
      %v1747 = vsel %vm1250, %v1654, 0.0
      %v1748 = vadd.f32 %v1746, %v1747
      %v1749 = vsel %vm1250, %v1659, 0.0
      %v1750 = vadd.f32 %v1748, %v1749
      %v1751 = vsel %vm1250, %v1664, 0.0
      %v1752 = vadd.f32 %v1750, %v1751
      %v1753 = vsel %vm1250, %v1669, 0.0
      %v1754 = vadd.f32 %v1752, %v1753
      %v1755 = vsel %vm1250, %v1674, 0.0
      %v1756 = vadd.f32 %v1754, %v1755
      %v1757 = vsel %vm1250, %v1679, 0.0
      %v1758 = vadd.f32 %v1756, %v1757
      %v1759 = vsel %vm1250, %v1684, 0.0
      %v1760 = vadd.f32 %v1758, %v1759
      %v1761 = vsel %vm1250, %v1689, 0.0
      %v1762 = vadd.f32 %v1760, %v1761
      %v1763 = vrot.slane %v1762, 4
      %v1764 = vadd.f32 %v1762, %v1763
      %v1765 = vrot.slane %v1764, 2
      %v1766 = vadd.f32 %v1764, %v1765
      %v1767 = vrot.slane %v1766, 1
      %v1768 = vadd.f32 %v1766, %v1767
      %v1769 = vmul.f32 %v1574, %v1574
      %v1770 = vmul.f32 %v1579, %v1579
      %v1771 = vmul.f32 %v1584, %v1584
      %v1772 = vmul.f32 %v1589, %v1589
      %v1773 = vmul.f32 %v1594, %v1594
      %v1774 = vmul.f32 %v1599, %v1599
      %v1775 = vmul.f32 %v1604, %v1604
      %v1776 = vmul.f32 %v1609, %v1609
      %v1777 = vmul.f32 %v1614, %v1614
      %v1778 = vmul.f32 %v1619, %v1619
      %v1779 = vmul.f32 %v1624, %v1624
      %v1780 = vmul.f32 %v1629, %v1629
      %v1781 = vmul.f32 %v1634, %v1634
      %v1782 = vmul.f32 %v1639, %v1639
      %v1783 = vmul.f32 %v1644, %v1644
      %v1784 = vmul.f32 %v1649, %v1649
      %v1785 = vmul.f32 %v1654, %v1654
      %v1786 = vmul.f32 %v1659, %v1659
      %v1787 = vmul.f32 %v1664, %v1664
      %v1788 = vmul.f32 %v1669, %v1669
      %v1789 = vmul.f32 %v1674, %v1674
      %v1790 = vmul.f32 %v1679, %v1679
      %v1791 = vmul.f32 %v1684, %v1684
      %v1792 = vmul.f32 %v1689, %v1689
      %v1793 = vsel %vm1250, %v1769, 0.0
      %v1794 = vsel %vm1250, %v1770, 0.0
      %v1795 = vadd.f32 %v1793, %v1794
      %v1796 = vsel %vm1250, %v1771, 0.0
      %v1797 = vadd.f32 %v1795, %v1796
      %v1798 = vsel %vm1250, %v1772, 0.0
      %v1799 = vadd.f32 %v1797, %v1798
      %v1800 = vsel %vm1250, %v1773, 0.0
      %v1801 = vadd.f32 %v1799, %v1800
      %v1802 = vsel %vm1250, %v1774, 0.0
      %v1803 = vadd.f32 %v1801, %v1802
      %v1804 = vsel %vm1250, %v1775, 0.0
      %v1805 = vadd.f32 %v1803, %v1804
      %v1806 = vsel %vm1250, %v1776, 0.0
      %v1807 = vadd.f32 %v1805, %v1806
      %v1808 = vsel %vm1250, %v1777, 0.0
      %v1809 = vadd.f32 %v1807, %v1808
      %v1810 = vsel %vm1250, %v1778, 0.0
      %v1811 = vadd.f32 %v1809, %v1810
      %v1812 = vsel %vm1250, %v1779, 0.0
      %v1813 = vadd.f32 %v1811, %v1812
      %v1814 = vsel %vm1250, %v1780, 0.0
      %v1815 = vadd.f32 %v1813, %v1814
      %v1816 = vsel %vm1250, %v1781, 0.0
      %v1817 = vadd.f32 %v1815, %v1816
      %v1818 = vsel %vm1250, %v1782, 0.0
      %v1819 = vadd.f32 %v1817, %v1818
      %v1820 = vsel %vm1250, %v1783, 0.0
      %v1821 = vadd.f32 %v1819, %v1820
      %v1822 = vsel %vm1250, %v1784, 0.0
      %v1823 = vadd.f32 %v1821, %v1822
      %v1824 = vsel %vm1250, %v1785, 0.0
      %v1825 = vadd.f32 %v1823, %v1824
      %v1826 = vsel %vm1250, %v1786, 0.0
      %v1827 = vadd.f32 %v1825, %v1826
      %v1828 = vsel %vm1250, %v1787, 0.0
      %v1829 = vadd.f32 %v1827, %v1828
      %v1830 = vsel %vm1250, %v1788, 0.0
      %v1831 = vadd.f32 %v1829, %v1830
      %v1832 = vsel %vm1250, %v1789, 0.0
      %v1833 = vadd.f32 %v1831, %v1832
      %v1834 = vsel %vm1250, %v1790, 0.0
      %v1835 = vadd.f32 %v1833, %v1834
      %v1836 = vsel %vm1250, %v1791, 0.0
      %v1837 = vadd.f32 %v1835, %v1836
      %v1838 = vsel %vm1250, %v1792, 0.0
      %v1839 = vadd.f32 %v1837, %v1838
      %v1840 = vrot.slane %v1839, 4
      %v1841 = vadd.f32 %v1839, %v1840
      %v1842 = vrot.slane %v1841, 2
      %v1843 = vadd.f32 %v1841, %v1842
      %v1844 = vrot.slane %v1843, 1
      %v1845 = vadd.f32 %v1843, %v1844
      %vm1846 = vcmask 1040384
      %v1847 = vsel %vm1846, %v1768, %v1845
      %vm1848 = vcmask 58368
      %1849 = vst.msk [vmem:[%s410] sm:$0x3] %vm1848, %v1847
      %p1850 = scmp.lt.s32.totalorder %s21, 1
      %s1851 = scalar_select %p1850, %s21, 1
      %p1852 = scmp.lt.s32.totalorder %s22, 2
      %s1853 = scalar_select %p1852, %s22, 2
      %s1854 = smul.addr %s1853, 24
      %s1855 = smul.addr %s1851, 72
      %s1856 = sadd.s32 %s1854, %s1855
      %s1857 = smul.addr %s1856, 8
      %s1858 = scalar_lea.vmem %s4, %s1857
      %p1859 = scmp.lt.s32.totalorder %s21, 1
      %s1860 = scalar_select %p1859, %s21, 1
      %p1861 = scmp.lt.s32.totalorder %s22, 2
      %s1862 = scalar_select %p1861, %s22, 2
      %s1863 = smul.addr %s1860, 3
      %s1864 = sadd.s32 %s1862, %s1863
      %s1865 = smul.addr %s1864, 2
      %s1866 = scalar_lea.vmem %s5, %s1865
      // Predicated region
      $region37: #{_lambda_.3} parent=35 // pred_check
        %p1867 = pneg %p170
      $region38: #{_lambda_.3} parent=35 // pred_check_branch
        %1869 = sbr.rel (%p1867) target = $region40
      $region39: #{_lambda_.3} parent=35 // pred_region
        _
      $region40: #{_lambda_.3} parent=35 // pred_fallthru
        _
      // Predicated region
      $region41: #{_lambda_.3} parent=35 // pred_check
        %p1870 = pneg %p198
      $region42: #{_lambda_.3} parent=35 // pred_check_branch
        %1872 = sbr.rel (%p1870) target = $region44
      $region43: #{_lambda_.3} parent=35 // pred_region
        _
      $region44: #{_lambda_.3} parent=35 // pred_fallthru
        _
    $region36: #{_lambda_.3} parent=5 // pred_fallthru
      _
    %p1873 = scmp.le.s32.totalorder 2, %s12
    // Predicated region
    $region45: #{_lambda_.3} parent=5 // pred_check
      %p1874 = pneg %p1873
    $region46: #{_lambda_.3} parent=5 // pred_check_branch
      %1876 = sbr.rel (%p1874) target = $region48
    $region47: #{_lambda_.3} parent=5 // pred_region
      %s1877 = ssub.s32 %s12, 2
      // Predicated region
      $region49: #{_lambda_.3} parent=47 // pred_check
        %p1878 = pneg %p176
      $region50: #{_lambda_.3} parent=47 // pred_check_branch
        %1880 = sbr.rel (%p1878) target = $region52
      $region51: #{_lambda_.3} parent=47 // pred_region
        %p1881 = scmp.lt.s32.totalorder %s23, 1
        %s1882 = scalar_select %p1881, %s23, 1
        %p1883 = scmp.lt.s32.totalorder %s24, 2
        %s1884 = scalar_select %p1883, %s24, 2
        %s1885 = smul.addr %s1884, 24
        %s1886 = smul.addr %s1882, 72
        %s1887 = sadd.s32 %s1885, %s1886
        %s1888 = smul.addr %s1887, 8
        %s1889 = scalar_lea.vmem %s4, %s1888
      $region52: #{_lambda_.3} parent=47 // pred_fallthru
        _
      // Predicated region
      $region53: #{_lambda_.3} parent=47 // pred_check
        %p1890 = pneg %p204
      $region54: #{_lambda_.3} parent=47 // pred_check_branch
        %1892 = sbr.rel (%p1890) target = $region56
      $region55: #{_lambda_.3} parent=47 // pred_region
        %p1893 = scmp.lt.s32.totalorder %s23, 1
        %s1894 = scalar_select %p1893, %s23, 1
        %p1895 = scmp.lt.s32.totalorder %s24, 2
        %s1896 = scalar_select %p1895, %s24, 2
        %s1897 = smul.addr %s1894, 3
        %s1898 = sadd.s32 %s1896, %s1897
        %s1899 = smul.addr %s1898, 2
        %s1900 = scalar_lea.vmem %s5, %s1899
      $region56: #{_lambda_.3} parent=47 // pred_fallthru
        _
    $region48: #{_lambda_.3} parent=5 // pred_fallthru
      _
  $region6: #{_lambda_.3} parent=0 // loop_footer
    %s16 = sadd.s32 1, %s12
  $region7: #{_lambda_.3} parent=0 // loop_footer_branch
    %11 = sbr.rel target = $region3
  $region8: #{_lambda_.3} parent=0 // loop_exit
    _

// kernel: _lambda_.5
$region0: #{_lambda_.5}
  #allocation0 [shape = 'u32[]', space=smem, size = 0x4, offset = 0x4, fixed_abs, tag = 'smem constant byte address 0x4 - core index']
  #allocation1 [shape = 'u32[144,128]{1,0:T(1,128)}', space=vmem, size = 0x12000, scoped, tag = 'internal scratch']
  %s0 = inlined_call_operand.vmem [shape: f32[2,3,8,192], index: 0, kind: input, shape index: {}]
  %s1 = inlined_call_operand.vmem [shape: f32[1,192], index: 1, kind: input, shape index: {}]
  %s2 = inlined_call_operand.vmem [shape: f32[1,192], index: 2, kind: input, shape index: {}]
  %s3 = inlined_call_operand.vmem [shape: f32[2,3,8,192], index: 3, kind: output, shape index: {}]
  %s4 = sld [smem:[#allocation0]]
  $region45: #{_lambda_.5} parent=0
    _
  %s6 = ssub.s32 1, %s4
  %s7 = scalar_select 0, %s6, %s4
  loop: start=0, step=1, limit=8
  $region2: #{_lambda_.5} parent=0 // loop_pre_header
    _
  $region3: #{_lambda_.5} parent=0 // loop_header
    %s9 = sphi 0, %s13
    %p10 = scmp.ge.s32.totalorder %s9, 8
    %s16 = sphi 0, %s28
    %s17 = sphi 0, %s24
    %s18 = sphi 0, %s16
    %s19 = sphi 0, %s17
    %s20 = sphi 0, %s18
    %s21 = sphi 0, %s19
    %s33 = sphi 0, %s35
    %s36 = sphi 0, %s33
    %s37 = sphi 0, %s36
    %s53 = sphi 0, %s37
    %s57 = sphi 0, %s57
    %s59 = sphi 0, %s57
    %s60 = sphi 0, %s59
    %s74 = sphi 0, %s60
    %s78 = sphi 0, %s78
    %s80 = sphi 0, %s78
    %s81 = sphi 0, %s80
    %s95 = sphi 0, %s81
    %s103 = sphi 0, %s105
    %s106 = sphi 0, %s103
    %s107 = sphi 0, %s106
    %s123 = sphi 0, %s107
  $region4: #{_lambda_.5} parent=0 // loop_header_branch
    %12 = sbr.rel (%p10) target = $region8
  $region5: #{_lambda_.5} parent=0 // loop_body
    %s14 = ssub.s32 %s9, 1
    %s15 = ssub.s32 %s9, 2
    %s22 = sadd.s32 1, %s17
    %p23 = scmp.ge.s32.totalorder %s22, 3
    %s24 = scalar_select %p23, 0, %s22
    %s25 = sadd.s32 1, %s16
    %s26 = scalar_select %p23, %s25, %s16
    %p27 = scmp.ge.s32.totalorder %s26, 2
    %s28 = scalar_select %p27, 0, %s26
    %s29 = ssub.s32 %s16, %s28
    %s30 = ssub.s32 %s17, %s24
    %s31 = sor.u32 %s29, %s30
    %p32 = scmp.eq.s32.totalorder %s31, 0
    %s34 = sadd.s32 %s33, 1
    %s35 = scalar_select %p32, %s33, %s34
    %p38 = pneg %p32
    %p39 = scmp.eq.s32.totalorder %s9, 5
    %p40 = por %p38, %p39
    %p41 = scmp.ne.s32.totalorder %s33, %s36
    %p42 = scmp.eq.s32.totalorder %s9, 0
    %p43 = por %p41, %p42
    %p44 = scmp.ne.s32.totalorder %s33, %s36
    %p45 = scmp.eq.s32.totalorder %s14, 5
    %p46 = por %p44, %p45
    %p47 = scmp.ne.s32.totalorder %s36, %s37
    %p48 = scmp.eq.s32.totalorder %s14, 0
    %p49 = por %p47, %p48
    %p50 = scmp.ne.s32.totalorder %s36, %s37
    %p51 = scmp.eq.s32.totalorder %s15, 5
    %p52 = por %p50, %p51
    %p54 = scmp.ne.s32.totalorder %s37, %s53
    %p55 = scmp.eq.s32.totalorder %s15, 0
    %p56 = por %p54, %p55
    %s58 = sadd.s32 %s57, 1
    %p61 = scmp.eq.s32.totalorder %s9, 5
    %p62 = scmp.ne.s32.totalorder %s57, %s59
    %p63 = scmp.eq.s32.totalorder %s9, 0
    %p64 = por %p62, %p63
    %p65 = scmp.ne.s32.totalorder %s57, %s59
    %p66 = scmp.eq.s32.totalorder %s14, 5
    %p67 = por %p65, %p66
    %p68 = scmp.ne.s32.totalorder %s59, %s60
    %p69 = scmp.eq.s32.totalorder %s14, 0
    %p70 = por %p68, %p69
    %p71 = scmp.ne.s32.totalorder %s59, %s60
    %p72 = scmp.eq.s32.totalorder %s15, 5
    %p73 = por %p71, %p72
    %p75 = scmp.ne.s32.totalorder %s60, %s74
    %p76 = scmp.eq.s32.totalorder %s15, 0
    %p77 = por %p75, %p76
    %s79 = sadd.s32 %s78, 1
    %p82 = scmp.eq.s32.totalorder %s9, 5
    %p83 = scmp.ne.s32.totalorder %s78, %s80
    %p84 = scmp.eq.s32.totalorder %s9, 0
    %p85 = por %p83, %p84
    %p86 = scmp.ne.s32.totalorder %s78, %s80
    %p87 = scmp.eq.s32.totalorder %s14, 5
    %p88 = por %p86, %p87
    %p89 = scmp.ne.s32.totalorder %s80, %s81
    %p90 = scmp.eq.s32.totalorder %s14, 0
    %p91 = por %p89, %p90
    %p92 = scmp.ne.s32.totalorder %s80, %s81
    %p93 = scmp.eq.s32.totalorder %s15, 5
    %p94 = por %p92, %p93
    %p96 = scmp.ne.s32.totalorder %s81, %s95
    %p97 = scmp.eq.s32.totalorder %s15, 0
    %p98 = por %p96, %p97
    %s99 = ssub.s32 %s16, %s28
    %s100 = ssub.s32 %s17, %s24
    %s101 = sor.u32 %s99, %s100
    %p102 = scmp.eq.s32.totalorder %s101, 0
    %s104 = sadd.s32 %s103, 1
    %s105 = scalar_select %p102, %s103, %s104
    %p108 = pneg %p102
    %p109 = scmp.eq.s32.totalorder %s9, 5
    %p110 = por %p108, %p109
    %p111 = scmp.ne.s32.totalorder %s103, %s106
    %p112 = scmp.eq.s32.totalorder %s9, 0
    %p113 = por %p111, %p112
    %p114 = scmp.ne.s32.totalorder %s103, %s106
    %p115 = scmp.eq.s32.totalorder %s14, 5
    %p116 = por %p114, %p115
    %p117 = scmp.ne.s32.totalorder %s106, %s107
    %p118 = scmp.eq.s32.totalorder %s14, 0
    %p119 = por %p117, %p118
    %p120 = scmp.ne.s32.totalorder %s106, %s107
    %p121 = scmp.eq.s32.totalorder %s15, 5
    %p122 = por %p120, %p121
    %p124 = scmp.ne.s32.totalorder %s107, %s123
    %p125 = scmp.eq.s32.totalorder %s15, 0
    %p126 = por %p124, %p125
    %p127 = scmp.le.s32.totalorder 1, %s9
    %p128 = scmp.lt.s32.totalorder %s9, 7
    %p129 = pnand %p127, %p128
    %p130 = pneg %p129
    // Predicated region
    $region9: #{_lambda_.5} parent=5 // pred_check
      _
    $region10: #{_lambda_.5} parent=5 // pred_check_branch
      %132 = sbr.rel (%p129) target = $region12
    $region11: #{_lambda_.5} parent=5 // pred_region
      %s133 = ssub.s32 %s9, 1
      // Predicated region
      $region13: #{_lambda_.5} parent=11 // pred_check
        %p134 = pneg %p70
      $region14: #{_lambda_.5} parent=11 // pred_check_branch
        %136 = sbr.rel (%p134) target = $region16
      $region15: #{_lambda_.5} parent=11 // pred_region
        _
      $region16: #{_lambda_.5} parent=11 // pred_fallthru
        _
      // Predicated region
      $region17: #{_lambda_.5} parent=11 // pred_check
        %p137 = pneg %p91
      $region18: #{_lambda_.5} parent=11 // pred_check_branch
        %139 = sbr.rel (%p137) target = $region20
      $region19: #{_lambda_.5} parent=11 // pred_region
        _
      $region20: #{_lambda_.5} parent=11 // pred_fallthru
        _
    $region12: #{_lambda_.5} parent=5 // pred_fallthru
      _
    %p140 = scmp.lt.s32.totalorder %s9, 6
    // Predicated region
    $region21: #{_lambda_.5} parent=5 // pred_check
      %p141 = pneg %p140
    $region22: #{_lambda_.5} parent=5 // pred_check_branch
      %143 = sbr.rel (%p141) target = $region24
    $region23: #{_lambda_.5} parent=5 // pred_region
      // Predicated region
      $region25: #{_lambda_.5} parent=23 // pred_check
        %p144 = pneg %p43
      $region26: #{_lambda_.5} parent=23 // pred_check_branch
        %146 = sbr.rel (%p144) target = $region28
      $region27: #{_lambda_.5} parent=23 // pred_region
        %p147 = scmp.lt.s32.totalorder %s16, 1
        %s148 = scalar_select %p147, %s16, 1
        %p149 = scmp.lt.s32.totalorder %s17, 2
        %s150 = scalar_select %p149, %s17, 2
        %s151 = smul.addr %s150, 2
        %s152 = smul.addr %s148, 6
        %s153 = sadd.s32 %s151, %s152
        %s154 = smul.addr %s153, 8
        %s155 = scalar_lea.vmem %s0, %s154
      $region28: #{_lambda_.5} parent=23 // pred_fallthru
        _
    $region24: #{_lambda_.5} parent=5 // pred_fallthru
      _
    %p156 = scmp.le.s32.totalorder 1, %s9
    %p157 = scmp.lt.s32.totalorder %s9, 7
    %p158 = pnand %p156, %p157
    %p159 = pneg %p158
    // Predicated region
    $region29: #{_lambda_.5} parent=5 // pred_check
      _
    $region30: #{_lambda_.5} parent=5 // pred_check_branch
      %161 = sbr.rel (%p158) target = $region32
    $region31: #{_lambda_.5} parent=5 // pred_region
      %s162 = ssub.s32 %s9, 1
      %p163 = scmp.lt.s32.totalorder %s18, 1
      %s164 = scalar_select %p163, %s18, 1
      %p165 = scmp.lt.s32.totalorder %s19, 2
      %s166 = scalar_select %p165, %s19, 2
      %s167 = smul.addr %s166, 2
      %s168 = smul.addr %s164, 6
      %s169 = sadd.s32 %s167, %s168
      %s170 = smul.addr %s169, 8
      %s171 = scalar_lea.vmem %s0, %s170
      %p172 = pneg %p49
      %p173 = pneg %p46
      %p174 = pneg %p70
      %p175 = pneg %p67
      %p176 = pneg %p91
      %p177 = pneg %p88
      %p178 = pneg %p119
      %p179 = pneg %p116
      %p180 = scmp.lt.s32.totalorder %s18, 1
      %s181 = scalar_select %p180, %s18, 1
      %p182 = scmp.lt.s32.totalorder %s19, 2
      %s183 = scalar_select %p182, %s19, 2
      %s184 = smul.addr %s183, 2
      %s185 = smul.addr %s181, 6
      %s186 = sadd.s32 %s184, %s185
      %s187 = smul.addr %s186, 8
      %s188 = scalar_lea.vmem %s3, %s187
      %p189 = scmp.lt.s32.totalorder %s18, 1
      %s190 = scalar_select %p189, %s18, 1
      %p191 = scmp.lt.s32.totalorder %s19, 2
      %s192 = scalar_select %p191, %s19, 2
      %s193 = smul.addr %s192, 2
      %s194 = smul.addr %s190, 6
      %s195 = sadd.s32 %s193, %s194
      %s196 = smul.addr %s195, 8
      %s197 = scalar_lea.vmem %s0, %s196
      %p198 = scmp.lt.s32.totalorder %s18, 1
      %s199 = scalar_select %p198, %s18, 1
      %p200 = scmp.lt.s32.totalorder %s19, 2
      %s201 = scalar_select %p200, %s19, 2
      %s202 = smul.addr %s201, 2
      %s203 = smul.addr %s199, 6
      %s204 = sadd.s32 %s202, %s203
      %s205 = smul.addr %s204, 8
      %s206 = scalar_lea.vmem %s3, %s205
      %v207 = vld [vmem:[%s197] sm:$0xff]
      %v208 = vld [vmem:[%s197 + $0x8] sm:$0xff]
      %v209 = vld [vmem:[%s1] sm:$0x3]
      %v211 = vlaneseq
      %v212 = vshrl.u32 %v211, 7
      %v213 = vsub.s32 0, %v212
      %v214 = vrot.slane %v209, %v213
      %v215 = vlaneseq
      %v216 = vshrl.u32 %v215, 7
      %v217 = vsub.s32 1, %v216
      %v218 = vrot.slane %v209, %v217
      %v221 = vmul.f32 %v207, %v214
      %v222 = vmul.f32 %v208, %v218
      %v223 = vld [vmem:[%s2] sm:$0x3]
      %v225 = vlaneseq
      %v226 = vshrl.u32 %v225, 7
      %v227 = vsub.s32 0, %v226
      %v228 = vrot.slane %v223, %v227
      %v229 = vlaneseq
      %v230 = vshrl.u32 %v229, 7
      %v231 = vsub.s32 1, %v230
      %v232 = vrot.slane %v223, %v231
      %v235 = vadd.f32 %v221, %v228
      %v236 = vadd.f32 %v222, %v232
      %vm237 = vcmp.gt.f32.partialorder %v235, 0.0
      %vm238 = vcmp.gt.f32.partialorder %v236, 0.0
      %v239 = vmin.f32 %v235, 0.0
      %v240 = vmin.f32 %v236, 0.0
      %v241 = vmul.f32 %v239, 1.442695
      %v242 = vpow.pop %v241
      %v243 = vmul.f32 %v240, 1.442695
      %v244 = vpow.pop %v243
      %v245 = vsub.f32 %v242, 1.0
      %v246 = vsub.f32 %v244, 1.0
      %v247 = vsel %vm237, %v235, %v245
      %v248 = vsel %vm238, %v236, %v246
      %249 = vst [vmem:[%s206] sm:$0xff] %v247
      %vm250 = vcmask 523264
      %251 = vst.msk [vmem:[%s206 + $0x8] sm:$0xff] %vm250, %v248
      %p252 = scmp.lt.s32.totalorder %s18, 1
      %s253 = scalar_select %p252, %s18, 1
      %p254 = scmp.lt.s32.totalorder %s19, 2
      %s255 = scalar_select %p254, %s19, 2
      %s256 = smul.addr %s255, 2
      %s257 = smul.addr %s253, 6
      %s258 = sadd.s32 %s256, %s257
      %s259 = smul.addr %s258, 8
      %s260 = scalar_lea.vmem %s3, %s259
      // Predicated region
      $region33: #{_lambda_.5} parent=31 // pred_check
        %p261 = pneg %p116
      $region34: #{_lambda_.5} parent=31 // pred_check_branch
        %263 = sbr.rel (%p261) target = $region36
      $region35: #{_lambda_.5} parent=31 // pred_region
        _
      $region36: #{_lambda_.5} parent=31 // pred_fallthru
        _
    $region32: #{_lambda_.5} parent=5 // pred_fallthru
      _
    %p264 = scmp.le.s32.totalorder 2, %s9
    // Predicated region
    $region37: #{_lambda_.5} parent=5 // pred_check
      %p265 = pneg %p264
    $region38: #{_lambda_.5} parent=5 // pred_check_branch
      %267 = sbr.rel (%p265) target = $region40
    $region39: #{_lambda_.5} parent=5 // pred_region
      %s268 = ssub.s32 %s9, 2
      // Predicated region
      $region41: #{_lambda_.5} parent=39 // pred_check
        %p269 = pneg %p122
      $region42: #{_lambda_.5} parent=39 // pred_check_branch
        %271 = sbr.rel (%p269) target = $region44
      $region43: #{_lambda_.5} parent=39 // pred_region
        %p272 = scmp.lt.s32.totalorder %s20, 1
        %s273 = scalar_select %p272, %s20, 1
        %p274 = scmp.lt.s32.totalorder %s21, 2
        %s275 = scalar_select %p274, %s21, 2
        %s276 = smul.addr %s275, 2
        %s277 = smul.addr %s273, 6
        %s278 = sadd.s32 %s276, %s277
        %s279 = smul.addr %s278, 8
        %s280 = scalar_lea.vmem %s3, %s279
      $region44: #{_lambda_.5} parent=39 // pred_fallthru
        _
    $region40: #{_lambda_.5} parent=5 // pred_fallthru
      _
  $region6: #{_lambda_.5} parent=0 // loop_footer
    %s13 = sadd.s32 1, %s9
  $region7: #{_lambda_.5} parent=0 // loop_footer_branch
    %8 = sbr.rel target = $region3
  $region8: #{_lambda_.5} parent=0 // loop_exit
    _

// kernel: _lambda_.4
$region0: #{_lambda_.4}
  #allocation0 [shape = 'u32[]', space=smem, size = 0x4, offset = 0x4, fixed_abs, tag = 'smem constant byte address 0x4 - core index']
  #allocation1 [shape = 'u32[144,128]{1,0:T(1,128)}', space=vmem, size = 0x12000, scoped, tag = 'internal scratch']
  %s0 = inlined_call_operand.vmem [shape: f32[2,24,26,8], index: 0, kind: input, shape index: {}, may-alias: {0,1,2}]
  %s1 = inlined_call_operand.vmem [shape: f32[2,24,26,8], index: 1, kind: input, shape index: {}, may-alias: {0,1,2}]
  %s2 = inlined_call_operand.vmem [shape: f32[2,24,26,8], index: 2, kind: input, shape index: {}, may-alias: {0,1,2}]
  %s3 = inlined_call_operand.vmem [shape: f32[72,8], index: 3, kind: input, shape index: {}]
  %s4 = inlined_call_operand.vmem [shape: f32[1,8], index: 4, kind: input, shape index: {}]
  %s5 = inlined_call_operand.vmem [shape: f32[1,8], index: 5, kind: input, shape index: {}]
  %s6 = inlined_call_operand.vmem [shape: f32[2,3,192,8], index: 6, kind: output, shape index: {0}]
  %s7 = inlined_call_operand.vmem [shape: f32[2,3,2,8], index: 7, kind: output, shape index: {1}]
  %8 = xla_tuple %s6, %s7
  %s9 = sld [smem:[#allocation0]]
  $region65: #{_lambda_.4} parent=0
    _
  %s11 = ssub.s32 1, %s9
  %s12 = scalar_select 0, %s11, %s9
  loop: start=0, step=1, limit=8
  $region2: #{_lambda_.4} parent=0 // loop_pre_header
    _
  $region3: #{_lambda_.4} parent=0 // loop_header
    %s14 = sphi 0, %s18
    %p15 = scmp.ge.s32.totalorder %s14, 8
    %s21 = sphi 0, %s33
    %s22 = sphi 0, %s29
    %s23 = sphi 0, %s21
    %s24 = sphi 0, %s22
    %s25 = sphi 0, %s23
    %s26 = sphi 0, %s24
    %s46 = sphi 0, %s48
    %s49 = sphi 0, %s46
    %s50 = sphi 0, %s49
    %s66 = sphi 0, %s50
    %s74 = sphi 0, %s76
    %s77 = sphi 0, %s74
    %s78 = sphi 0, %s77
    %s94 = sphi 0, %s78
    %s110 = sphi 0, %s112
    %s113 = sphi 0, %s110
    %s114 = sphi 0, %s113
    %s130 = sphi 0, %s114
    %s134 = sphi 0, %s134
    %s136 = sphi 0, %s134
    %s137 = sphi 0, %s136
    %s151 = sphi 0, %s137
    %s155 = sphi 0, %s155
    %s157 = sphi 0, %s155
    %s158 = sphi 0, %s157
    %s172 = sphi 0, %s158
    %s176 = sphi 0, %s176
    %s178 = sphi 0, %s176
    %s179 = sphi 0, %s178
    %s193 = sphi 0, %s179
    %s201 = sphi 0, %s203
    %s204 = sphi 0, %s201
    %s205 = sphi 0, %s204
    %s221 = sphi 0, %s205
    %s229 = sphi 0, %s231
    %s232 = sphi 0, %s229
    %s233 = sphi 0, %s232
    %s249 = sphi 0, %s233
  $region4: #{_lambda_.4} parent=0 // loop_header_branch
    %17 = sbr.rel (%p15) target = $region8
  $region5: #{_lambda_.4} parent=0 // loop_body
    %s19 = ssub.s32 %s14, 1
    %s20 = ssub.s32 %s14, 2
    %s27 = sadd.s32 1, %s22
    %p28 = scmp.ge.s32.totalorder %s27, 3
    %s29 = scalar_select %p28, 0, %s27
    %s30 = sadd.s32 1, %s21
    %s31 = scalar_select %p28, %s30, %s21
    %p32 = scmp.ge.s32.totalorder %s31, 2
    %s33 = scalar_select %p32, 0, %s31
    %s34 = smul.u32 %s22, 8
    %s35 = ssub.s32 %s34, 1
    %p36 = scmp.gt.s32.totalorder %s35, 0
    %s37 = scalar_select %p36, %s35, 0
    %s38 = smul.u32 %s29, 8
    %s39 = ssub.s32 %s38, 1
    %p40 = scmp.gt.s32.totalorder %s39, 0
    %s41 = scalar_select %p40, %s39, 0
    %s42 = ssub.s32 %s21, %s33
    %s43 = ssub.s32 %s37, %s41
    %s44 = sor.u32 %s42, %s43
    %p45 = scmp.eq.s32.totalorder %s44, 0
    %s47 = sadd.s32 %s46, 1
    %s48 = scalar_select %p45, %s46, %s47
    %p51 = pneg %p45
    %p52 = scmp.eq.s32.totalorder %s14, 5
    %p53 = por %p51, %p52
    %p54 = scmp.ne.s32.totalorder %s46, %s49
    %p55 = scmp.eq.s32.totalorder %s14, 0
    %p56 = por %p54, %p55
    %p57 = scmp.ne.s32.totalorder %s46, %s49
    %p58 = scmp.eq.s32.totalorder %s19, 5
    %p59 = por %p57, %p58
    %p60 = scmp.ne.s32.totalorder %s49, %s50
    %p61 = scmp.eq.s32.totalorder %s19, 0
    %p62 = por %p60, %p61
    %p63 = scmp.ne.s32.totalorder %s49, %s50
    %p64 = scmp.eq.s32.totalorder %s20, 5
    %p65 = por %p63, %p64
    %p67 = scmp.ne.s32.totalorder %s50, %s66
    %p68 = scmp.eq.s32.totalorder %s20, 0
    %p69 = por %p67, %p68
    %s70 = ssub.s32 %s21, %s33
    %s71 = ssub.s32 %s22, %s29
    %s72 = sor.u32 %s70, %s71
    %p73 = scmp.eq.s32.totalorder %s72, 0
    %s75 = sadd.s32 %s74, 1
    %s76 = scalar_select %p73, %s74, %s75
    %p79 = pneg %p73
    %p80 = scmp.eq.s32.totalorder %s14, 5
    %p81 = por %p79, %p80
    %p82 = scmp.ne.s32.totalorder %s74, %s77
    %p83 = scmp.eq.s32.totalorder %s14, 0
    %p84 = por %p82, %p83
    %p85 = scmp.ne.s32.totalorder %s74, %s77
    %p86 = scmp.eq.s32.totalorder %s19, 5
    %p87 = por %p85, %p86
    %p88 = scmp.ne.s32.totalorder %s77, %s78
    %p89 = scmp.eq.s32.totalorder %s19, 0
    %p90 = por %p88, %p89
    %p91 = scmp.ne.s32.totalorder %s77, %s78
    %p92 = scmp.eq.s32.totalorder %s20, 5
    %p93 = por %p91, %p92
    %p95 = scmp.ne.s32.totalorder %s78, %s94
    %p96 = scmp.eq.s32.totalorder %s20, 0
    %p97 = por %p95, %p96
    %s98 = sadd.s32 %s22, 1
    %s99 = smul.u32 %s98, 8
    %p100 = scmp.lt.s32.totalorder %s99, 23
    %s101 = scalar_select %p100, %s99, 23
    %s102 = sadd.s32 %s29, 1
    %s103 = smul.u32 %s102, 8
    %p104 = scmp.lt.s32.totalorder %s103, 23
    %s105 = scalar_select %p104, %s103, 23
    %s106 = ssub.s32 %s21, %s33
    %s107 = ssub.s32 %s101, %s105
    %s108 = sor.u32 %s106, %s107
    %p109 = scmp.eq.s32.totalorder %s108, 0
    %s111 = sadd.s32 %s110, 1
    %s112 = scalar_select %p109, %s110, %s111
    %p115 = pneg %p109
    %p116 = scmp.eq.s32.totalorder %s14, 5
    %p117 = por %p115, %p116
    %p118 = scmp.ne.s32.totalorder %s110, %s113
    %p119 = scmp.eq.s32.totalorder %s14, 0
    %p120 = por %p118, %p119
    %p121 = scmp.ne.s32.totalorder %s110, %s113
    %p122 = scmp.eq.s32.totalorder %s19, 5
    %p123 = por %p121, %p122
    %p124 = scmp.ne.s32.totalorder %s113, %s114
    %p125 = scmp.eq.s32.totalorder %s19, 0
    %p126 = por %p124, %p125
    %p127 = scmp.ne.s32.totalorder %s113, %s114
    %p128 = scmp.eq.s32.totalorder %s20, 5
    %p129 = por %p127, %p128
    %p131 = scmp.ne.s32.totalorder %s114, %s130
    %p132 = scmp.eq.s32.totalorder %s20, 0
    %p133 = por %p131, %p132
    %s135 = sadd.s32 %s134, 1
    %p138 = scmp.eq.s32.totalorder %s14, 5
    %p139 = scmp.ne.s32.totalorder %s134, %s136
    %p140 = scmp.eq.s32.totalorder %s14, 0
    %p141 = por %p139, %p140
    %p142 = scmp.ne.s32.totalorder %s134, %s136
    %p143 = scmp.eq.s32.totalorder %s19, 5
    %p144 = por %p142, %p143
    %p145 = scmp.ne.s32.totalorder %s136, %s137
    %p146 = scmp.eq.s32.totalorder %s19, 0
    %p147 = por %p145, %p146
    %p148 = scmp.ne.s32.totalorder %s136, %s137
    %p149 = scmp.eq.s32.totalorder %s20, 5
    %p150 = por %p148, %p149
    %p152 = scmp.ne.s32.totalorder %s137, %s151
    %p153 = scmp.eq.s32.totalorder %s20, 0
    %p154 = por %p152, %p153
    %s156 = sadd.s32 %s155, 1
    %p159 = scmp.eq.s32.totalorder %s14, 5
    %p160 = scmp.ne.s32.totalorder %s155, %s157
    %p161 = scmp.eq.s32.totalorder %s14, 0
    %p162 = por %p160, %p161
    %p163 = scmp.ne.s32.totalorder %s155, %s157
    %p164 = scmp.eq.s32.totalorder %s19, 5
    %p165 = por %p163, %p164
    %p166 = scmp.ne.s32.totalorder %s157, %s158
    %p167 = scmp.eq.s32.totalorder %s19, 0
    %p168 = por %p166, %p167
    %p169 = scmp.ne.s32.totalorder %s157, %s158
    %p170 = scmp.eq.s32.totalorder %s20, 5
    %p171 = por %p169, %p170
    %p173 = scmp.ne.s32.totalorder %s158, %s172
    %p174 = scmp.eq.s32.totalorder %s20, 0
    %p175 = por %p173, %p174
    %s177 = sadd.s32 %s176, 1
    %p180 = scmp.eq.s32.totalorder %s14, 5
    %p181 = scmp.ne.s32.totalorder %s176, %s178
    %p182 = scmp.eq.s32.totalorder %s14, 0
    %p183 = por %p181, %p182
    %p184 = scmp.ne.s32.totalorder %s176, %s178
    %p185 = scmp.eq.s32.totalorder %s19, 5
    %p186 = por %p184, %p185
    %p187 = scmp.ne.s32.totalorder %s178, %s179
    %p188 = scmp.eq.s32.totalorder %s19, 0
    %p189 = por %p187, %p188
    %p190 = scmp.ne.s32.totalorder %s178, %s179
    %p191 = scmp.eq.s32.totalorder %s20, 5
    %p192 = por %p190, %p191
    %p194 = scmp.ne.s32.totalorder %s179, %s193
    %p195 = scmp.eq.s32.totalorder %s20, 0
    %p196 = por %p194, %p195
    %s197 = ssub.s32 %s21, %s33
    %s198 = ssub.s32 %s22, %s29
    %s199 = sor.u32 %s197, %s198
    %p200 = scmp.eq.s32.totalorder %s199, 0
    %s202 = sadd.s32 %s201, 1
    %s203 = scalar_select %p200, %s201, %s202
    %p206 = pneg %p200
    %p207 = scmp.eq.s32.totalorder %s14, 5
    %p208 = por %p206, %p207
    %p209 = scmp.ne.s32.totalorder %s201, %s204
    %p210 = scmp.eq.s32.totalorder %s14, 0
    %p211 = por %p209, %p210
    %p212 = scmp.ne.s32.totalorder %s201, %s204
    %p213 = scmp.eq.s32.totalorder %s19, 5
    %p214 = por %p212, %p213
    %p215 = scmp.ne.s32.totalorder %s204, %s205
    %p216 = scmp.eq.s32.totalorder %s19, 0
    %p217 = por %p215, %p216
    %p218 = scmp.ne.s32.totalorder %s204, %s205
    %p219 = scmp.eq.s32.totalorder %s20, 5
    %p220 = por %p218, %p219
    %p222 = scmp.ne.s32.totalorder %s205, %s221
    %p223 = scmp.eq.s32.totalorder %s20, 0
    %p224 = por %p222, %p223
    %s225 = ssub.s32 %s21, %s33
    %s226 = ssub.s32 %s22, %s29
    %s227 = sor.u32 %s225, %s226
    %p228 = scmp.eq.s32.totalorder %s227, 0
    %s230 = sadd.s32 %s229, 1
    %s231 = scalar_select %p228, %s229, %s230
    %p234 = pneg %p228
    %p235 = scmp.eq.s32.totalorder %s14, 5
    %p236 = por %p234, %p235
    %p237 = scmp.ne.s32.totalorder %s229, %s232
    %p238 = scmp.eq.s32.totalorder %s14, 0
    %p239 = por %p237, %p238
    %p240 = scmp.ne.s32.totalorder %s229, %s232
    %p241 = scmp.eq.s32.totalorder %s19, 5
    %p242 = por %p240, %p241
    %p243 = scmp.ne.s32.totalorder %s232, %s233
    %p244 = scmp.eq.s32.totalorder %s19, 0
    %p245 = por %p243, %p244
    %p246 = scmp.ne.s32.totalorder %s232, %s233
    %p247 = scmp.eq.s32.totalorder %s20, 5
    %p248 = por %p246, %p247
    %p250 = scmp.ne.s32.totalorder %s233, %s249
    %p251 = scmp.eq.s32.totalorder %s20, 0
    %p252 = por %p250, %p251
    %p253 = scmp.le.s32.totalorder 1, %s14
    %p254 = scmp.lt.s32.totalorder %s14, 7
    %p255 = pnand %p253, %p254
    %p256 = pneg %p255
    // Predicated region
    $region9: #{_lambda_.4} parent=5 // pred_check
      _
    $region10: #{_lambda_.4} parent=5 // pred_check_branch
      %258 = sbr.rel (%p255) target = $region12
    $region11: #{_lambda_.4} parent=5 // pred_region
      %s259 = ssub.s32 %s14, 1
      // Predicated region
      $region13: #{_lambda_.4} parent=11 // pred_check
        %p260 = pneg %p147
      $region14: #{_lambda_.4} parent=11 // pred_check_branch
        %262 = sbr.rel (%p260) target = $region16
      $region15: #{_lambda_.4} parent=11 // pred_region
        _
      $region16: #{_lambda_.4} parent=11 // pred_fallthru
        _
      // Predicated region
      $region17: #{_lambda_.4} parent=11 // pred_check
        %p263 = pneg %p168
      $region18: #{_lambda_.4} parent=11 // pred_check_branch
        %265 = sbr.rel (%p263) target = $region20
      $region19: #{_lambda_.4} parent=11 // pred_region
        _
      $region20: #{_lambda_.4} parent=11 // pred_fallthru
        _
      // Predicated region
      $region21: #{_lambda_.4} parent=11 // pred_check
        %p266 = pneg %p189
      $region22: #{_lambda_.4} parent=11 // pred_check_branch
        %268 = sbr.rel (%p266) target = $region24
      $region23: #{_lambda_.4} parent=11 // pred_region
        _
      $region24: #{_lambda_.4} parent=11 // pred_fallthru
        _
    $region12: #{_lambda_.4} parent=5 // pred_fallthru
      _
    %p269 = scmp.lt.s32.totalorder %s14, 6
    // Predicated region
    $region25: #{_lambda_.4} parent=5 // pred_check
      %p270 = pneg %p269
    $region26: #{_lambda_.4} parent=5 // pred_check_branch
      %272 = sbr.rel (%p270) target = $region28
    $region27: #{_lambda_.4} parent=5 // pred_region
      // Predicated region
      $region29: #{_lambda_.4} parent=27 // pred_check
        %p273 = pneg %p56
      $region30: #{_lambda_.4} parent=27 // pred_check_branch
        %275 = sbr.rel (%p273) target = $region32
      $region31: #{_lambda_.4} parent=27 // pred_region
        %s276 = smul.u32 %s22, 8
        %s277 = ssub.s32 %s276, 1
        %p278 = scmp.gt.s32.totalorder %s277, 0
        %s279 = scalar_select %p278, %s277, 0
        %p280 = scmp.lt.s32.totalorder %s21, 1
        %s281 = scalar_select %p280, %s21, 1
        %p282 = scmp.lt.s32.totalorder %s279, 23
        %s283 = scalar_select %p282, %s279, 23
        %s284 = smul.addr %s283, 4
        %s285 = smul.addr %s281, 96
        %s286 = sadd.s32 %s284, %s285
        %s287 = smul.addr %s286, 8
        %s288 = scalar_lea.vmem %s0, %s287
        %s289 = smul.u32 %s22, 8
        %s290 = ssub.s32 %s289, 1
        %p291 = scmp.gt.s32.totalorder %s290, 0
        %s292 = scalar_select %p291, %s290, 0
      $region32: #{_lambda_.4} parent=27 // pred_fallthru
        _
      // Predicated region
      $region33: #{_lambda_.4} parent=27 // pred_check
        %p293 = pneg %p84
      $region34: #{_lambda_.4} parent=27 // pred_check_branch
        %295 = sbr.rel (%p293) target = $region36
      $region35: #{_lambda_.4} parent=27 // pred_region
        %s296 = smul.u32 8, %s22
        %p297 = scmp.lt.s32.totalorder %s21, 1
        %s298 = scalar_select %p297, %s21, 1
        %p299 = scmp.lt.s32.totalorder %s296, 23
        %s300 = scalar_select %p299, %s296, 23
        %s301 = smul.addr %s300, 4
        %s302 = smul.addr %s298, 96
        %s303 = sadd.s32 %s301, %s302
        %s304 = smul.addr %s303, 8
        %s305 = scalar_lea.vmem %s1, %s304
        %s306 = smul.u32 8, %s22
      $region36: #{_lambda_.4} parent=27 // pred_fallthru
        _
      // Predicated region
      $region37: #{_lambda_.4} parent=27 // pred_check
        %p307 = pneg %p120
      $region38: #{_lambda_.4} parent=27 // pred_check_branch
        %309 = sbr.rel (%p307) target = $region40
      $region39: #{_lambda_.4} parent=27 // pred_region
        %s310 = sadd.s32 %s22, 1
        %s311 = smul.u32 %s310, 8
        %p312 = scmp.lt.s32.totalorder %s311, 23
        %s313 = scalar_select %p312, %s311, 23
        %p314 = scmp.lt.s32.totalorder %s21, 1
        %s315 = scalar_select %p314, %s21, 1
        %p316 = scmp.lt.s32.totalorder %s313, 23
        %s317 = scalar_select %p316, %s313, 23
        %s318 = smul.addr %s317, 4
        %s319 = smul.addr %s315, 96
        %s320 = sadd.s32 %s318, %s319
        %s321 = smul.addr %s320, 8
        %s322 = scalar_lea.vmem %s2, %s321
        %s323 = sadd.s32 %s22, 1
        %s324 = smul.u32 %s323, 8
        %p325 = scmp.lt.s32.totalorder %s324, 23
        %s326 = scalar_select %p325, %s324, 23
      $region40: #{_lambda_.4} parent=27 // pred_fallthru
        _
    $region28: #{_lambda_.4} parent=5 // pred_fallthru
      _
    %p327 = scmp.le.s32.totalorder 1, %s14
    %p328 = scmp.lt.s32.totalorder %s14, 7
    %p329 = pnand %p327, %p328
    %p330 = pneg %p329
    // Predicated region
    $region41: #{_lambda_.4} parent=5 // pred_check
      _
    $region42: #{_lambda_.4} parent=5 // pred_check_branch
      %332 = sbr.rel (%p329) target = $region44
    $region43: #{_lambda_.4} parent=5 // pred_region
      %s333 = ssub.s32 %s14, 1
      %s334 = smul.u32 %s24, 8
      %s335 = ssub.s32 %s334, 1
      %p336 = scmp.gt.s32.totalorder %s335, 0
      %s337 = scalar_select %p336, %s335, 0
      %p338 = scmp.lt.s32.totalorder %s23, 1
      %s339 = scalar_select %p338, %s23, 1
      %p340 = scmp.lt.s32.totalorder %s337, 23
      %s341 = scalar_select %p340, %s337, 23
      %s342 = smul.addr %s341, 4
      %s343 = smul.addr %s339, 96
      %s344 = sadd.s32 %s342, %s343
      %s345 = smul.addr %s344, 8
      %s346 = scalar_lea.vmem %s0, %s345
      %p347 = pneg %p62
      %p348 = pneg %p59
      %s349 = smul.u32 8, %s24
      %p350 = scmp.lt.s32.totalorder %s23, 1
      %s351 = scalar_select %p350, %s23, 1
      %p352 = scmp.lt.s32.totalorder %s349, 23
      %s353 = scalar_select %p352, %s349, 23
      %s354 = smul.addr %s353, 4
      %s355 = smul.addr %s351, 96
      %s356 = sadd.s32 %s354, %s355
      %s357 = smul.addr %s356, 8
      %s358 = scalar_lea.vmem %s1, %s357
      %p359 = pneg %p90
      %p360 = pneg %p87
      %s361 = sadd.s32 %s24, 1
      %s362 = smul.u32 %s361, 8
      %p363 = scmp.lt.s32.totalorder %s362, 23
      %s364 = scalar_select %p363, %s362, 23
      %p365 = scmp.lt.s32.totalorder %s23, 1
      %s366 = scalar_select %p365, %s23, 1
      %p367 = scmp.lt.s32.totalorder %s364, 23
      %s368 = scalar_select %p367, %s364, 23
      %s369 = smul.addr %s368, 4
      %s370 = smul.addr %s366, 96
      %s371 = sadd.s32 %s369, %s370
      %s372 = smul.addr %s371, 8
      %s373 = scalar_lea.vmem %s2, %s372
      %p374 = pneg %p126
      %p375 = pneg %p123
      %p376 = pneg %p147
      %p377 = pneg %p144
      %p378 = pneg %p168
      %p379 = pneg %p165
      %p380 = pneg %p189
      %p381 = pneg %p186
      %p382 = pneg %p217
      %p383 = pneg %p214
      %p384 = scmp.lt.s32.totalorder %s23, 1
      %s385 = scalar_select %p384, %s23, 1
      %p386 = scmp.lt.s32.totalorder %s24, 2
      %s387 = scalar_select %p386, %s24, 2
      %s388 = smul.addr %s387, 24
      %s389 = smul.addr %s385, 72
      %s390 = sadd.s32 %s388, %s389
      %s391 = smul.addr %s390, 8
      %s392 = scalar_lea.vmem %s6, %s391
      %p393 = pneg %p245
      %p394 = pneg %p242
      %p395 = scmp.lt.s32.totalorder %s23, 1
      %s396 = scalar_select %p395, %s23, 1
      %p397 = scmp.lt.s32.totalorder %s24, 2
      %s398 = scalar_select %p397, %s24, 2
      %s399 = smul.addr %s396, 3
      %s400 = sadd.s32 %s398, %s399
      %s401 = smul.addr %s400, 2
      %s402 = scalar_lea.vmem %s7, %s401
      %s403 = smul.u32 %s24, 8
      %s404 = ssub.s32 %s403, 1
      %p405 = scmp.gt.s32.totalorder %s404, 0
      %s406 = scalar_select %p405, %s404, 0
      %p407 = scmp.lt.s32.totalorder %s23, 1
      %s408 = scalar_select %p407, %s23, 1
      %p409 = scmp.lt.s32.totalorder %s406, 23
      %s410 = scalar_select %p409, %s406, 23
      %s411 = smul.addr %s410, 4
      %s412 = smul.addr %s408, 96
      %s413 = sadd.s32 %s411, %s412
      %s414 = smul.addr %s413, 8
      %s415 = scalar_lea.vmem %s0, %s414
      %s416 = smul.u32 %s24, 8
      %s417 = ssub.s32 %s416, 1
      %p418 = scmp.gt.s32.totalorder %s417, 0
      %s419 = scalar_select %p418, %s417, 0
      %s420 = smul.u32 8, %s24
      %p421 = scmp.lt.s32.totalorder %s23, 1
      %s422 = scalar_select %p421, %s23, 1
      %p423 = scmp.lt.s32.totalorder %s420, 23
      %s424 = scalar_select %p423, %s420, 23
      %s425 = smul.addr %s424, 4
      %s426 = smul.addr %s422, 96
      %s427 = sadd.s32 %s425, %s426
      %s428 = smul.addr %s427, 8
      %s429 = scalar_lea.vmem %s1, %s428
      %s430 = smul.u32 8, %s24
      %s431 = sadd.s32 %s24, 1
      %s432 = smul.u32 %s431, 8
      %p433 = scmp.lt.s32.totalorder %s432, 23
      %s434 = scalar_select %p433, %s432, 23
      %p435 = scmp.lt.s32.totalorder %s23, 1
      %s436 = scalar_select %p435, %s23, 1
      %p437 = scmp.lt.s32.totalorder %s434, 23
      %s438 = scalar_select %p437, %s434, 23
      %s439 = smul.addr %s438, 4
      %s440 = smul.addr %s436, 96
      %s441 = sadd.s32 %s439, %s440
      %s442 = smul.addr %s441, 8
      %s443 = scalar_lea.vmem %s2, %s442
      %s444 = sadd.s32 %s24, 1
      %s445 = smul.u32 %s444, 8
      %p446 = scmp.lt.s32.totalorder %s445, 23
      %s447 = scalar_select %p446, %s445, 23
      %p448 = scmp.lt.s32.totalorder %s23, 1
      %s449 = scalar_select %p448, %s23, 1
      %p450 = scmp.lt.s32.totalorder %s24, 2
      %s451 = scalar_select %p450, %s24, 2
      %s452 = smul.addr %s451, 24
      %s453 = smul.addr %s449, 72
      %s454 = sadd.s32 %s452, %s453
      %s455 = smul.addr %s454, 8
      %s456 = scalar_lea.vmem %s6, %s455
      %p457 = scmp.lt.s32.totalorder %s23, 1
      %s458 = scalar_select %p457, %s23, 1
      %p459 = scmp.lt.s32.totalorder %s24, 2
      %s460 = scalar_select %p459, %s24, 2
      %s461 = smul.addr %s458, 3
      %s462 = sadd.s32 %s460, %s461
      %s463 = smul.addr %s462, 2
      %s464 = scalar_lea.vmem %s7, %s463
      %v465 = vld [vmem:[%s415] sm:$0xff]
      %v466 = vld [vmem:[%s415 + $0x8] sm:$0xff]
      %v467 = vld [vmem:[%s415 + $0x10] sm:$0xff]
      %v468 = vld [vmem:[%s415 + $0x18] sm:$0x3]
      %v469 = vld [vmem:[%s429] sm:$0xff]
      %v470 = vld [vmem:[%s429 + $0x8] sm:$0xff]
      %v471 = vld [vmem:[%s429 + $0x10] sm:$0xff]
      %v472 = vld [vmem:[%s429 + $0x18] sm:$0x3]
      %v473 = vld [vmem:[%s429 + $0x20] sm:$0xff]
      %v474 = vld [vmem:[%s429 + $0x28] sm:$0xff]
      %v475 = vld [vmem:[%s429 + $0x30] sm:$0xff]
      %v476 = vld [vmem:[%s429 + $0x38] sm:$0x3]
      %v477 = vld [vmem:[%s429 + $0x40] sm:$0xff]
      %v478 = vld [vmem:[%s429 + $0x48] sm:$0xff]
      %v479 = vld [vmem:[%s429 + $0x50] sm:$0xff]
      %v480 = vld [vmem:[%s429 + $0x58] sm:$0x3]
      %v481 = vld [vmem:[%s429 + $0x60] sm:$0xff]
      %v482 = vld [vmem:[%s429 + $0x68] sm:$0xff]
      %v483 = vld [vmem:[%s429 + $0x70] sm:$0xff]
      %v484 = vld [vmem:[%s429 + $0x78] sm:$0x3]
      %v485 = vld [vmem:[%s429 + $0x80] sm:$0xff]
      %v486 = vld [vmem:[%s429 + $0x88] sm:$0xff]
      %v487 = vld [vmem:[%s429 + $0x90] sm:$0xff]
      %v488 = vld [vmem:[%s429 + $0x98] sm:$0x3]
      %v489 = vld [vmem:[%s429 + $0xa0] sm:$0xff]
      %v490 = vld [vmem:[%s429 + $0xa8] sm:$0xff]
      %v491 = vld [vmem:[%s429 + $0xb0] sm:$0xff]
      %v492 = vld [vmem:[%s429 + $0xb8] sm:$0x3]
      %v493 = vld [vmem:[%s429 + $0xc0] sm:$0xff]
      %v494 = vld [vmem:[%s429 + $0xc8] sm:$0xff]
      %v495 = vld [vmem:[%s429 + $0xd0] sm:$0xff]
      %v496 = vld [vmem:[%s429 + $0xd8] sm:$0x3]
      %v497 = vld [vmem:[%s429 + $0xe0] sm:$0xff]
      %v498 = vld [vmem:[%s429 + $0xe8] sm:$0xff]
      %v499 = vld [vmem:[%s429 + $0xf0] sm:$0xff]
      %v500 = vld [vmem:[%s429 + $0xf8] sm:$0x3]
      %v501 = vld [vmem:[%s443] sm:$0xff]
      %v502 = vld [vmem:[%s443 + $0x8] sm:$0xff]
      %v503 = vld [vmem:[%s443 + $0x10] sm:$0xff]
      %v504 = vld [vmem:[%s443 + $0x18] sm:$0x3]
      %v505 = vld [vmem:[%s4] sm:$0x1]
      %v507 = vlaneseq
      %v508 = vshrl.u32 %v507, 7
      %v509 = vsub.s32 0, %v508
      %v510 = vrot.slane %v505, %v509
      %v512 = vmul.f32 %v465, %v510
      %v513 = vmul.f32 %v466, %v510
      %v514 = vmul.f32 %v467, %v510
      %v515 = vmul.f32 %v468, %v510
      %v516 = vmul.f32 %v469, %v510
      %v517 = vmul.f32 %v470, %v510
      %v518 = vmul.f32 %v471, %v510
      %v519 = vmul.f32 %v472, %v510
      %v520 = vmul.f32 %v473, %v510
      %v521 = vmul.f32 %v474, %v510
      %v522 = vmul.f32 %v475, %v510
      %v523 = vmul.f32 %v476, %v510
      %v524 = vmul.f32 %v477, %v510
      %v525 = vmul.f32 %v478, %v510
      %v526 = vmul.f32 %v479, %v510
      %v527 = vmul.f32 %v480, %v510
      %v528 = vmul.f32 %v481, %v510
      %v529 = vmul.f32 %v482, %v510
      %v530 = vmul.f32 %v483, %v510
      %v531 = vmul.f32 %v484, %v510
      %v532 = vmul.f32 %v485, %v510
      %v533 = vmul.f32 %v486, %v510
      %v534 = vmul.f32 %v487, %v510
      %v535 = vmul.f32 %v488, %v510
      %v536 = vmul.f32 %v489, %v510
      %v537 = vmul.f32 %v490, %v510
      %v538 = vmul.f32 %v491, %v510
      %v539 = vmul.f32 %v492, %v510
      %v540 = vmul.f32 %v493, %v510
      %v541 = vmul.f32 %v494, %v510
      %v542 = vmul.f32 %v495, %v510
      %v543 = vmul.f32 %v496, %v510
      %v544 = vmul.f32 %v497, %v510
      %v545 = vmul.f32 %v498, %v510
      %v546 = vmul.f32 %v499, %v510
      %v547 = vmul.f32 %v500, %v510
      %v548 = vmul.f32 %v501, %v510
      %v549 = vmul.f32 %v502, %v510
      %v550 = vmul.f32 %v503, %v510
      %v551 = vmul.f32 %v504, %v510
      %v552 = vld [vmem:[%s5] sm:$0x1]
      %v554 = vlaneseq
      %v555 = vshrl.u32 %v554, 7
      %v556 = vsub.s32 0, %v555
      %v557 = vrot.slane %v552, %v556
      %v559 = vadd.f32 %v512, %v557
      %v560 = vadd.f32 %v513, %v557
      %v561 = vadd.f32 %v514, %v557
      %v562 = vadd.f32 %v515, %v557
      %v563 = vadd.f32 %v516, %v557
      %v564 = vadd.f32 %v517, %v557
      %v565 = vadd.f32 %v518, %v557
      %v566 = vadd.f32 %v519, %v557
      %v567 = vadd.f32 %v520, %v557
      %v568 = vadd.f32 %v521, %v557
      %v569 = vadd.f32 %v522, %v557
      %v570 = vadd.f32 %v523, %v557
      %v571 = vadd.f32 %v524, %v557
      %v572 = vadd.f32 %v525, %v557
      %v573 = vadd.f32 %v526, %v557
      %v574 = vadd.f32 %v527, %v557
      %v575 = vadd.f32 %v528, %v557
      %v576 = vadd.f32 %v529, %v557
      %v577 = vadd.f32 %v530, %v557
      %v578 = vadd.f32 %v531, %v557
      %v579 = vadd.f32 %v532, %v557
      %v580 = vadd.f32 %v533, %v557
      %v581 = vadd.f32 %v534, %v557
      %v582 = vadd.f32 %v535, %v557
      %v583 = vadd.f32 %v536, %v557
      %v584 = vadd.f32 %v537, %v557
      %v585 = vadd.f32 %v538, %v557
      %v586 = vadd.f32 %v539, %v557
      %v587 = vadd.f32 %v540, %v557
      %v588 = vadd.f32 %v541, %v557
      %v589 = vadd.f32 %v542, %v557
      %v590 = vadd.f32 %v543, %v557
      %v591 = vadd.f32 %v544, %v557
      %v592 = vadd.f32 %v545, %v557
      %v593 = vadd.f32 %v546, %v557
      %v594 = vadd.f32 %v547, %v557
      %v595 = vadd.f32 %v548, %v557
      %v596 = vadd.f32 %v549, %v557
      %v597 = vadd.f32 %v550, %v557
      %v598 = vadd.f32 %v551, %v557
      %vm599 = vcmp.gt.f32.partialorder %v559, 0.0
      %vm600 = vcmp.gt.f32.partialorder %v560, 0.0
      %vm601 = vcmp.gt.f32.partialorder %v561, 0.0
      %vm602 = vcmp.gt.f32.partialorder %v562, 0.0
      %vm603 = vcmp.gt.f32.partialorder %v563, 0.0
      %vm604 = vcmp.gt.f32.partialorder %v564, 0.0
      %vm605 = vcmp.gt.f32.partialorder %v565, 0.0
      %vm606 = vcmp.gt.f32.partialorder %v566, 0.0
      %vm607 = vcmp.gt.f32.partialorder %v567, 0.0
      %vm608 = vcmp.gt.f32.partialorder %v568, 0.0
      %vm609 = vcmp.gt.f32.partialorder %v569, 0.0
      %vm610 = vcmp.gt.f32.partialorder %v570, 0.0
      %vm611 = vcmp.gt.f32.partialorder %v571, 0.0
      %vm612 = vcmp.gt.f32.partialorder %v572, 0.0
      %vm613 = vcmp.gt.f32.partialorder %v573, 0.0
      %vm614 = vcmp.gt.f32.partialorder %v574, 0.0
      %vm615 = vcmp.gt.f32.partialorder %v575, 0.0
      %vm616 = vcmp.gt.f32.partialorder %v576, 0.0
      %vm617 = vcmp.gt.f32.partialorder %v577, 0.0
      %vm618 = vcmp.gt.f32.partialorder %v578, 0.0
      %vm619 = vcmp.gt.f32.partialorder %v579, 0.0
      %vm620 = vcmp.gt.f32.partialorder %v580, 0.0
      %vm621 = vcmp.gt.f32.partialorder %v581, 0.0
      %vm622 = vcmp.gt.f32.partialorder %v582, 0.0
      %vm623 = vcmp.gt.f32.partialorder %v583, 0.0
      %vm624 = vcmp.gt.f32.partialorder %v584, 0.0
      %vm625 = vcmp.gt.f32.partialorder %v585, 0.0
      %vm626 = vcmp.gt.f32.partialorder %v586, 0.0
      %vm627 = vcmp.gt.f32.partialorder %v587, 0.0
      %vm628 = vcmp.gt.f32.partialorder %v588, 0.0
      %vm629 = vcmp.gt.f32.partialorder %v589, 0.0
      %vm630 = vcmp.gt.f32.partialorder %v590, 0.0
      %vm631 = vcmp.gt.f32.partialorder %v591, 0.0
      %vm632 = vcmp.gt.f32.partialorder %v592, 0.0
      %vm633 = vcmp.gt.f32.partialorder %v593, 0.0
      %vm634 = vcmp.gt.f32.partialorder %v594, 0.0
      %vm635 = vcmp.gt.f32.partialorder %v595, 0.0
      %vm636 = vcmp.gt.f32.partialorder %v596, 0.0
      %vm637 = vcmp.gt.f32.partialorder %v597, 0.0
      %vm638 = vcmp.gt.f32.partialorder %v598, 0.0
      %v639 = vmin.f32 %v559, 0.0
      %v640 = vmin.f32 %v560, 0.0
      %v641 = vmin.f32 %v561, 0.0
      %v642 = vmin.f32 %v562, 0.0
      %v643 = vmin.f32 %v563, 0.0
      %v644 = vmin.f32 %v564, 0.0
      %v645 = vmin.f32 %v565, 0.0
      %v646 = vmin.f32 %v566, 0.0
      %v647 = vmin.f32 %v567, 0.0
      %v648 = vmin.f32 %v568, 0.0
      %v649 = vmin.f32 %v569, 0.0
      %v650 = vmin.f32 %v570, 0.0
      %v651 = vmin.f32 %v571, 0.0
      %v652 = vmin.f32 %v572, 0.0
      %v653 = vmin.f32 %v573, 0.0
      %v654 = vmin.f32 %v574, 0.0
      %v655 = vmin.f32 %v575, 0.0
      %v656 = vmin.f32 %v576, 0.0
      %v657 = vmin.f32 %v577, 0.0
      %v658 = vmin.f32 %v578, 0.0
      %v659 = vmin.f32 %v579, 0.0
      %v660 = vmin.f32 %v580, 0.0
      %v661 = vmin.f32 %v581, 0.0
      %v662 = vmin.f32 %v582, 0.0
      %v663 = vmin.f32 %v583, 0.0
      %v664 = vmin.f32 %v584, 0.0
      %v665 = vmin.f32 %v585, 0.0
      %v666 = vmin.f32 %v586, 0.0
      %v667 = vmin.f32 %v587, 0.0
      %v668 = vmin.f32 %v588, 0.0
      %v669 = vmin.f32 %v589, 0.0
      %v670 = vmin.f32 %v590, 0.0
      %v671 = vmin.f32 %v591, 0.0
      %v672 = vmin.f32 %v592, 0.0
      %v673 = vmin.f32 %v593, 0.0
      %v674 = vmin.f32 %v594, 0.0
      %v675 = vmin.f32 %v595, 0.0
      %v676 = vmin.f32 %v596, 0.0
      %v677 = vmin.f32 %v597, 0.0
      %v678 = vmin.f32 %v598, 0.0
      %v679 = vmul.f32 %v639, 1.442695
      %v680 = vpow.pop %v679
      %v681 = vmul.f32 %v640, 1.442695
      %v682 = vpow.pop %v681
      %v683 = vmul.f32 %v641, 1.442695
      %v684 = vpow.pop %v683
      %v685 = vmul.f32 %v642, 1.442695
      %v686 = vpow.pop %v685
      %v687 = vmul.f32 %v643, 1.442695
      %v688 = vpow.pop %v687
      %v689 = vmul.f32 %v644, 1.442695
      %v690 = vpow.pop %v689
      %v691 = vmul.f32 %v645, 1.442695
      %v692 = vpow.pop %v691
      %v693 = vmul.f32 %v646, 1.442695
      %v694 = vpow.pop %v693
      %v695 = vmul.f32 %v647, 1.442695
      %v696 = vpow.pop %v695
      %v697 = vmul.f32 %v648, 1.442695
      %v698 = vpow.pop %v697
      %v699 = vmul.f32 %v649, 1.442695
      %v700 = vpow.pop %v699
      %v701 = vmul.f32 %v650, 1.442695
      %v702 = vpow.pop %v701
      %v703 = vmul.f32 %v651, 1.442695
      %v704 = vpow.pop %v703
      %v705 = vmul.f32 %v652, 1.442695
      %v706 = vpow.pop %v705
      %v707 = vmul.f32 %v653, 1.442695
      %v708 = vpow.pop %v707
      %v709 = vmul.f32 %v654, 1.442695
      %v710 = vpow.pop %v709
      %v711 = vmul.f32 %v655, 1.442695
      %v712 = vpow.pop %v711
      %v713 = vmul.f32 %v656, 1.442695
      %v714 = vpow.pop %v713
      %v715 = vmul.f32 %v657, 1.442695
      %v716 = vpow.pop %v715
      %v717 = vmul.f32 %v658, 1.442695
      %v718 = vpow.pop %v717
      %v719 = vmul.f32 %v659, 1.442695
      %v720 = vpow.pop %v719
      %v721 = vmul.f32 %v660, 1.442695
      %v722 = vpow.pop %v721
      %v723 = vmul.f32 %v661, 1.442695
      %v724 = vpow.pop %v723
      %v725 = vmul.f32 %v662, 1.442695
      %v726 = vpow.pop %v725
      %v727 = vmul.f32 %v663, 1.442695
      %v728 = vpow.pop %v727
      %v729 = vmul.f32 %v664, 1.442695
      %v730 = vpow.pop %v729
      %v731 = vmul.f32 %v665, 1.442695
      %v732 = vpow.pop %v731
      %v733 = vmul.f32 %v666, 1.442695
      %v734 = vpow.pop %v733
      %v735 = vmul.f32 %v667, 1.442695
      %v736 = vpow.pop %v735
      %v737 = vmul.f32 %v668, 1.442695
      %v738 = vpow.pop %v737
      %v739 = vmul.f32 %v669, 1.442695
      %v740 = vpow.pop %v739
      %v741 = vmul.f32 %v670, 1.442695
      %v742 = vpow.pop %v741
      %v743 = vmul.f32 %v671, 1.442695
      %v744 = vpow.pop %v743
      %v745 = vmul.f32 %v672, 1.442695
      %v746 = vpow.pop %v745
      %v747 = vmul.f32 %v673, 1.442695
      %v748 = vpow.pop %v747
      %v749 = vmul.f32 %v674, 1.442695
      %v750 = vpow.pop %v749
      %v751 = vmul.f32 %v675, 1.442695
      %v752 = vpow.pop %v751
      %v753 = vmul.f32 %v676, 1.442695
      %v754 = vpow.pop %v753
      %v755 = vmul.f32 %v677, 1.442695
      %v756 = vpow.pop %v755
      %v757 = vmul.f32 %v678, 1.442695
      %v758 = vpow.pop %v757
      %v759 = vsub.f32 %v680, 1.0
      %v760 = vsub.f32 %v682, 1.0
      %v761 = vsub.f32 %v684, 1.0
      %v762 = vsub.f32 %v686, 1.0
      %v763 = vsub.f32 %v688, 1.0
      %v764 = vsub.f32 %v690, 1.0
      %v765 = vsub.f32 %v692, 1.0
      %v766 = vsub.f32 %v694, 1.0
      %v767 = vsub.f32 %v696, 1.0
      %v768 = vsub.f32 %v698, 1.0
      %v769 = vsub.f32 %v700, 1.0
      %v770 = vsub.f32 %v702, 1.0
      %v771 = vsub.f32 %v704, 1.0
      %v772 = vsub.f32 %v706, 1.0
      %v773 = vsub.f32 %v708, 1.0
      %v774 = vsub.f32 %v710, 1.0
      %v775 = vsub.f32 %v712, 1.0
      %v776 = vsub.f32 %v714, 1.0
      %v777 = vsub.f32 %v716, 1.0
      %v778 = vsub.f32 %v718, 1.0
      %v779 = vsub.f32 %v720, 1.0
      %v780 = vsub.f32 %v722, 1.0
      %v781 = vsub.f32 %v724, 1.0
      %v782 = vsub.f32 %v726, 1.0
      %v783 = vsub.f32 %v728, 1.0
      %v784 = vsub.f32 %v730, 1.0
      %v785 = vsub.f32 %v732, 1.0
      %v786 = vsub.f32 %v734, 1.0
      %v787 = vsub.f32 %v736, 1.0
      %v788 = vsub.f32 %v738, 1.0
      %v789 = vsub.f32 %v740, 1.0
      %v790 = vsub.f32 %v742, 1.0
      %v791 = vsub.f32 %v744, 1.0
      %v792 = vsub.f32 %v746, 1.0
      %v793 = vsub.f32 %v748, 1.0
      %v794 = vsub.f32 %v750, 1.0
      %v795 = vsub.f32 %v752, 1.0
      %v796 = vsub.f32 %v754, 1.0
      %v797 = vsub.f32 %v756, 1.0
      %v798 = vsub.f32 %v758, 1.0
      %v799 = vsel %vm599, %v559, %v759
      %v800 = vsel %vm600, %v560, %v760
      %v801 = vsel %vm601, %v561, %v761
      %v802 = vsel %vm602, %v562, %v762
      %v803 = vsel %vm603, %v563, %v763
      %v804 = vsel %vm604, %v564, %v764
      %v805 = vsel %vm605, %v565, %v765
      %v806 = vsel %vm606, %v566, %v766
      %v807 = vsel %vm607, %v567, %v767
      %v808 = vsel %vm608, %v568, %v768
      %v809 = vsel %vm609, %v569, %v769
      %v810 = vsel %vm610, %v570, %v770
      %v811 = vsel %vm611, %v571, %v771
      %v812 = vsel %vm612, %v572, %v772
      %v813 = vsel %vm613, %v573, %v773
      %v814 = vsel %vm614, %v574, %v774
      %v815 = vsel %vm615, %v575, %v775
      %v816 = vsel %vm616, %v576, %v776
      %v817 = vsel %vm617, %v577, %v777
      %v818 = vsel %vm618, %v578, %v778
      %v819 = vsel %vm619, %v579, %v779
      %v820 = vsel %vm620, %v580, %v780
      %v821 = vsel %vm621, %v581, %v781
      %v822 = vsel %vm622, %v582, %v782
      %v823 = vsel %vm623, %v583, %v783
      %v824 = vsel %vm624, %v584, %v784
      %v825 = vsel %vm625, %v585, %v785
      %v826 = vsel %vm626, %v586, %v786
      %v827 = vsel %vm627, %v587, %v787
      %v828 = vsel %vm628, %v588, %v788
      %v829 = vsel %vm629, %v589, %v789
      %v830 = vsel %vm630, %v590, %v790
      %v831 = vsel %vm631, %v591, %v791
      %v832 = vsel %vm632, %v592, %v792
      %v833 = vsel %vm633, %v593, %v793
      %v834 = vsel %vm634, %v594, %v794
      %v835 = vsel %vm635, %v595, %v795
      %v836 = vsel %vm636, %v596, %v796
      %v837 = vsel %vm637, %v597, %v797
      %v838 = vsel %vm638, %v598, %v798
      %v839 = vlaneseq
      %v840 = vshrl.u32 %v839, 7
      %v841 = vadd.s32 %v840, 8
      %v842 = vadd.s32 %v840, 16
      %v843 = vadd.s32 %v840, 24
      %p844 = scmp.gt.s32.totalorder %s24, 0
      %s845 = scalar_select %p844, 1, 0
      %v846 = vstv %s845
      %vm847 = vcmp.eq.s32.totalorder %v846, 1
      %p848 = scmp.lt.s32.totalorder %s24, 2
      %s849 = scalar_select %p848, 1, 0
      %v850 = vstv %s849
      %vm851 = vcmp.eq.s32.totalorder %v850, 1
      %vm852 = vcmp.gt.s32.totalorder %v840, 0
      %vm853 = vcmp.gt.s32.totalorder %v841, 0
      %vm854 = vcmp.gt.s32.totalorder %v842, 0
      %vm855 = vcmp.gt.s32.totalorder %v843, 0
      %v856 = vsel %vm847, 1, 0
      %v857 = vsel %vm851, 1, 0
      %vm858 = vcmp.eq.s32.totalorder %v856, 1
      %vm859 = vcmp.eq.s32.totalorder %v857, 1
      %v860 = vsel %vm852, 1, 0
      %v861 = vsel %vm853, 1, 0
      %v862 = vsel %vm854, 1, 0
      %v863 = vsel %vm855, 1, 0
      %vm864 = vcmp.eq.s32.totalorder %v860, 1
      %vm865 = vcmp.eq.s32.totalorder %v861, 1
      %vm866 = vcmp.eq.s32.totalorder %v862, 1
      %vm867 = vcmp.eq.s32.totalorder %v863, 1
      %vm868 = vmand %vm858, %vm864
      %vm869 = vmand %vm858, %vm865
      %vm870 = vmand %vm858, %vm866
      %vm871 = vmand %vm858, %vm867
      %vm872 = vmand 1, %vm864
      %vm873 = vmand 1, %vm865
      %vm874 = vmand 1, %vm866
      %vm875 = vmand 1, %vm867
      %vm876 = vmand %vm859, %vm864
      %vm877 = vmand %vm859, %vm865
      %vm878 = vmand %vm859, %vm866
      %vm879 = vmand %vm859, %vm867
      %vm880 = vcmp.lt.s32.totalorder %v840, 25
      %vm881 = vcmp.lt.s32.totalorder %v841, 25
      %vm882 = vcmp.lt.s32.totalorder %v842, 25
      %vm883 = vcmp.lt.s32.totalorder %v843, 25
      %v884 = vsel %vm880, 1, 0
      %v885 = vsel %vm881, 1, 0
      %v886 = vsel %vm882, 1, 0
      %v887 = vsel %vm883, 1, 0
      %vm888 = vcmp.eq.s32.totalorder %v884, 1
      %vm889 = vcmp.eq.s32.totalorder %v885, 1
      %vm890 = vcmp.eq.s32.totalorder %v886, 1
      %vm891 = vcmp.eq.s32.totalorder %v887, 1
      %vm892 = vmand %vm868, %vm888
      %vm893 = vmand %vm869, %vm889
      %vm894 = vmand %vm870, %vm890
      %vm895 = vmand %vm871, %vm891
      %vm896 = vmand %vm872, %vm888
      %vm897 = vmand %vm873, %vm889
      %vm898 = vmand %vm874, %vm890
      %vm899 = vmand %vm875, %vm891
      %vm900 = vmand %vm876, %vm888
      %vm901 = vmand %vm877, %vm889
      %vm902 = vmand %vm878, %vm890
      %vm903 = vmand %vm879, %vm891
      %v904 = vsel %vm892, 1, 0
      %v905 = vsel %vm893, 1, 0
      %v906 = vsel %vm894, 1, 0
      %v907 = vsel %vm895, 1, 0
      %v908 = vsel %vm896, 1, 0
      %v909 = vsel %vm897, 1, 0
      %v910 = vsel %vm898, 1, 0
      %v911 = vsel %vm899, 1, 0
      %v912 = vsel %vm900, 1, 0
      %v913 = vsel %vm901, 1, 0
      %v914 = vsel %vm902, 1, 0
      %v915 = vsel %vm903, 1, 0
      %vm916 = vcmp.eq.s32.totalorder %v904, 1
      %vm917 = vcmp.eq.s32.totalorder %v905, 1
      %vm918 = vcmp.eq.s32.totalorder %v906, 1
      %vm919 = vcmp.eq.s32.totalorder %v907, 1
      %vm920 = vcmp.eq.s32.totalorder %v908, 1
      %vm921 = vcmp.eq.s32.totalorder %v909, 1
      %vm922 = vcmp.eq.s32.totalorder %v910, 1
      %vm923 = vcmp.eq.s32.totalorder %v911, 1
      %vm924 = vcmp.eq.s32.totalorder %v912, 1
      %vm925 = vcmp.eq.s32.totalorder %v913, 1
      %vm926 = vcmp.eq.s32.totalorder %v914, 1
      %vm927 = vcmp.eq.s32.totalorder %v915, 1
      %v928 = vsel %vm916, %v799, 0.0
      %v929 = vsel %vm917, %v800, 0.0
      %v930 = vsel %vm918, %v801, 0.0
      %v931 = vsel %vm919, %v802, 0.0
      %v932 = vsel %vm920, %v803, 0.0
      %v933 = vsel %vm921, %v804, 0.0
      %v934 = vsel %vm922, %v805, 0.0
      %v935 = vsel %vm923, %v806, 0.0
      %v936 = vsel %vm920, %v807, 0.0
      %v937 = vsel %vm921, %v808, 0.0
      %v938 = vsel %vm922, %v809, 0.0
      %v939 = vsel %vm923, %v810, 0.0
      %v940 = vsel %vm920, %v811, 0.0
      %v941 = vsel %vm921, %v812, 0.0
      %v942 = vsel %vm922, %v813, 0.0
      %v943 = vsel %vm923, %v814, 0.0
      %v944 = vsel %vm920, %v815, 0.0
      %v945 = vsel %vm921, %v816, 0.0
      %v946 = vsel %vm922, %v817, 0.0
      %v947 = vsel %vm923, %v818, 0.0
      %v948 = vsel %vm920, %v819, 0.0
      %v949 = vsel %vm921, %v820, 0.0
      %v950 = vsel %vm922, %v821, 0.0
      %v951 = vsel %vm923, %v822, 0.0
      %v952 = vsel %vm920, %v823, 0.0
      %v953 = vsel %vm921, %v824, 0.0
      %v954 = vsel %vm922, %v825, 0.0
      %v955 = vsel %vm923, %v826, 0.0
      %v956 = vsel %vm920, %v827, 0.0
      %v957 = vsel %vm921, %v828, 0.0
      %v958 = vsel %vm922, %v829, 0.0
      %v959 = vsel %vm923, %v830, 0.0
      %v960 = vsel %vm920, %v831, 0.0
      %v961 = vsel %vm921, %v832, 0.0
      %v962 = vsel %vm922, %v833, 0.0
      %v963 = vsel %vm923, %v834, 0.0
      %v964 = vsel %vm924, %v835, 0.0
      %v965 = vsel %vm925, %v836, 0.0
      %v966 = vsel %vm926, %v837, 0.0
      %v967 = vsel %vm927, %v838, 0.0
      %vm1000 = vcmask 1046528
      %v1001 = vrot.slane %v928, 1
      %v1002 = vrot.slane %v929, 1
      %v1003 = vsel %vm1000, %v1001, %v1002
      %v1004 = vrot.slane %v930, 1
      %v1005 = vsel %vm1000, %v1002, %v1004
      %v1006 = vrot.slane %v931, 1
      %v1007 = vsel %vm1000, %v1004, %v1006
      %v1008 = vrot.slane %v932, 1
      %v1009 = vrot.slane %v933, 1
      %v1010 = vsel %vm1000, %v1008, %v1009
      %v1011 = vrot.slane %v934, 1
      %v1012 = vsel %vm1000, %v1009, %v1011
      %v1013 = vrot.slane %v935, 1
      %v1014 = vsel %vm1000, %v1011, %v1013
      %v1015 = vrot.slane %v936, 1
      %v1016 = vrot.slane %v937, 1
      %v1017 = vsel %vm1000, %v1015, %v1016
      %v1018 = vrot.slane %v938, 1
      %v1019 = vsel %vm1000, %v1016, %v1018
      %v1020 = vrot.slane %v939, 1
      %v1021 = vsel %vm1000, %v1018, %v1020
      %v1022 = vrot.slane %v940, 1
      %v1023 = vrot.slane %v941, 1
      %v1024 = vsel %vm1000, %v1022, %v1023
      %v1025 = vrot.slane %v942, 1
      %v1026 = vsel %vm1000, %v1023, %v1025
      %v1027 = vrot.slane %v943, 1
      %v1028 = vsel %vm1000, %v1025, %v1027
      %v1029 = vrot.slane %v944, 1
      %v1030 = vrot.slane %v945, 1
      %v1031 = vsel %vm1000, %v1029, %v1030
      %v1032 = vrot.slane %v946, 1
      %v1033 = vsel %vm1000, %v1030, %v1032
      %v1034 = vrot.slane %v947, 1
      %v1035 = vsel %vm1000, %v1032, %v1034
      %v1036 = vrot.slane %v948, 1
      %v1037 = vrot.slane %v949, 1
      %v1038 = vsel %vm1000, %v1036, %v1037
      %v1039 = vrot.slane %v950, 1
      %v1040 = vsel %vm1000, %v1037, %v1039
      %v1041 = vrot.slane %v951, 1
      %v1042 = vsel %vm1000, %v1039, %v1041
      %v1043 = vrot.slane %v952, 1
      %v1044 = vrot.slane %v953, 1
      %v1045 = vsel %vm1000, %v1043, %v1044
      %v1046 = vrot.slane %v954, 1
      %v1047 = vsel %vm1000, %v1044, %v1046
      %v1048 = vrot.slane %v955, 1
      %v1049 = vsel %vm1000, %v1046, %v1048
      %v1050 = vrot.slane %v956, 1
      %v1051 = vrot.slane %v957, 1
      %v1052 = vsel %vm1000, %v1050, %v1051
      %v1053 = vrot.slane %v958, 1
      %v1054 = vsel %vm1000, %v1051, %v1053
      %v1055 = vrot.slane %v959, 1
      %v1056 = vsel %vm1000, %v1053, %v1055
      %vm1057 = vcmask 1045504
      %v1058 = vrot.slane %v928, 2
      %v1059 = vrot.slane %v929, 2
      %v1060 = vsel %vm1057, %v1058, %v1059
      %v1061 = vrot.slane %v930, 2
      %v1062 = vsel %vm1057, %v1059, %v1061
      %v1063 = vrot.slane %v931, 2
      %v1064 = vsel %vm1057, %v1061, %v1063
      %v1065 = vrot.slane %v932, 2
      %v1066 = vrot.slane %v933, 2
      %v1067 = vsel %vm1057, %v1065, %v1066
      %v1068 = vrot.slane %v934, 2
      %v1069 = vsel %vm1057, %v1066, %v1068
      %v1070 = vrot.slane %v935, 2
      %v1071 = vsel %vm1057, %v1068, %v1070
      %v1072 = vrot.slane %v936, 2
      %v1073 = vrot.slane %v937, 2
      %v1074 = vsel %vm1057, %v1072, %v1073
      %v1075 = vrot.slane %v938, 2
      %v1076 = vsel %vm1057, %v1073, %v1075
      %v1077 = vrot.slane %v939, 2
      %v1078 = vsel %vm1057, %v1075, %v1077
      %v1079 = vrot.slane %v940, 2
      %v1080 = vrot.slane %v941, 2
      %v1081 = vsel %vm1057, %v1079, %v1080
      %v1082 = vrot.slane %v942, 2
      %v1083 = vsel %vm1057, %v1080, %v1082
      %v1084 = vrot.slane %v943, 2
      %v1085 = vsel %vm1057, %v1082, %v1084
      %v1086 = vrot.slane %v944, 2
      %v1087 = vrot.slane %v945, 2
      %v1088 = vsel %vm1057, %v1086, %v1087
      %v1089 = vrot.slane %v946, 2
      %v1090 = vsel %vm1057, %v1087, %v1089
      %v1091 = vrot.slane %v947, 2
      %v1092 = vsel %vm1057, %v1089, %v1091
      %v1093 = vrot.slane %v948, 2
      %v1094 = vrot.slane %v949, 2
      %v1095 = vsel %vm1057, %v1093, %v1094
      %v1096 = vrot.slane %v950, 2
      %v1097 = vsel %vm1057, %v1094, %v1096
      %v1098 = vrot.slane %v951, 2
      %v1099 = vsel %vm1057, %v1096, %v1098
      %v1100 = vrot.slane %v952, 2
      %v1101 = vrot.slane %v953, 2
      %v1102 = vsel %vm1057, %v1100, %v1101
      %v1103 = vrot.slane %v954, 2
      %v1104 = vsel %vm1057, %v1101, %v1103
      %v1105 = vrot.slane %v955, 2
      %v1106 = vsel %vm1057, %v1103, %v1105
      %v1107 = vrot.slane %v956, 2
      %v1108 = vrot.slane %v957, 2
      %v1109 = vsel %vm1057, %v1107, %v1108
      %v1110 = vrot.slane %v958, 2
      %v1111 = vsel %vm1057, %v1108, %v1110
      %v1112 = vrot.slane %v959, 2
      %v1113 = vsel %vm1057, %v1110, %v1112
      %v1118 = vrot.slane %v960, 1
      %v1119 = vrot.slane %v961, 1
      %v1120 = vsel %vm1000, %v1118, %v1119
      %v1121 = vrot.slane %v962, 1
      %v1122 = vsel %vm1000, %v1119, %v1121
      %v1123 = vrot.slane %v963, 1
      %v1124 = vsel %vm1000, %v1121, %v1123
      %v1125 = vrot.slane %v960, 2
      %v1126 = vrot.slane %v961, 2
      %v1127 = vsel %vm1057, %v1125, %v1126
      %v1128 = vrot.slane %v962, 2
      %v1129 = vsel %vm1057, %v1126, %v1128
      %v1130 = vrot.slane %v963, 2
      %v1131 = vsel %vm1057, %v1128, %v1130
      %v1136 = vrot.slane %v964, 1
      %v1137 = vrot.slane %v965, 1
      %v1138 = vsel %vm1000, %v1136, %v1137
      %v1139 = vrot.slane %v966, 1
      %v1140 = vsel %vm1000, %v1137, %v1139
      %v1141 = vrot.slane %v967, 1
      %v1142 = vsel %vm1000, %v1139, %v1141
      %v1143 = vrot.slane %v964, 2
      %v1144 = vrot.slane %v965, 2
      %v1145 = vsel %vm1057, %v1143, %v1144
      %v1146 = vrot.slane %v966, 2
      %v1147 = vsel %vm1057, %v1144, %v1146
      %v1148 = vrot.slane %v967, 2
      %v1149 = vsel %vm1057, %v1146, %v1148
      %1150 = vrot.lane.b32.xlu0 %v1003, 8
      %v1151 = vpop.permute.xlu0 %1150
      %1152 = vrot.lane.b32.xlu0 %v1005, 8
      %v1153 = vpop.permute.xlu0 %1152
      %1154 = vrot.lane.b32.xlu0 %v1007, 8
      %v1155 = vpop.permute.xlu0 %1154
      %1156 = vrot.lane.b32.xlu0 %v1010, 8
      %v1157 = vpop.permute.xlu0 %1156
      %1158 = vrot.lane.b32.xlu0 %v1012, 8
      %v1159 = vpop.permute.xlu0 %1158
      %1160 = vrot.lane.b32.xlu0 %v1014, 8
      %v1161 = vpop.permute.xlu0 %1160
      %1162 = vrot.lane.b32.xlu0 %v1017, 8
      %v1163 = vpop.permute.xlu0 %1162
      %1164 = vrot.lane.b32.xlu0 %v1019, 8
      %v1165 = vpop.permute.xlu0 %1164
      %1166 = vrot.lane.b32.xlu0 %v1021, 8
      %v1167 = vpop.permute.xlu0 %1166
      %1168 = vrot.lane.b32.xlu0 %v1024, 8
      %v1169 = vpop.permute.xlu0 %1168
      %1170 = vrot.lane.b32.xlu0 %v1026, 8
      %v1171 = vpop.permute.xlu0 %1170
      %1172 = vrot.lane.b32.xlu0 %v1028, 8
      %v1173 = vpop.permute.xlu0 %1172
      %1174 = vrot.lane.b32.xlu0 %v1031, 8
      %v1175 = vpop.permute.xlu0 %1174
      %1176 = vrot.lane.b32.xlu0 %v1033, 8
      %v1177 = vpop.permute.xlu0 %1176
      %1178 = vrot.lane.b32.xlu0 %v1035, 8
      %v1179 = vpop.permute.xlu0 %1178
      %1180 = vrot.lane.b32.xlu0 %v1038, 8
      %v1181 = vpop.permute.xlu0 %1180
      %1182 = vrot.lane.b32.xlu0 %v1040, 8
      %v1183 = vpop.permute.xlu0 %1182
      %1184 = vrot.lane.b32.xlu0 %v1042, 8
      %v1185 = vpop.permute.xlu0 %1184
      %1186 = vrot.lane.b32.xlu0 %v1045, 8
      %v1187 = vpop.permute.xlu0 %1186
      %1188 = vrot.lane.b32.xlu0 %v1047, 8
      %v1189 = vpop.permute.xlu0 %1188
      %1190 = vrot.lane.b32.xlu0 %v1049, 8
      %v1191 = vpop.permute.xlu0 %1190
      %1192 = vrot.lane.b32.xlu0 %v1052, 8
      %v1193 = vpop.permute.xlu0 %1192
      %1194 = vrot.lane.b32.xlu0 %v1054, 8
      %v1195 = vpop.permute.xlu0 %1194
      %1196 = vrot.lane.b32.xlu0 %v1056, 8
      %v1197 = vpop.permute.xlu0 %1196
      %1222 = vrot.lane.b32.xlu0 %v1060, 16
      %v1223 = vpop.permute.xlu0 %1222
      %1224 = vrot.lane.b32.xlu0 %v1062, 16
      %v1225 = vpop.permute.xlu0 %1224
      %1226 = vrot.lane.b32.xlu0 %v1064, 16
      %v1227 = vpop.permute.xlu0 %1226
      %1228 = vrot.lane.b32.xlu0 %v1067, 16
      %v1229 = vpop.permute.xlu0 %1228
      %1230 = vrot.lane.b32.xlu0 %v1069, 16
      %v1231 = vpop.permute.xlu0 %1230
      %1232 = vrot.lane.b32.xlu0 %v1071, 16
      %v1233 = vpop.permute.xlu0 %1232
      %1234 = vrot.lane.b32.xlu0 %v1074, 16
      %v1235 = vpop.permute.xlu0 %1234
      %1236 = vrot.lane.b32.xlu0 %v1076, 16
      %v1237 = vpop.permute.xlu0 %1236
      %1238 = vrot.lane.b32.xlu0 %v1078, 16
      %v1239 = vpop.permute.xlu0 %1238
      %1240 = vrot.lane.b32.xlu0 %v1081, 16
      %v1241 = vpop.permute.xlu0 %1240
      %1242 = vrot.lane.b32.xlu0 %v1083, 16
      %v1243 = vpop.permute.xlu0 %1242
      %1244 = vrot.lane.b32.xlu0 %v1085, 16
      %v1245 = vpop.permute.xlu0 %1244
      %1246 = vrot.lane.b32.xlu0 %v1088, 16
      %v1247 = vpop.permute.xlu0 %1246
      %1248 = vrot.lane.b32.xlu0 %v1090, 16
      %v1249 = vpop.permute.xlu0 %1248
      %1250 = vrot.lane.b32.xlu0 %v1092, 16
      %v1251 = vpop.permute.xlu0 %1250
      %1252 = vrot.lane.b32.xlu0 %v1095, 16
      %v1253 = vpop.permute.xlu0 %1252
      %1254 = vrot.lane.b32.xlu0 %v1097, 16
      %v1255 = vpop.permute.xlu0 %1254
      %1256 = vrot.lane.b32.xlu0 %v1099, 16
      %v1257 = vpop.permute.xlu0 %1256
      %1258 = vrot.lane.b32.xlu0 %v1102, 16
      %v1259 = vpop.permute.xlu0 %1258
      %1260 = vrot.lane.b32.xlu0 %v1104, 16
      %v1261 = vpop.permute.xlu0 %1260
      %1262 = vrot.lane.b32.xlu0 %v1106, 16
      %v1263 = vpop.permute.xlu0 %1262
      %1264 = vrot.lane.b32.xlu0 %v1109, 16
      %v1265 = vpop.permute.xlu0 %1264
      %1266 = vrot.lane.b32.xlu0 %v1111, 16
      %v1267 = vpop.permute.xlu0 %1266
      %1268 = vrot.lane.b32.xlu0 %v1113, 16
      %v1269 = vpop.permute.xlu0 %1268
      %1294 = vrot.lane.b32.xlu0 %v932, 24
      %v1295 = vpop.permute.xlu0 %1294
      %1296 = vrot.lane.b32.xlu0 %v933, 24
      %v1297 = vpop.permute.xlu0 %1296
      %1298 = vrot.lane.b32.xlu0 %v934, 24
      %v1299 = vpop.permute.xlu0 %1298
      %1300 = vrot.lane.b32.xlu0 %v936, 24
      %v1301 = vpop.permute.xlu0 %1300
      %1302 = vrot.lane.b32.xlu0 %v937, 24
      %v1303 = vpop.permute.xlu0 %1302
      %1304 = vrot.lane.b32.xlu0 %v938, 24
      %v1305 = vpop.permute.xlu0 %1304
      %1306 = vrot.lane.b32.xlu0 %v940, 24
      %v1307 = vpop.permute.xlu0 %1306
      %1308 = vrot.lane.b32.xlu0 %v941, 24
      %v1309 = vpop.permute.xlu0 %1308
      %1310 = vrot.lane.b32.xlu0 %v942, 24
      %v1311 = vpop.permute.xlu0 %1310
      %1312 = vrot.lane.b32.xlu0 %v944, 24
      %v1313 = vpop.permute.xlu0 %1312
      %1314 = vrot.lane.b32.xlu0 %v945, 24
      %v1315 = vpop.permute.xlu0 %1314
      %1316 = vrot.lane.b32.xlu0 %v946, 24
      %v1317 = vpop.permute.xlu0 %1316
      %1318 = vrot.lane.b32.xlu0 %v948, 24
      %v1319 = vpop.permute.xlu0 %1318
      %1320 = vrot.lane.b32.xlu0 %v949, 24
      %v1321 = vpop.permute.xlu0 %1320
      %1322 = vrot.lane.b32.xlu0 %v950, 24
      %v1323 = vpop.permute.xlu0 %1322
      %1324 = vrot.lane.b32.xlu0 %v952, 24
      %v1325 = vpop.permute.xlu0 %1324
      %1326 = vrot.lane.b32.xlu0 %v953, 24
      %v1327 = vpop.permute.xlu0 %1326
      %1328 = vrot.lane.b32.xlu0 %v954, 24
      %v1329 = vpop.permute.xlu0 %1328
      %1330 = vrot.lane.b32.xlu0 %v956, 24
      %v1331 = vpop.permute.xlu0 %1330
      %1332 = vrot.lane.b32.xlu0 %v957, 24
      %v1333 = vpop.permute.xlu0 %1332
      %1334 = vrot.lane.b32.xlu0 %v958, 24
      %v1335 = vpop.permute.xlu0 %1334
      %1336 = vrot.lane.b32.xlu0 %v960, 24
      %v1337 = vpop.permute.xlu0 %1336
      %1338 = vrot.lane.b32.xlu0 %v961, 24
      %v1339 = vpop.permute.xlu0 %1338
      %1340 = vrot.lane.b32.xlu0 %v962, 24
      %v1341 = vpop.permute.xlu0 %1340
      %1366 = vrot.lane.b32.xlu0 %v1010, 32
      %v1367 = vpop.permute.xlu0 %1366
      %1368 = vrot.lane.b32.xlu0 %v1012, 32
      %v1369 = vpop.permute.xlu0 %1368
      %1370 = vrot.lane.b32.xlu0 %v1014, 32
      %v1371 = vpop.permute.xlu0 %1370
      %1372 = vrot.lane.b32.xlu0 %v1017, 32
      %v1373 = vpop.permute.xlu0 %1372
      %1374 = vrot.lane.b32.xlu0 %v1019, 32
      %v1375 = vpop.permute.xlu0 %1374
      %1376 = vrot.lane.b32.xlu0 %v1021, 32
      %v1377 = vpop.permute.xlu0 %1376
      %1378 = vrot.lane.b32.xlu0 %v1024, 32
      %v1379 = vpop.permute.xlu0 %1378
      %1380 = vrot.lane.b32.xlu0 %v1026, 32
      %v1381 = vpop.permute.xlu0 %1380
      %1382 = vrot.lane.b32.xlu0 %v1028, 32
      %v1383 = vpop.permute.xlu0 %1382
      %1384 = vrot.lane.b32.xlu0 %v1031, 32
      %v1385 = vpop.permute.xlu0 %1384
      %1386 = vrot.lane.b32.xlu0 %v1033, 32
      %v1387 = vpop.permute.xlu0 %1386
      %1388 = vrot.lane.b32.xlu0 %v1035, 32
      %v1389 = vpop.permute.xlu0 %1388
      %1390 = vrot.lane.b32.xlu0 %v1038, 32
      %v1391 = vpop.permute.xlu0 %1390
      %1392 = vrot.lane.b32.xlu0 %v1040, 32
      %v1393 = vpop.permute.xlu0 %1392
      %1394 = vrot.lane.b32.xlu0 %v1042, 32
      %v1395 = vpop.permute.xlu0 %1394
      %1396 = vrot.lane.b32.xlu0 %v1045, 32
      %v1397 = vpop.permute.xlu0 %1396
      %1398 = vrot.lane.b32.xlu0 %v1047, 32
      %v1399 = vpop.permute.xlu0 %1398
      %1400 = vrot.lane.b32.xlu0 %v1049, 32
      %v1401 = vpop.permute.xlu0 %1400
      %1402 = vrot.lane.b32.xlu0 %v1052, 32
      %v1403 = vpop.permute.xlu0 %1402
      %1404 = vrot.lane.b32.xlu0 %v1054, 32
      %v1405 = vpop.permute.xlu0 %1404
      %1406 = vrot.lane.b32.xlu0 %v1056, 32
      %v1407 = vpop.permute.xlu0 %1406
      %1408 = vrot.lane.b32.xlu0 %v1120, 32
      %v1409 = vpop.permute.xlu0 %1408
      %1410 = vrot.lane.b32.xlu0 %v1122, 32
      %v1411 = vpop.permute.xlu0 %1410
      %1412 = vrot.lane.b32.xlu0 %v1124, 32
      %v1413 = vpop.permute.xlu0 %1412
      %1438 = vrot.lane.b32.xlu0 %v1067, 40
      %v1439 = vpop.permute.xlu0 %1438
      %1440 = vrot.lane.b32.xlu0 %v1069, 40
      %v1441 = vpop.permute.xlu0 %1440
      %1442 = vrot.lane.b32.xlu0 %v1071, 40
      %v1443 = vpop.permute.xlu0 %1442
      %1444 = vrot.lane.b32.xlu0 %v1074, 40
      %v1445 = vpop.permute.xlu0 %1444
      %1446 = vrot.lane.b32.xlu0 %v1076, 40
      %v1447 = vpop.permute.xlu0 %1446
      %1448 = vrot.lane.b32.xlu0 %v1078, 40
      %v1449 = vpop.permute.xlu0 %1448
      %1450 = vrot.lane.b32.xlu0 %v1081, 40
      %v1451 = vpop.permute.xlu0 %1450
      %1452 = vrot.lane.b32.xlu0 %v1083, 40
      %v1453 = vpop.permute.xlu0 %1452
      %1454 = vrot.lane.b32.xlu0 %v1085, 40
      %v1455 = vpop.permute.xlu0 %1454
      %1456 = vrot.lane.b32.xlu0 %v1088, 40
      %v1457 = vpop.permute.xlu0 %1456
      %1458 = vrot.lane.b32.xlu0 %v1090, 40
      %v1459 = vpop.permute.xlu0 %1458
      %1460 = vrot.lane.b32.xlu0 %v1092, 40
      %v1461 = vpop.permute.xlu0 %1460
      %1462 = vrot.lane.b32.xlu0 %v1095, 40
      %v1463 = vpop.permute.xlu0 %1462
      %1464 = vrot.lane.b32.xlu0 %v1097, 40
      %v1465 = vpop.permute.xlu0 %1464
      %1466 = vrot.lane.b32.xlu0 %v1099, 40
      %v1467 = vpop.permute.xlu0 %1466
      %1468 = vrot.lane.b32.xlu0 %v1102, 40
      %v1469 = vpop.permute.xlu0 %1468
      %1470 = vrot.lane.b32.xlu0 %v1104, 40
      %v1471 = vpop.permute.xlu0 %1470
      %1472 = vrot.lane.b32.xlu0 %v1106, 40
      %v1473 = vpop.permute.xlu0 %1472
      %1474 = vrot.lane.b32.xlu0 %v1109, 40
      %v1475 = vpop.permute.xlu0 %1474
      %1476 = vrot.lane.b32.xlu0 %v1111, 40
      %v1477 = vpop.permute.xlu0 %1476
      %1478 = vrot.lane.b32.xlu0 %v1113, 40
      %v1479 = vpop.permute.xlu0 %1478
      %1480 = vrot.lane.b32.xlu0 %v1127, 40
      %v1481 = vpop.permute.xlu0 %1480
      %1482 = vrot.lane.b32.xlu0 %v1129, 40
      %v1483 = vpop.permute.xlu0 %1482
      %1484 = vrot.lane.b32.xlu0 %v1131, 40
      %v1485 = vpop.permute.xlu0 %1484
      %1510 = vrot.lane.b32.xlu0 %v936, 48
      %v1511 = vpop.permute.xlu0 %1510
      %1512 = vrot.lane.b32.xlu0 %v937, 48
      %v1513 = vpop.permute.xlu0 %1512
      %1514 = vrot.lane.b32.xlu0 %v938, 48
      %v1515 = vpop.permute.xlu0 %1514
      %1516 = vrot.lane.b32.xlu0 %v940, 48
      %v1517 = vpop.permute.xlu0 %1516
      %1518 = vrot.lane.b32.xlu0 %v941, 48
      %v1519 = vpop.permute.xlu0 %1518
      %1520 = vrot.lane.b32.xlu0 %v942, 48
      %v1521 = vpop.permute.xlu0 %1520
      %1522 = vrot.lane.b32.xlu0 %v944, 48
      %v1523 = vpop.permute.xlu0 %1522
      %1524 = vrot.lane.b32.xlu0 %v945, 48
      %v1525 = vpop.permute.xlu0 %1524
      %1526 = vrot.lane.b32.xlu0 %v946, 48
      %v1527 = vpop.permute.xlu0 %1526
      %1528 = vrot.lane.b32.xlu0 %v948, 48
      %v1529 = vpop.permute.xlu0 %1528
      %1530 = vrot.lane.b32.xlu0 %v949, 48
      %v1531 = vpop.permute.xlu0 %1530
      %1532 = vrot.lane.b32.xlu0 %v950, 48
      %v1533 = vpop.permute.xlu0 %1532
      %1534 = vrot.lane.b32.xlu0 %v952, 48
      %v1535 = vpop.permute.xlu0 %1534
      %1536 = vrot.lane.b32.xlu0 %v953, 48
      %v1537 = vpop.permute.xlu0 %1536
      %1538 = vrot.lane.b32.xlu0 %v954, 48
      %v1539 = vpop.permute.xlu0 %1538
      %1540 = vrot.lane.b32.xlu0 %v956, 48
      %v1541 = vpop.permute.xlu0 %1540
      %1542 = vrot.lane.b32.xlu0 %v957, 48
      %v1543 = vpop.permute.xlu0 %1542
      %1544 = vrot.lane.b32.xlu0 %v958, 48
      %v1545 = vpop.permute.xlu0 %1544
      %1546 = vrot.lane.b32.xlu0 %v960, 48
      %v1547 = vpop.permute.xlu0 %1546
      %1548 = vrot.lane.b32.xlu0 %v961, 48
      %v1549 = vpop.permute.xlu0 %1548
      %1550 = vrot.lane.b32.xlu0 %v962, 48
      %v1551 = vpop.permute.xlu0 %1550
      %1552 = vrot.lane.b32.xlu0 %v964, 48
      %v1553 = vpop.permute.xlu0 %1552
      %1554 = vrot.lane.b32.xlu0 %v965, 48
      %v1555 = vpop.permute.xlu0 %1554
      %1556 = vrot.lane.b32.xlu0 %v966, 48
      %v1557 = vpop.permute.xlu0 %1556
      %1582 = vrot.lane.b32.xlu0 %v1017, 56
      %v1583 = vpop.permute.xlu0 %1582
      %1584 = vrot.lane.b32.xlu0 %v1019, 56
      %v1585 = vpop.permute.xlu0 %1584
      %1586 = vrot.lane.b32.xlu0 %v1021, 56
      %v1587 = vpop.permute.xlu0 %1586
      %1588 = vrot.lane.b32.xlu0 %v1024, 56
      %v1589 = vpop.permute.xlu0 %1588
      %1590 = vrot.lane.b32.xlu0 %v1026, 56
      %v1591 = vpop.permute.xlu0 %1590
      %1592 = vrot.lane.b32.xlu0 %v1028, 56
      %v1593 = vpop.permute.xlu0 %1592
      %1594 = vrot.lane.b32.xlu0 %v1031, 56
      %v1595 = vpop.permute.xlu0 %1594
      %1596 = vrot.lane.b32.xlu0 %v1033, 56
      %v1597 = vpop.permute.xlu0 %1596
      %1598 = vrot.lane.b32.xlu0 %v1035, 56
      %v1599 = vpop.permute.xlu0 %1598
      %1600 = vrot.lane.b32.xlu0 %v1038, 56
      %v1601 = vpop.permute.xlu0 %1600
      %1602 = vrot.lane.b32.xlu0 %v1040, 56
      %v1603 = vpop.permute.xlu0 %1602
      %1604 = vrot.lane.b32.xlu0 %v1042, 56
      %v1605 = vpop.permute.xlu0 %1604
      %1606 = vrot.lane.b32.xlu0 %v1045, 56
      %v1607 = vpop.permute.xlu0 %1606
      %1608 = vrot.lane.b32.xlu0 %v1047, 56
      %v1609 = vpop.permute.xlu0 %1608
      %1610 = vrot.lane.b32.xlu0 %v1049, 56
      %v1611 = vpop.permute.xlu0 %1610
      %1612 = vrot.lane.b32.xlu0 %v1052, 56
      %v1613 = vpop.permute.xlu0 %1612
      %1614 = vrot.lane.b32.xlu0 %v1054, 56
      %v1615 = vpop.permute.xlu0 %1614
      %1616 = vrot.lane.b32.xlu0 %v1056, 56
      %v1617 = vpop.permute.xlu0 %1616
      %1618 = vrot.lane.b32.xlu0 %v1120, 56
      %v1619 = vpop.permute.xlu0 %1618
      %1620 = vrot.lane.b32.xlu0 %v1122, 56
      %v1621 = vpop.permute.xlu0 %1620
      %1622 = vrot.lane.b32.xlu0 %v1124, 56
      %v1623 = vpop.permute.xlu0 %1622
      %1624 = vrot.lane.b32.xlu0 %v1138, 56
      %v1625 = vpop.permute.xlu0 %1624
      %1626 = vrot.lane.b32.xlu0 %v1140, 56
      %v1627 = vpop.permute.xlu0 %1626
      %1628 = vrot.lane.b32.xlu0 %v1142, 56
      %v1629 = vpop.permute.xlu0 %1628
      %1654 = vrot.lane.b32.xlu0 %v1074, 64
      %v1655 = vpop.permute.xlu0 %1654
      %1656 = vrot.lane.b32.xlu0 %v1076, 64
      %v1657 = vpop.permute.xlu0 %1656
      %1658 = vrot.lane.b32.xlu0 %v1078, 64
      %v1659 = vpop.permute.xlu0 %1658
      %1660 = vrot.lane.b32.xlu0 %v1081, 64
      %v1661 = vpop.permute.xlu0 %1660
      %1662 = vrot.lane.b32.xlu0 %v1083, 64
      %v1663 = vpop.permute.xlu0 %1662
      %1664 = vrot.lane.b32.xlu0 %v1085, 64
      %v1665 = vpop.permute.xlu0 %1664
      %1666 = vrot.lane.b32.xlu0 %v1088, 64
      %v1667 = vpop.permute.xlu0 %1666
      %1668 = vrot.lane.b32.xlu0 %v1090, 64
      %v1669 = vpop.permute.xlu0 %1668
      %1670 = vrot.lane.b32.xlu0 %v1092, 64
      %v1671 = vpop.permute.xlu0 %1670
      %1672 = vrot.lane.b32.xlu0 %v1095, 64
      %v1673 = vpop.permute.xlu0 %1672
      %1674 = vrot.lane.b32.xlu0 %v1097, 64
      %v1675 = vpop.permute.xlu0 %1674
      %1676 = vrot.lane.b32.xlu0 %v1099, 64
      %v1677 = vpop.permute.xlu0 %1676
      %1678 = vrot.lane.b32.xlu0 %v1102, 64
      %v1679 = vpop.permute.xlu0 %1678
      %1680 = vrot.lane.b32.xlu0 %v1104, 64
      %v1681 = vpop.permute.xlu0 %1680
      %1682 = vrot.lane.b32.xlu0 %v1106, 64
      %v1683 = vpop.permute.xlu0 %1682
      %1684 = vrot.lane.b32.xlu0 %v1109, 64
      %v1685 = vpop.permute.xlu0 %1684
      %1686 = vrot.lane.b32.xlu0 %v1111, 64
      %v1687 = vpop.permute.xlu0 %1686
      %1688 = vrot.lane.b32.xlu0 %v1113, 64
      %v1689 = vpop.permute.xlu0 %1688
      %1690 = vrot.lane.b32.xlu0 %v1127, 64
      %v1691 = vpop.permute.xlu0 %1690
      %1692 = vrot.lane.b32.xlu0 %v1129, 64
      %v1693 = vpop.permute.xlu0 %1692
      %1694 = vrot.lane.b32.xlu0 %v1131, 64
      %v1695 = vpop.permute.xlu0 %1694
      %1696 = vrot.lane.b32.xlu0 %v1145, 64
      %v1697 = vpop.permute.xlu0 %1696
      %1698 = vrot.lane.b32.xlu0 %v1147, 64
      %v1699 = vpop.permute.xlu0 %1698
      %1700 = vrot.lane.b32.xlu0 %v1149, 64
      %v1701 = vpop.permute.xlu0 %1700
      %vm1726 = vcmask 64512
      %v1727 = vsel %vm1726, %v928, %v1151
      %v1728 = vsel %vm1726, %v929, %v1153
      %v1729 = vsel %vm1726, %v930, %v1155
      %v1730 = vsel %vm1726, %v932, %v1157
      %v1731 = vsel %vm1726, %v933, %v1159
      %v1732 = vsel %vm1726, %v934, %v1161
      %v1733 = vsel %vm1726, %v936, %v1163
      %v1734 = vsel %vm1726, %v937, %v1165
      %v1735 = vsel %vm1726, %v938, %v1167
      %v1736 = vsel %vm1726, %v940, %v1169
      %v1737 = vsel %vm1726, %v941, %v1171
      %v1738 = vsel %vm1726, %v942, %v1173
      %v1739 = vsel %vm1726, %v944, %v1175
      %v1740 = vsel %vm1726, %v945, %v1177
      %v1741 = vsel %vm1726, %v946, %v1179
      %v1742 = vsel %vm1726, %v948, %v1181
      %v1743 = vsel %vm1726, %v949, %v1183
      %v1744 = vsel %vm1726, %v950, %v1185
      %v1745 = vsel %vm1726, %v952, %v1187
      %v1746 = vsel %vm1726, %v953, %v1189
      %v1747 = vsel %vm1726, %v954, %v1191
      %v1748 = vsel %vm1726, %v956, %v1193
      %v1749 = vsel %vm1726, %v957, %v1195
      %v1750 = vsel %vm1726, %v958, %v1197
      %vm1751 = vcmask 130048
      %v1752 = vsel %vm1751, %v1727, %v1223
      %v1753 = vsel %vm1751, %v1728, %v1225
      %v1754 = vsel %vm1751, %v1729, %v1227
      %v1755 = vsel %vm1751, %v1730, %v1229
      %v1756 = vsel %vm1751, %v1731, %v1231
      %v1757 = vsel %vm1751, %v1732, %v1233
      %v1758 = vsel %vm1751, %v1733, %v1235
      %v1759 = vsel %vm1751, %v1734, %v1237
      %v1760 = vsel %vm1751, %v1735, %v1239
      %v1761 = vsel %vm1751, %v1736, %v1241
      %v1762 = vsel %vm1751, %v1737, %v1243
      %v1763 = vsel %vm1751, %v1738, %v1245
      %v1764 = vsel %vm1751, %v1739, %v1247
      %v1765 = vsel %vm1751, %v1740, %v1249
      %v1766 = vsel %vm1751, %v1741, %v1251
      %v1767 = vsel %vm1751, %v1742, %v1253
      %v1768 = vsel %vm1751, %v1743, %v1255
      %v1769 = vsel %vm1751, %v1744, %v1257
      %v1770 = vsel %vm1751, %v1745, %v1259
      %v1771 = vsel %vm1751, %v1746, %v1261
      %v1772 = vsel %vm1751, %v1747, %v1263
      %v1773 = vsel %vm1751, %v1748, %v1265
      %v1774 = vsel %vm1751, %v1749, %v1267
      %v1775 = vsel %vm1751, %v1750, %v1269
      %vm1776 = vcmask 195584
      %v1777 = vsel %vm1776, %v1752, %v1295
      %v1778 = vsel %vm1776, %v1753, %v1297
      %v1779 = vsel %vm1776, %v1754, %v1299
      %v1780 = vsel %vm1776, %v1755, %v1301
      %v1781 = vsel %vm1776, %v1756, %v1303
      %v1782 = vsel %vm1776, %v1757, %v1305
      %v1783 = vsel %vm1776, %v1758, %v1307
      %v1784 = vsel %vm1776, %v1759, %v1309
      %v1785 = vsel %vm1776, %v1760, %v1311
      %v1786 = vsel %vm1776, %v1761, %v1313
      %v1787 = vsel %vm1776, %v1762, %v1315
      %v1788 = vsel %vm1776, %v1763, %v1317
      %v1789 = vsel %vm1776, %v1764, %v1319
      %v1790 = vsel %vm1776, %v1765, %v1321
      %v1791 = vsel %vm1776, %v1766, %v1323
      %v1792 = vsel %vm1776, %v1767, %v1325
      %v1793 = vsel %vm1776, %v1768, %v1327
      %v1794 = vsel %vm1776, %v1769, %v1329
      %v1795 = vsel %vm1776, %v1770, %v1331
      %v1796 = vsel %vm1776, %v1771, %v1333
      %v1797 = vsel %vm1776, %v1772, %v1335
      %v1798 = vsel %vm1776, %v1773, %v1337
      %v1799 = vsel %vm1776, %v1774, %v1339
      %v1800 = vsel %vm1776, %v1775, %v1341
      %vm1801 = vcmask 261120
      %v1802 = vsel %vm1801, %v1777, %v1367
      %v1803 = vsel %vm1801, %v1778, %v1369
      %v1804 = vsel %vm1801, %v1779, %v1371
      %v1805 = vsel %vm1801, %v1780, %v1373
      %v1806 = vsel %vm1801, %v1781, %v1375
      %v1807 = vsel %vm1801, %v1782, %v1377
      %v1808 = vsel %vm1801, %v1783, %v1379
      %v1809 = vsel %vm1801, %v1784, %v1381
      %v1810 = vsel %vm1801, %v1785, %v1383
      %v1811 = vsel %vm1801, %v1786, %v1385
      %v1812 = vsel %vm1801, %v1787, %v1387
      %v1813 = vsel %vm1801, %v1788, %v1389
      %v1814 = vsel %vm1801, %v1789, %v1391
      %v1815 = vsel %vm1801, %v1790, %v1393
      %v1816 = vsel %vm1801, %v1791, %v1395
      %v1817 = vsel %vm1801, %v1792, %v1397
      %v1818 = vsel %vm1801, %v1793, %v1399
      %v1819 = vsel %vm1801, %v1794, %v1401
      %v1820 = vsel %vm1801, %v1795, %v1403
      %v1821 = vsel %vm1801, %v1796, %v1405
      %v1822 = vsel %vm1801, %v1797, %v1407
      %v1823 = vsel %vm1801, %v1798, %v1409
      %v1824 = vsel %vm1801, %v1799, %v1411
      %v1825 = vsel %vm1801, %v1800, %v1413
      %vm1826 = vcmask 326656
      %v1827 = vsel %vm1826, %v1802, %v1439
      %v1828 = vsel %vm1826, %v1803, %v1441
      %v1829 = vsel %vm1826, %v1804, %v1443
      %v1830 = vsel %vm1826, %v1805, %v1445
      %v1831 = vsel %vm1826, %v1806, %v1447
      %v1832 = vsel %vm1826, %v1807, %v1449
      %v1833 = vsel %vm1826, %v1808, %v1451
      %v1834 = vsel %vm1826, %v1809, %v1453
      %v1835 = vsel %vm1826, %v1810, %v1455
      %v1836 = vsel %vm1826, %v1811, %v1457
      %v1837 = vsel %vm1826, %v1812, %v1459
      %v1838 = vsel %vm1826, %v1813, %v1461
      %v1839 = vsel %vm1826, %v1814, %v1463
      %v1840 = vsel %vm1826, %v1815, %v1465
      %v1841 = vsel %vm1826, %v1816, %v1467
      %v1842 = vsel %vm1826, %v1817, %v1469
      %v1843 = vsel %vm1826, %v1818, %v1471
      %v1844 = vsel %vm1826, %v1819, %v1473
      %v1845 = vsel %vm1826, %v1820, %v1475
      %v1846 = vsel %vm1826, %v1821, %v1477
      %v1847 = vsel %vm1826, %v1822, %v1479
      %v1848 = vsel %vm1826, %v1823, %v1481
      %v1849 = vsel %vm1826, %v1824, %v1483
      %v1850 = vsel %vm1826, %v1825, %v1485
      %vm1851 = vcmask 392192
      %v1852 = vsel %vm1851, %v1827, %v1511
      %v1853 = vsel %vm1851, %v1828, %v1513
      %v1854 = vsel %vm1851, %v1829, %v1515
      %v1855 = vsel %vm1851, %v1830, %v1517
      %v1856 = vsel %vm1851, %v1831, %v1519
      %v1857 = vsel %vm1851, %v1832, %v1521
      %v1858 = vsel %vm1851, %v1833, %v1523
      %v1859 = vsel %vm1851, %v1834, %v1525
      %v1860 = vsel %vm1851, %v1835, %v1527
      %v1861 = vsel %vm1851, %v1836, %v1529
      %v1862 = vsel %vm1851, %v1837, %v1531
      %v1863 = vsel %vm1851, %v1838, %v1533
      %v1864 = vsel %vm1851, %v1839, %v1535
      %v1865 = vsel %vm1851, %v1840, %v1537
      %v1866 = vsel %vm1851, %v1841, %v1539
      %v1867 = vsel %vm1851, %v1842, %v1541
      %v1868 = vsel %vm1851, %v1843, %v1543
      %v1869 = vsel %vm1851, %v1844, %v1545
      %v1870 = vsel %vm1851, %v1845, %v1547
      %v1871 = vsel %vm1851, %v1846, %v1549
      %v1872 = vsel %vm1851, %v1847, %v1551
      %v1873 = vsel %vm1851, %v1848, %v1553
      %v1874 = vsel %vm1851, %v1849, %v1555
      %v1875 = vsel %vm1851, %v1850, %v1557
      %vm1876 = vcmask 457728
      %v1877 = vsel %vm1876, %v1852, %v1583
      %v1878 = vsel %vm1876, %v1853, %v1585
      %v1879 = vsel %vm1876, %v1854, %v1587
      %v1880 = vsel %vm1876, %v1855, %v1589
      %v1881 = vsel %vm1876, %v1856, %v1591
      %v1882 = vsel %vm1876, %v1857, %v1593
      %v1883 = vsel %vm1876, %v1858, %v1595
      %v1884 = vsel %vm1876, %v1859, %v1597
      %v1885 = vsel %vm1876, %v1860, %v1599
      %v1886 = vsel %vm1876, %v1861, %v1601
      %v1887 = vsel %vm1876, %v1862, %v1603
      %v1888 = vsel %vm1876, %v1863, %v1605
      %v1889 = vsel %vm1876, %v1864, %v1607
      %v1890 = vsel %vm1876, %v1865, %v1609
      %v1891 = vsel %vm1876, %v1866, %v1611
      %v1892 = vsel %vm1876, %v1867, %v1613
      %v1893 = vsel %vm1876, %v1868, %v1615
      %v1894 = vsel %vm1876, %v1869, %v1617
      %v1895 = vsel %vm1876, %v1870, %v1619
      %v1896 = vsel %vm1876, %v1871, %v1621
      %v1897 = vsel %vm1876, %v1872, %v1623
      %v1898 = vsel %vm1876, %v1873, %v1625
      %v1899 = vsel %vm1876, %v1874, %v1627
      %v1900 = vsel %vm1876, %v1875, %v1629
      %vm1901 = vcmask 523264
      %v1902 = vsel %vm1901, %v1877, %v1655
      %v1903 = vsel %vm1901, %v1878, %v1657
      %v1904 = vsel %vm1901, %v1879, %v1659
      %v1905 = vsel %vm1901, %v1880, %v1661
      %v1906 = vsel %vm1901, %v1881, %v1663
      %v1907 = vsel %vm1901, %v1882, %v1665
      %v1908 = vsel %vm1901, %v1883, %v1667
      %v1909 = vsel %vm1901, %v1884, %v1669
      %v1910 = vsel %vm1901, %v1885, %v1671
      %v1911 = vsel %vm1901, %v1886, %v1673
      %v1912 = vsel %vm1901, %v1887, %v1675
      %v1913 = vsel %vm1901, %v1888, %v1677
      %v1914 = vsel %vm1901, %v1889, %v1679
      %v1915 = vsel %vm1901, %v1890, %v1681
      %v1916 = vsel %vm1901, %v1891, %v1683
      %v1917 = vsel %vm1901, %v1892, %v1685
      %v1918 = vsel %vm1901, %v1893, %v1687
      %v1919 = vsel %vm1901, %v1894, %v1689
      %v1920 = vsel %vm1901, %v1895, %v1691
      %v1921 = vsel %vm1901, %v1896, %v1693
      %v1922 = vsel %vm1901, %v1897, %v1695
      %v1923 = vsel %vm1901, %v1898, %v1697
      %v1924 = vsel %vm1901, %v1899, %v1699
      %v1925 = vsel %vm1901, %v1900, %v1701
      %v1926 = vld [vmem:[%s3] sm:$0xff]
      %v1927 = vld [vmem:[%s3 + $0x8] sm:$0xff]
      %v1928 = vld [vmem:[%s3 + $0x10] sm:$0xff]
      %v1929 = vld [vmem:[%s3 + $0x18] sm:$0xff]
      %v1930 = vld [vmem:[%s3 + $0x20] sm:$0xff]
      %v1931 = vld [vmem:[%s3 + $0x28] sm:$0xff]
      %v1932 = vld [vmem:[%s3 + $0x30] sm:$0xff]
      %v1933 = vld [vmem:[%s3 + $0x38] sm:$0xff]
      %v1934 = vld [vmem:[%s3 + $0x40] sm:$0xff]
      %vm1935 = vcmask 588800
      %v1937 = vsel %vm1935, %v1902, 0
      %v1940 = vsel %vm1935, %v1903, 0
      %v1943 = vsel %vm1935, %v1904, 0
      %v1946 = vsel %vm1935, %v1905, 0
      %v1949 = vsel %vm1935, %v1906, 0
      %v1952 = vsel %vm1935, %v1907, 0
      %v1955 = vsel %vm1935, %v1908, 0
      %v1958 = vsel %vm1935, %v1909, 0
      %v1961 = vsel %vm1935, %v1910, 0
      %v1964 = vsel %vm1935, %v1911, 0
      %v1967 = vsel %vm1935, %v1912, 0
      %v1970 = vsel %vm1935, %v1913, 0
      %v1973 = vsel %vm1935, %v1914, 0
      %v1976 = vsel %vm1935, %v1915, 0
      %v1979 = vsel %vm1935, %v1916, 0
      %v1982 = vsel %vm1935, %v1917, 0
      %v1985 = vsel %vm1935, %v1918, 0
      %v1988 = vsel %vm1935, %v1919, 0
      %v1991 = vsel %vm1935, %v1920, 0
      %v1994 = vsel %vm1935, %v1921, 0
      %v1997 = vsel %vm1935, %v1922, 0
      %v2000 = vsel %vm1935, %v1923, 0
      %v2003 = vsel %vm1935, %v1924, 0
      %v2006 = vsel %vm1935, %v1925, 0
      %2008 = vmatprep.subr.mxu0 0.0
      %2009 = vmatpush1.msra.mxu0 %v1926
      %2010 = vmatprep.subr.mxu0 0.0
      %2011 = vmatpush1.msra.mxu0 %v1927
      %2012 = vmatprep.subr.mxu0 0.0
      %2013 = vmatpush1.msra.mxu0 %v1928
      %2014 = vmatprep.subr.mxu0 0.0
      %2015 = vmatpush1.msra.mxu0 %v1929
      %2016 = vmatprep.subr.mxu0 0.0
      %2017 = vmatpush1.msra.mxu0 %v1930
      %2018 = vmatprep.subr.mxu0 0.0
      %2019 = vmatpush1.msra.mxu0 %v1931
      %2020 = vmatprep.subr.mxu0 0.0
      %2021 = vmatpush1.msra.mxu0 %v1932
      %2022 = vmatprep.subr.mxu0 0.0
      %2023 = vmatpush1.msra.mxu0 %v1933
      %2024 = vmatprep.subr.mxu0 0.0
      %2025 = vmatpush1.msra.mxu0 %v1934
      %2026 = vmatprep.subr.mxu0 0.0
      %2027 = vmatpush1.msra.mxu0 0.0
      %2028 = vmatprep.subr.mxu0 0.0
      %2029 = vmatpush1.msra.mxu0 0.0
      %2030 = vmatprep.subr.mxu0 0.0
      %2031 = vmatpush1.msra.mxu0 0.0
      %2032 = vmatprep.subr.mxu0 0.0
      %2033 = vmatpush1.msra.mxu0 0.0
      %2034 = vmatprep.subr.mxu0 0.0
      %2035 = vmatpush1.msra.mxu0 0.0
      %2036 = vmatprep.subr.mxu0 0.0
      %2037 = vmatpush1.msra.mxu0 0.0
      %2038 = vmatprep.subr.mxu0 0.0
      %2039 = vmatpush1.msra.mxu0 0.0
      %2040 = vmatprep.subr.mxu0 0.0
      %2041 = vmatpush1.msra.mxu0 0.0
      %2042 = vmatprep.subr.mxu0 0.0
      %2043 = vmatpush1.msra.mxu0 0.0
      %2044 = vmatprep.subr.mxu0 0.0
      %2045 = vmatpush1.msra.mxu0 0.0
      %2046 = vmatprep.subr.mxu0 0.0
      %2047 = vmatpush1.msra.mxu0 0.0
      %2048 = vmatprep.subr.mxu0 0.0
      %2049 = vmatpush1.msra.mxu0 0.0
      %2050 = vmatprep.subr.mxu0 0.0
      %2051 = vmatpush1.msra.mxu0 0.0
      %2052 = vmatprep.subr.mxu0 0.0
      %2053 = vmatpush1.msra.mxu0 0.0
      %2054 = vmatprep.subr.mxu0 0.0
      %2055 = vmatpush1.msra.mxu0 0.0
      %2056 = vmatprep.subr.mxu0 0.0
      %2057 = vmatpush1.msra.mxu0 0.0
      %2058 = vmatprep.subr.mxu0 0.0
      %2059 = vmatpush1.msra.mxu0 0.0
      %2060 = vmatprep.subr.mxu0 0.0
      %2061 = vmatpush1.msra.mxu0 0.0
      %2062 = vmatprep.subr.mxu0 0.0
      %2063 = vmatpush1.msra.mxu0 0.0
      %2064 = vmatprep.subr.mxu0 0.0
      %2065 = vmatpush1.msra.mxu0 0.0
      %2066 = vmatprep.subr.mxu0 0.0
      %2067 = vmatpush1.msra.mxu0 0.0
      %2068 = vmatprep.subr.mxu0 0.0
      %2069 = vmatpush1.msra.mxu0 0.0
      %2070 = vmatprep.subr.mxu0 0.0
      %2071 = vmatpush1.msra.mxu0 0.0
      %2072 = vmatprep.mubr.f32.mxu0 0.0
      %2073 = vmatmul.mubr.f32.gmra.mrb[0].mxu0 %v1937
      %v2074 = vpop.f32.mrb[0].mxu0
      %v2075 = vadd.f32 0.0, %v2074
      %v2076 = vpop.f32.mrb[0].mxu0
      %2077 = vmatprep.mubr.f32.mxu0 0.0
      %2078 = vmatmul.mubr.f32.gmra.mrb[0].mxu0 %v1940
      %v2079 = vpop.f32.mrb[0].mxu0
      %v2080 = vadd.f32 0.0, %v2079
      %v2081 = vpop.f32.mrb[0].mxu0
      %2082 = vmatprep.mubr.f32.mxu0 0.0
      %2083 = vmatmul.mubr.f32.gmra.mrb[0].mxu0 %v1943
      %v2084 = vpop.f32.mrb[0].mxu0
      %v2085 = vadd.f32 0.0, %v2084
      %v2086 = vpop.f32.mrb[0].mxu0
      %2087 = vmatprep.mubr.f32.mxu0 0.0
      %2088 = vmatmul.mubr.f32.gmra.mrb[0].mxu0 %v1946
      %v2089 = vpop.f32.mrb[0].mxu0
      %v2090 = vadd.f32 0.0, %v2089
      %v2091 = vpop.f32.mrb[0].mxu0
      %2092 = vmatprep.mubr.f32.mxu0 0.0
      %2093 = vmatmul.mubr.f32.gmra.mrb[0].mxu0 %v1949
      %v2094 = vpop.f32.mrb[0].mxu0
      %v2095 = vadd.f32 0.0, %v2094
      %v2096 = vpop.f32.mrb[0].mxu0
      %2097 = vmatprep.mubr.f32.mxu0 0.0
      %2098 = vmatmul.mubr.f32.gmra.mrb[0].mxu0 %v1952
      %v2099 = vpop.f32.mrb[0].mxu0
      %v2100 = vadd.f32 0.0, %v2099
      %v2101 = vpop.f32.mrb[0].mxu0
      %2102 = vmatprep.mubr.f32.mxu0 0.0
      %2103 = vmatmul.mubr.f32.gmra.mrb[0].mxu0 %v1955
      %v2104 = vpop.f32.mrb[0].mxu0
      %v2105 = vadd.f32 0.0, %v2104
      %v2106 = vpop.f32.mrb[0].mxu0
      %2107 = vmatprep.mubr.f32.mxu0 0.0
      %2108 = vmatmul.mubr.f32.gmra.mrb[0].mxu0 %v1958
      %v2109 = vpop.f32.mrb[0].mxu0
      %v2110 = vadd.f32 0.0, %v2109
      %v2111 = vpop.f32.mrb[0].mxu0
      %2112 = vmatprep.mubr.f32.mxu0 0.0
      %2113 = vmatmul.mubr.f32.gmra.mrb[0].mxu0 %v1961
      %v2114 = vpop.f32.mrb[0].mxu0
      %v2115 = vadd.f32 0.0, %v2114
      %v2116 = vpop.f32.mrb[0].mxu0
      %2117 = vmatprep.mubr.f32.mxu0 0.0
      %2118 = vmatmul.mubr.f32.gmra.mrb[0].mxu0 %v1964
      %v2119 = vpop.f32.mrb[0].mxu0
      %v2120 = vadd.f32 0.0, %v2119
      %v2121 = vpop.f32.mrb[0].mxu0
      %2122 = vmatprep.mubr.f32.mxu0 0.0
      %2123 = vmatmul.mubr.f32.gmra.mrb[0].mxu0 %v1967
      %v2124 = vpop.f32.mrb[0].mxu0
      %v2125 = vadd.f32 0.0, %v2124
      %v2126 = vpop.f32.mrb[0].mxu0
      %2127 = vmatprep.mubr.f32.mxu0 0.0
      %2128 = vmatmul.mubr.f32.gmra.mrb[0].mxu0 %v1970
      %v2129 = vpop.f32.mrb[0].mxu0
      %v2130 = vadd.f32 0.0, %v2129
      %v2131 = vpop.f32.mrb[0].mxu0
      %2132 = vmatprep.mubr.f32.mxu0 0.0
      %2133 = vmatmul.mubr.f32.gmra.mrb[0].mxu0 %v1973
      %v2134 = vpop.f32.mrb[0].mxu0
      %v2135 = vadd.f32 0.0, %v2134
      %v2136 = vpop.f32.mrb[0].mxu0
      %2137 = vmatprep.mubr.f32.mxu0 0.0
      %2138 = vmatmul.mubr.f32.gmra.mrb[0].mxu0 %v1976
      %v2139 = vpop.f32.mrb[0].mxu0
      %v2140 = vadd.f32 0.0, %v2139
      %v2141 = vpop.f32.mrb[0].mxu0
      %2142 = vmatprep.mubr.f32.mxu0 0.0
      %2143 = vmatmul.mubr.f32.gmra.mrb[0].mxu0 %v1979
      %v2144 = vpop.f32.mrb[0].mxu0
      %v2145 = vadd.f32 0.0, %v2144
      %v2146 = vpop.f32.mrb[0].mxu0
      %2147 = vmatprep.mubr.f32.mxu0 0.0
      %2148 = vmatmul.mubr.f32.gmra.mrb[0].mxu0 %v1982
      %v2149 = vpop.f32.mrb[0].mxu0
      %v2150 = vadd.f32 0.0, %v2149
      %v2151 = vpop.f32.mrb[0].mxu0
      %2152 = vmatprep.mubr.f32.mxu0 0.0
      %2153 = vmatmul.mubr.f32.gmra.mrb[0].mxu0 %v1985
      %v2154 = vpop.f32.mrb[0].mxu0
      %v2155 = vadd.f32 0.0, %v2154
      %v2156 = vpop.f32.mrb[0].mxu0
      %2157 = vmatprep.mubr.f32.mxu0 0.0
      %2158 = vmatmul.mubr.f32.gmra.mrb[0].mxu0 %v1988
      %v2159 = vpop.f32.mrb[0].mxu0
      %v2160 = vadd.f32 0.0, %v2159
      %v2161 = vpop.f32.mrb[0].mxu0
      %2162 = vmatprep.mubr.f32.mxu0 0.0
      %2163 = vmatmul.mubr.f32.gmra.mrb[0].mxu0 %v1991
      %v2164 = vpop.f32.mrb[0].mxu0
      %v2165 = vadd.f32 0.0, %v2164
      %v2166 = vpop.f32.mrb[0].mxu0
      %2167 = vmatprep.mubr.f32.mxu0 0.0
      %2168 = vmatmul.mubr.f32.gmra.mrb[0].mxu0 %v1994
      %v2169 = vpop.f32.mrb[0].mxu0
      %v2170 = vadd.f32 0.0, %v2169
      %v2171 = vpop.f32.mrb[0].mxu0
      %2172 = vmatprep.mubr.f32.mxu0 0.0
      %2173 = vmatmul.mubr.f32.gmra.mrb[0].mxu0 %v1997
      %v2174 = vpop.f32.mrb[0].mxu0
      %v2175 = vadd.f32 0.0, %v2174
      %v2176 = vpop.f32.mrb[0].mxu0
      %2177 = vmatprep.mubr.f32.mxu0 0.0
      %2178 = vmatmul.mubr.f32.gmra.mrb[0].mxu0 %v2000
      %v2179 = vpop.f32.mrb[0].mxu0
      %v2180 = vadd.f32 0.0, %v2179
      %v2181 = vpop.f32.mrb[0].mxu0
      %2182 = vmatprep.mubr.f32.mxu0 0.0
      %2183 = vmatmul.mubr.f32.gmra.mrb[0].mxu0 %v2003
      %v2184 = vpop.f32.mrb[0].mxu0
      %v2185 = vadd.f32 0.0, %v2184
      %v2186 = vpop.f32.mrb[0].mxu0
      %2187 = vmatprep.mubr.f32.mxu0 0.0
      %2188 = vmatmul.mubr.f32.gmra.mrb[0].mxu0 %v2006
      %v2189 = vpop.f32.mrb[0].mxu0
      %v2190 = vadd.f32 0.0, %v2189
      %v2191 = vpop.f32.mrb[0].mxu0
      %2192 = vdwg.mxu0
      %2193 = vst.msk [vmem:[%s456] sm:$0xff] %vm1726, %v2075
      %2194 = vst.msk [vmem:[%s456 + $0x8] sm:$0xff] %vm1726, %v2080
      %2195 = vst.msk [vmem:[%s456 + $0x10] sm:$0xff] %vm1726, %v2085
      %2196 = vst.msk [vmem:[%s456 + $0x18] sm:$0xff] %vm1726, %v2090
      %2197 = vst.msk [vmem:[%s456 + $0x20] sm:$0xff] %vm1726, %v2095
      %2198 = vst.msk [vmem:[%s456 + $0x28] sm:$0xff] %vm1726, %v2100
      %2199 = vst.msk [vmem:[%s456 + $0x30] sm:$0xff] %vm1726, %v2105
      %2200 = vst.msk [vmem:[%s456 + $0x38] sm:$0xff] %vm1726, %v2110
      %2201 = vst.msk [vmem:[%s456 + $0x40] sm:$0xff] %vm1726, %v2115
      %2202 = vst.msk [vmem:[%s456 + $0x48] sm:$0xff] %vm1726, %v2120
      %2203 = vst.msk [vmem:[%s456 + $0x50] sm:$0xff] %vm1726, %v2125
      %2204 = vst.msk [vmem:[%s456 + $0x58] sm:$0xff] %vm1726, %v2130
      %2205 = vst.msk [vmem:[%s456 + $0x60] sm:$0xff] %vm1726, %v2135
      %2206 = vst.msk [vmem:[%s456 + $0x68] sm:$0xff] %vm1726, %v2140
      %2207 = vst.msk [vmem:[%s456 + $0x70] sm:$0xff] %vm1726, %v2145
      %2208 = vst.msk [vmem:[%s456 + $0x78] sm:$0xff] %vm1726, %v2150
      %2209 = vst.msk [vmem:[%s456 + $0x80] sm:$0xff] %vm1726, %v2155
      %2210 = vst.msk [vmem:[%s456 + $0x88] sm:$0xff] %vm1726, %v2160
      %2211 = vst.msk [vmem:[%s456 + $0x90] sm:$0xff] %vm1726, %v2165
      %2212 = vst.msk [vmem:[%s456 + $0x98] sm:$0xff] %vm1726, %v2170
      %2213 = vst.msk [vmem:[%s456 + $0xa0] sm:$0xff] %vm1726, %v2175
      %2214 = vst.msk [vmem:[%s456 + $0xa8] sm:$0xff] %vm1726, %v2180
      %2215 = vst.msk [vmem:[%s456 + $0xb0] sm:$0xff] %vm1726, %v2185
      %2216 = vst.msk [vmem:[%s456 + $0xb8] sm:$0xff] %vm1726, %v2190
      %v2217 = vsel %vm1726, %v2075, 0.0
      %v2218 = vsel %vm1726, %v2080, 0.0
      %v2219 = vadd.f32 %v2217, %v2218
      %v2220 = vsel %vm1726, %v2085, 0.0
      %v2221 = vadd.f32 %v2219, %v2220
      %v2222 = vsel %vm1726, %v2090, 0.0
      %v2223 = vadd.f32 %v2221, %v2222
      %v2224 = vsel %vm1726, %v2095, 0.0
      %v2225 = vadd.f32 %v2223, %v2224
      %v2226 = vsel %vm1726, %v2100, 0.0
      %v2227 = vadd.f32 %v2225, %v2226
      %v2228 = vsel %vm1726, %v2105, 0.0
      %v2229 = vadd.f32 %v2227, %v2228
      %v2230 = vsel %vm1726, %v2110, 0.0
      %v2231 = vadd.f32 %v2229, %v2230
      %v2232 = vsel %vm1726, %v2115, 0.0
      %v2233 = vadd.f32 %v2231, %v2232
      %v2234 = vsel %vm1726, %v2120, 0.0
      %v2235 = vadd.f32 %v2233, %v2234
      %v2236 = vsel %vm1726, %v2125, 0.0
      %v2237 = vadd.f32 %v2235, %v2236
      %v2238 = vsel %vm1726, %v2130, 0.0
      %v2239 = vadd.f32 %v2237, %v2238
      %v2240 = vsel %vm1726, %v2135, 0.0
      %v2241 = vadd.f32 %v2239, %v2240
      %v2242 = vsel %vm1726, %v2140, 0.0
      %v2243 = vadd.f32 %v2241, %v2242
      %v2244 = vsel %vm1726, %v2145, 0.0
      %v2245 = vadd.f32 %v2243, %v2244
      %v2246 = vsel %vm1726, %v2150, 0.0
      %v2247 = vadd.f32 %v2245, %v2246
      %v2248 = vsel %vm1726, %v2155, 0.0
      %v2249 = vadd.f32 %v2247, %v2248
      %v2250 = vsel %vm1726, %v2160, 0.0
      %v2251 = vadd.f32 %v2249, %v2250
      %v2252 = vsel %vm1726, %v2165, 0.0
      %v2253 = vadd.f32 %v2251, %v2252
      %v2254 = vsel %vm1726, %v2170, 0.0
      %v2255 = vadd.f32 %v2253, %v2254
      %v2256 = vsel %vm1726, %v2175, 0.0
      %v2257 = vadd.f32 %v2255, %v2256
      %v2258 = vsel %vm1726, %v2180, 0.0
      %v2259 = vadd.f32 %v2257, %v2258
      %v2260 = vsel %vm1726, %v2185, 0.0
      %v2261 = vadd.f32 %v2259, %v2260
      %v2262 = vsel %vm1726, %v2190, 0.0
      %v2263 = vadd.f32 %v2261, %v2262
      %v2264 = vrot.slane %v2263, 4
      %v2265 = vadd.f32 %v2263, %v2264
      %v2266 = vrot.slane %v2265, 2
      %v2267 = vadd.f32 %v2265, %v2266
      %v2268 = vrot.slane %v2267, 1
      %v2269 = vadd.f32 %v2267, %v2268
      %v2270 = vmul.f32 %v2075, %v2075
      %v2271 = vmul.f32 %v2080, %v2080
      %v2272 = vmul.f32 %v2085, %v2085
      %v2273 = vmul.f32 %v2090, %v2090
      %v2274 = vmul.f32 %v2095, %v2095
      %v2275 = vmul.f32 %v2100, %v2100
      %v2276 = vmul.f32 %v2105, %v2105
      %v2277 = vmul.f32 %v2110, %v2110
      %v2278 = vmul.f32 %v2115, %v2115
      %v2279 = vmul.f32 %v2120, %v2120
      %v2280 = vmul.f32 %v2125, %v2125
      %v2281 = vmul.f32 %v2130, %v2130
      %v2282 = vmul.f32 %v2135, %v2135
      %v2283 = vmul.f32 %v2140, %v2140
      %v2284 = vmul.f32 %v2145, %v2145
      %v2285 = vmul.f32 %v2150, %v2150
      %v2286 = vmul.f32 %v2155, %v2155
      %v2287 = vmul.f32 %v2160, %v2160
      %v2288 = vmul.f32 %v2165, %v2165
      %v2289 = vmul.f32 %v2170, %v2170
      %v2290 = vmul.f32 %v2175, %v2175
      %v2291 = vmul.f32 %v2180, %v2180
      %v2292 = vmul.f32 %v2185, %v2185
      %v2293 = vmul.f32 %v2190, %v2190
      %v2294 = vsel %vm1726, %v2270, 0.0
      %v2295 = vsel %vm1726, %v2271, 0.0
      %v2296 = vadd.f32 %v2294, %v2295
      %v2297 = vsel %vm1726, %v2272, 0.0
      %v2298 = vadd.f32 %v2296, %v2297
      %v2299 = vsel %vm1726, %v2273, 0.0
      %v2300 = vadd.f32 %v2298, %v2299
      %v2301 = vsel %vm1726, %v2274, 0.0
      %v2302 = vadd.f32 %v2300, %v2301
      %v2303 = vsel %vm1726, %v2275, 0.0
      %v2304 = vadd.f32 %v2302, %v2303
      %v2305 = vsel %vm1726, %v2276, 0.0
      %v2306 = vadd.f32 %v2304, %v2305
      %v2307 = vsel %vm1726, %v2277, 0.0
      %v2308 = vadd.f32 %v2306, %v2307
      %v2309 = vsel %vm1726, %v2278, 0.0
      %v2310 = vadd.f32 %v2308, %v2309
      %v2311 = vsel %vm1726, %v2279, 0.0
      %v2312 = vadd.f32 %v2310, %v2311
      %v2313 = vsel %vm1726, %v2280, 0.0
      %v2314 = vadd.f32 %v2312, %v2313
      %v2315 = vsel %vm1726, %v2281, 0.0
      %v2316 = vadd.f32 %v2314, %v2315
      %v2317 = vsel %vm1726, %v2282, 0.0
      %v2318 = vadd.f32 %v2316, %v2317
      %v2319 = vsel %vm1726, %v2283, 0.0
      %v2320 = vadd.f32 %v2318, %v2319
      %v2321 = vsel %vm1726, %v2284, 0.0
      %v2322 = vadd.f32 %v2320, %v2321
      %v2323 = vsel %vm1726, %v2285, 0.0
      %v2324 = vadd.f32 %v2322, %v2323
      %v2325 = vsel %vm1726, %v2286, 0.0
      %v2326 = vadd.f32 %v2324, %v2325
      %v2327 = vsel %vm1726, %v2287, 0.0
      %v2328 = vadd.f32 %v2326, %v2327
      %v2329 = vsel %vm1726, %v2288, 0.0
      %v2330 = vadd.f32 %v2328, %v2329
      %v2331 = vsel %vm1726, %v2289, 0.0
      %v2332 = vadd.f32 %v2330, %v2331
      %v2333 = vsel %vm1726, %v2290, 0.0
      %v2334 = vadd.f32 %v2332, %v2333
      %v2335 = vsel %vm1726, %v2291, 0.0
      %v2336 = vadd.f32 %v2334, %v2335
      %v2337 = vsel %vm1726, %v2292, 0.0
      %v2338 = vadd.f32 %v2336, %v2337
      %v2339 = vsel %vm1726, %v2293, 0.0
      %v2340 = vadd.f32 %v2338, %v2339
      %v2341 = vrot.slane %v2340, 4
      %v2342 = vadd.f32 %v2340, %v2341
      %v2343 = vrot.slane %v2342, 2
      %v2344 = vadd.f32 %v2342, %v2343
      %v2345 = vrot.slane %v2344, 1
      %v2346 = vadd.f32 %v2344, %v2345
      %vm2347 = vcmask 1040384
      %v2348 = vsel %vm2347, %v2269, %v2346
      %vm2349 = vcmask 58368
      %2350 = vst.msk [vmem:[%s464] sm:$0x3] %vm2349, %v2348
      %p2351 = scmp.lt.s32.totalorder %s23, 1
      %s2352 = scalar_select %p2351, %s23, 1
      %p2353 = scmp.lt.s32.totalorder %s24, 2
      %s2354 = scalar_select %p2353, %s24, 2
      %s2355 = smul.addr %s2354, 24
      %s2356 = smul.addr %s2352, 72
      %s2357 = sadd.s32 %s2355, %s2356
      %s2358 = smul.addr %s2357, 8
      %s2359 = scalar_lea.vmem %s6, %s2358
      %p2360 = scmp.lt.s32.totalorder %s23, 1
      %s2361 = scalar_select %p2360, %s23, 1
      %p2362 = scmp.lt.s32.totalorder %s24, 2
      %s2363 = scalar_select %p2362, %s24, 2
      %s2364 = smul.addr %s2361, 3
      %s2365 = sadd.s32 %s2363, %s2364
      %s2366 = smul.addr %s2365, 2
      %s2367 = scalar_lea.vmem %s7, %s2366
      // Predicated region
      $region45: #{_lambda_.4} parent=43 // pred_check
        %p2368 = pneg %p214
      $region46: #{_lambda_.4} parent=43 // pred_check_branch
        %2370 = sbr.rel (%p2368) target = $region48
      $region47: #{_lambda_.4} parent=43 // pred_region
        _
      $region48: #{_lambda_.4} parent=43 // pred_fallthru
        _
      // Predicated region
      $region49: #{_lambda_.4} parent=43 // pred_check
        %p2371 = pneg %p242
      $region50: #{_lambda_.4} parent=43 // pred_check_branch
        %2373 = sbr.rel (%p2371) target = $region52
      $region51: #{_lambda_.4} parent=43 // pred_region
        _
      $region52: #{_lambda_.4} parent=43 // pred_fallthru
        _
    $region44: #{_lambda_.4} parent=5 // pred_fallthru
      _
    %p2374 = scmp.le.s32.totalorder 2, %s14
    // Predicated region
    $region53: #{_lambda_.4} parent=5 // pred_check
      %p2375 = pneg %p2374
    $region54: #{_lambda_.4} parent=5 // pred_check_branch
      %2377 = sbr.rel (%p2375) target = $region56
    $region55: #{_lambda_.4} parent=5 // pred_region
      %s2378 = ssub.s32 %s14, 2
      // Predicated region
      $region57: #{_lambda_.4} parent=55 // pred_check
        %p2379 = pneg %p220
      $region58: #{_lambda_.4} parent=55 // pred_check_branch
        %2381 = sbr.rel (%p2379) target = $region60
      $region59: #{_lambda_.4} parent=55 // pred_region
        %p2382 = scmp.lt.s32.totalorder %s25, 1
        %s2383 = scalar_select %p2382, %s25, 1
        %p2384 = scmp.lt.s32.totalorder %s26, 2
        %s2385 = scalar_select %p2384, %s26, 2
        %s2386 = smul.addr %s2385, 24
        %s2387 = smul.addr %s2383, 72
        %s2388 = sadd.s32 %s2386, %s2387
        %s2389 = smul.addr %s2388, 8
        %s2390 = scalar_lea.vmem %s6, %s2389
      $region60: #{_lambda_.4} parent=55 // pred_fallthru
        _
      // Predicated region
      $region61: #{_lambda_.4} parent=55 // pred_check
        %p2391 = pneg %p248
      $region62: #{_lambda_.4} parent=55 // pred_check_branch
        %2393 = sbr.rel (%p2391) target = $region64
      $region63: #{_lambda_.4} parent=55 // pred_region
        %p2394 = scmp.lt.s32.totalorder %s25, 1
        %s2395 = scalar_select %p2394, %s25, 1
        %p2396 = scmp.lt.s32.totalorder %s26, 2
        %s2397 = scalar_select %p2396, %s26, 2
        %s2398 = smul.addr %s2395, 3
        %s2399 = sadd.s32 %s2397, %s2398
        %s2400 = smul.addr %s2399, 2
        %s2401 = scalar_lea.vmem %s7, %s2400
      $region64: #{_lambda_.4} parent=55 // pred_fallthru
        _
    $region56: #{_lambda_.4} parent=5 // pred_fallthru
      _
  $region6: #{_lambda_.4} parent=0 // loop_footer
    %s18 = sadd.s32 1, %s14
  $region7: #{_lambda_.4} parent=0 // loop_footer_branch
    %13 = sbr.rel target = $region3
  $region8: #{_lambda_.4} parent=0 // loop_exit
    _

</llo_original>
